<compile_context>
chip_gen: v6e
topology: v6e:2x2x1
jax: 0.10.0
libtpu: 0.0.40
codegen_flags: <defaults>
</compile_context>

<pallas_src>
import jax
import jax.numpy as jnp
from jax.experimental import pallas as pl
from jax.experimental.pallas import tpu as pltpu


def _self_attention_kernel(x_ref, wq_ref, wk_ref, wv_ref, wu_ref, bu_ref, o_ref):
    bb, seq, emb = x_ref.shape          # block_b, T, E (static)
    heads = wq_ref.shape[0]
    m = bb * seq

    # Collapse the leading (major) dims only: (Bb, T, E) -> (Bb*T, E). bf16 input.
    xm = x_ref[...].reshape(m, emb)

    acc = jnp.zeros((m, emb), jnp.float32)

    # Static unroll over heads; all slicing is along the leading (major) axis of
    # the (H, E, E) weight stacks -> no cross-lane extraction.
    for h in range(heads):
        wq_h = wq_ref[h]                # (E, E) bf16, scale already folded in
        wk_h = wk_ref[h]
        wv_h = wv_ref[h]
        wu_h = wu_ref[h]

        # QKV projections for the whole batch block on the MXU (M = Bb*T rows).
        q = jnp.dot(xm, wq_h, preferred_element_type=jnp.float32)   # (M, E)
        k = jnp.dot(xm, wk_h, preferred_element_type=jnp.float32)   # (M, E)
        v = jnp.dot(xm, wv_h, preferred_element_type=jnp.float32)   # (M, E)

        qb = q.reshape(bb, seq, emb).astype(jnp.bfloat16)
        kb = k.reshape(bb, seq, emb).astype(jnp.bfloat16)
        vb = v.reshape(bb, seq, emb).astype(jnp.bfloat16)

        # Batched scores with a shared last-dim contraction (no explicit k.T).
        s = jnp.einsum("btd,bsd->bts", qb, kb,
                       preferred_element_type=jnp.float32)          # (Bb, T, T)

        # Softmax over keys; elementwise math in f32 (v5e-safe), reciprocal on EUP.
        s = s - jnp.max(s, axis=-1, keepdims=True)
        p = jnp.exp(s)
        p = p * pl.reciprocal(jnp.sum(p, axis=-1, keepdims=True), approx=True)

        o_h = jnp.einsum("bts,bsd->btd", p.astype(jnp.bfloat16), vb,
                         preferred_element_type=jnp.float32)         # (Bb, T, E)

        # unify_heads: accumulate this head's contribution (== concat + matmul).
        acc = acc + jnp.dot(o_h.reshape(m, emb).astype(jnp.bfloat16), wu_h,
                            preferred_element_type=jnp.float32)

    out = acc + bu_ref[...]             # bias (1, E) broadcasts over rows, f32
    o_ref[...] = out.reshape(bb, seq, emb).astype(o_ref.dtype)


def _choose_block_b(B, T):
    """Pick batch-block size: target ~256 rows per matmul, keep >=2 grid steps."""
    target = max(1, 256 // max(T, 1))
    bb = min(B, target)
    if B >= 2:
        bb = max(1, min(bb, B // 2))    # leave >=2 steps for the 2 v7x TensorCores
    while B % bb:                       # require an exact divisor of B
        bb -= 1
    return bb


def self_attention(x, wk, wq, wv, wu, bu, *, heads, block_b=None):
    """x: (B, T, E); wk/wq/wv: (E, H*E); wu: (H*E, E); bu: (1, E)."""
    B, T, E = x.shape
    HE = heads * E
    assert wk.shape == (E, HE) and wq.shape == (E, HE) and wv.shape == (E, HE)
    assert wu.shape == (HE, E) and bu.shape == (1, E)

    if block_b is None:
        block_b = _choose_block_b(B, T)
    grid_b = B // block_b

    # Parameter prep (runs once in XLA, outside the kernel):
    #  - fold the full attention scale E**-0.5 into wq (zero in-kernel muls),
    #  - restack the flat (E, H*E) / (H*E, E) weights head-major as (H, E, E),
    #  - cast MXU operands to bf16 (halves weight/x DMA bytes), keep bias f32.
    scale = E ** -0.5
    wq_h = (wq * scale).reshape(E, heads, E).transpose(1, 0, 2).astype(jnp.bfloat16)
    wk_h = wk.reshape(E, heads, E).transpose(1, 0, 2).astype(jnp.bfloat16)
    wv_h = wv.reshape(E, heads, E).transpose(1, 0, 2).astype(jnp.bfloat16)
    wu_h = wu.reshape(heads, E, E).astype(jnp.bfloat16)
    bu_f = bu.astype(jnp.float32)
    x_bf = x.astype(jnp.bfloat16)

    return pl.pallas_call(
        _self_attention_kernel,
        out_shape=jax.ShapeDtypeStruct((B, T, E), x.dtype),
        grid_spec=pltpu.PrefetchScalarGridSpec(
            num_scalar_prefetch=0,
            grid=(grid_b,),
            in_specs=[
                pl.BlockSpec((block_b, T, E), lambda b: (b, 0, 0)),   # x block
                pl.BlockSpec((heads, E, E), lambda b: (0, 0, 0)),     # wq (resident)
                pl.BlockSpec((heads, E, E), lambda b: (0, 0, 0)),     # wk
                pl.BlockSpec((heads, E, E), lambda b: (0, 0, 0)),     # wv
                pl.BlockSpec((heads, E, E), lambda b: (0, 0, 0)),     # unify weight
                pl.BlockSpec((1, E), lambda b: (0, 0)),               # unify bias
            ],
            out_specs=pl.BlockSpec((block_b, T, E), lambda b: (b, 0, 0)),
        ),
        compiler_params=pltpu.CompilerParams(
            dimension_semantics=("parallel",)),
    )(x_bf, wq_h, wk_h, wv_h, wu_h, bu_f)
    # TODO(synk): for T >~ 1K, switch the (T, T) scores to a flash-style
    # online-softmax KV loop to stay inside the v7x 64 MiB VMEM budget.


def self_attention_ref(x, wk, wq, wv, wu, bu, *, heads):
    """Pure-JAX f32 reference mirroring the PyTorch forward exactly."""
    B, T, E = x.shape
    s = E ** 0.25
    k = (x @ wk).reshape(B, T, heads, E).transpose(0, 2, 1, 3) / s
    q = (x @ wq).reshape(B, T, heads, E).transpose(0, 2, 1, 3) / s
    v = (x @ wv).reshape(B, T, heads, E).transpose(0, 2, 1, 3)
    dot = jax.nn.softmax(jnp.einsum("bhtd,bhsd->bhts", q, k), axis=-1)
    out = jnp.einsum("bhts,bhsd->bhtd", dot, v)
    out = out.transpose(0, 2, 1, 3).reshape(B, T, heads * E)
    return out @ wu + bu


if __name__ == "__main__":
    B, T, E, H = 8, 16, 32, 4   # small, but big enough to exercise batch blocking

    key = jax.random.PRNGKey(0)
    kx, kk, kq, kv, ku, kb = jax.random.split(key, 6)

    x = jax.random.normal(kx, (B, T, E), dtype=jnp.float32)
    # PyTorch-Linear-equivalent parameters, stored transposed as (in, out).
    wk = jax.random.normal(kk, (E, E * H), dtype=jnp.float32) * 0.05
    wq = jax.random.normal(kq, (E, E * H), dtype=jnp.float32) * 0.05
    wv = jax.random.normal(kv, (E, E * H), dtype=jnp.float32) * 0.05
    wu = jax.random.normal(ku, (E * H, E), dtype=jnp.float32) * 0.05
    bu = jax.random.normal(kb, (1, E), dtype=jnp.float32) * 0.05

    out = self_attention(x, wk, wq, wv, wu, bu, heads=H)
    out = jax.block_until_ready(out)

    ref = self_attention_ref(x, wk, wq, wv, wu, bu, heads=H)
    assert out.shape == (B, T, E)
    # bf16 MXU operands (per the perf review) => compare at bf16-appropriate tolerance.
    assert jnp.allclose(out, ref, atol=2e-2, rtol=2e-2), "mismatch vs reference"

    print("KERNEL_OK")
</pallas_src>

<mosaic_0001>
module attributes {stable_mosaic.version = 11 : i64} {
  func.func @_self_attention_kernel(%arg0: i32, %arg1: memref<4x16x32xbf16, #tpu.memory_space<vmem>>, %arg2: memref<4x32x32xbf16, #tpu.memory_space<vmem>>, %arg3: memref<4x32x32xbf16, #tpu.memory_space<vmem>>, %arg4: memref<4x32x32xbf16, #tpu.memory_space<vmem>>, %arg5: memref<4x32x32xbf16, #tpu.memory_space<vmem>>, %arg6: memref<1x32xf32, #tpu.memory_space<vmem>>, %arg7: memref<4x16x32xf32, #tpu.memory_space<vmem>>) attributes {dimension_semantics = [#tpu.dimension_semantics<parallel>], iteration_bounds = array<i64: 2>, scalar_prefetch = 0 : i64, scratch_operands = 0 : i64, tpu.core_type = #tpu.core_type<tc>, window_params = [{transform_indices = @transform_0, window_bounds = array<i64: 4, 16, 32>}, {pipeline_mode = #tpu.pipeline_mode<synchronous>, transform_indices = @transform_1, window_bounds = array<i64: 4, 32, 32>}, {pipeline_mode = #tpu.pipeline_mode<synchronous>, transform_indices = @transform_2, window_bounds = array<i64: 4, 32, 32>}, {pipeline_mode = #tpu.pipeline_mode<synchronous>, transform_indices = @transform_3, window_bounds = array<i64: 4, 32, 32>}, {pipeline_mode = #tpu.pipeline_mode<synchronous>, transform_indices = @transform_4, window_bounds = array<i64: 4, 32, 32>}, {pipeline_mode = #tpu.pipeline_mode<synchronous>, transform_indices = @transform_5, window_bounds = array<i64: 1, 32>}, {transform_indices = @transform_6, window_bounds = array<i64: 4, 16, 32>}]} {
    %c0 = arith.constant 0 : index
    %c0_0 = arith.constant 0 : index
    %c0_1 = arith.constant 0 : index
    %0 = vector.load %arg1[%c0, %c0_0, %c0_1] : memref<4x16x32xbf16, #tpu.memory_space<vmem>>, vector<4x16x32xbf16>
    %1 = vector.shape_cast %0 : vector<4x16x32xbf16> to vector<64x32xbf16>
    %cst = arith.constant 0.000000e+00 : f32
    %2 = vector.broadcast %cst : f32 to vector<64x32xf32>
    %c0_2 = arith.constant 0 : index
    %c0_3 = arith.constant 0 : index
    %c0_4 = arith.constant 0 : index
    %3 = vector.load %arg2[%c0_2, %c0_3, %c0_4] : memref<4x32x32xbf16, #tpu.memory_space<vmem>>, vector<1x32x32xbf16>
    %4 = vector.shape_cast %3 : vector<1x32x32xbf16> to vector<32x32xbf16>
    %c0_5 = arith.constant 0 : index
    %c0_6 = arith.constant 0 : index
    %c0_7 = arith.constant 0 : index
    %5 = vector.load %arg3[%c0_5, %c0_6, %c0_7] : memref<4x32x32xbf16, #tpu.memory_space<vmem>>, vector<1x32x32xbf16>
    %6 = vector.shape_cast %5 : vector<1x32x32xbf16> to vector<32x32xbf16>
    %c0_8 = arith.constant 0 : index
    %c0_9 = arith.constant 0 : index
    %c0_10 = arith.constant 0 : index
    %7 = vector.load %arg4[%c0_8, %c0_9, %c0_10] : memref<4x32x32xbf16, #tpu.memory_space<vmem>>, vector<1x32x32xbf16>
    %8 = vector.shape_cast %7 : vector<1x32x32xbf16> to vector<32x32xbf16>
    %c0_11 = arith.constant 0 : index
    %c0_12 = arith.constant 0 : index
    %c0_13 = arith.constant 0 : index
    %9 = vector.load %arg5[%c0_11, %c0_12, %c0_13] : memref<4x32x32xbf16, #tpu.memory_space<vmem>>, vector<1x32x32xbf16>
    %10 = vector.shape_cast %9 : vector<1x32x32xbf16> to vector<32x32xbf16>
    %cst_14 = arith.constant dense<0.000000e+00> : vector<64x32xf32>
    %11 = tpu.matmul %1, %4, %cst_14 {dimension_numbers = #tpu.dot_dimension_numbers<[1], [0], [0], [1], [0, 0, 1, 1], [], []>} : vector<64x32xbf16>, vector<32x32xbf16>, vector<64x32xf32> -> vector<64x32xf32>
    %cst_15 = arith.constant dense<0.000000e+00> : vector<64x32xf32>
    %12 = tpu.matmul %1, %6, %cst_15 {dimension_numbers = #tpu.dot_dimension_numbers<[1], [0], [0], [1], [0, 0, 1, 1], [], []>} : vector<64x32xbf16>, vector<32x32xbf16>, vector<64x32xf32> -> vector<64x32xf32>
    %cst_16 = arith.constant dense<0.000000e+00> : vector<64x32xf32>
    %13 = tpu.matmul %1, %8, %cst_16 {dimension_numbers = #tpu.dot_dimension_numbers<[1], [0], [0], [1], [0, 0, 1, 1], [], []>} : vector<64x32xbf16>, vector<32x32xbf16>, vector<64x32xf32> -> vector<64x32xf32>
    %14 = vector.shape_cast %11 : vector<64x32xf32> to vector<4x16x32xf32>
    %15 = arith.truncf %14 : vector<4x16x32xf32> to vector<4x16x32xbf16>
    %16 = vector.shape_cast %12 : vector<64x32xf32> to vector<4x16x32xf32>
    %17 = arith.truncf %16 : vector<4x16x32xf32> to vector<4x16x32xbf16>
    %18 = vector.shape_cast %13 : vector<64x32xf32> to vector<4x16x32xf32>
    %19 = arith.truncf %18 : vector<4x16x32xf32> to vector<4x16x32xbf16>
    "tpu.trace_start"() <{level = 10 : i32, message = "btd,bsd->bts"}> : () -> ()
    %cst_17 = arith.constant dense<0.000000e+00> : vector<4x16x16xf32>
    %20 = tpu.matmul %15, %17, %cst_17 {dimension_numbers = #tpu.dot_dimension_numbers<[2], [2], [1], [1], [0, 0, 0, 1, 1, 1], [0], [0]>} : vector<4x16x32xbf16>, vector<4x16x32xbf16>, vector<4x16x16xf32> -> vector<4x16x16xf32>
    "tpu.trace_stop"() : () -> ()
    %cst_18 = arith.constant dense<0xFF800000> : vector<4x16xf32>
    %21 = vector.multi_reduction <maximumf>, %20, %cst_18 [2] : vector<4x16x16xf32> to vector<4x16xf32>
    %22 = vector.shape_cast %21 : vector<4x16xf32> to vector<4x16x1xf32>
    %23 = vector.broadcast %22 : vector<4x16x1xf32> to vector<4x16x16xf32>
    %24 = arith.subf %20, %23 : vector<4x16x16xf32>
    %25 = math.exp %24 : vector<4x16x16xf32>
    %cst_19 = arith.constant dense<0.000000e+00> : vector<4x16xf32>
    %26 = vector.multi_reduction <add>, %25, %cst_19 [2] : vector<4x16x16xf32> to vector<4x16xf32>
    %27 = vector.shape_cast %26 : vector<4x16xf32> to vector<4x16x1xf32>
    %28 = tpu.reciprocal %27 {approx = true} : vector<4x16x1xf32> -> vector<4x16x1xf32>
    %29 = vector.broadcast %28 : vector<4x16x1xf32> to vector<4x16x16xf32>
    %30 = arith.mulf %25, %29 : vector<4x16x16xf32>
    %31 = arith.truncf %30 : vector<4x16x16xf32> to vector<4x16x16xbf16>
    "tpu.trace_start"() <{level = 10 : i32, message = "bts,bsd->btd"}> : () -> ()
    %cst_20 = arith.constant dense<0.000000e+00> : vector<4x16x32xf32>
    %32 = tpu.matmul %31, %19, %cst_20 {dimension_numbers = #tpu.dot_dimension_numbers<[2], [1], [1], [2], [0, 0, 0, 1, 1, 2], [0], [0]>} : vector<4x16x16xbf16>, vector<4x16x32xbf16>, vector<4x16x32xf32> -> vector<4x16x32xf32>
    "tpu.trace_stop"() : () -> ()
    %33 = vector.shape_cast %32 : vector<4x16x32xf32> to vector<64x32xf32>
    %34 = arith.truncf %33 : vector<64x32xf32> to vector<64x32xbf16>
    %cst_21 = arith.constant dense<0.000000e+00> : vector<64x32xf32>
    %35 = tpu.matmul %34, %10, %cst_21 {dimension_numbers = #tpu.dot_dimension_numbers<[1], [0], [0], [1], [0, 0, 1, 1], [], []>} : vector<64x32xbf16>, vector<32x32xbf16>, vector<64x32xf32> -> vector<64x32xf32>
    %36 = arith.addf %2, %35 : vector<64x32xf32>
    %c1 = arith.constant 1 : index
    %c0_22 = arith.constant 0 : index
    %c0_23 = arith.constant 0 : index
    %37 = vector.load %arg2[%c1, %c0_22, %c0_23] : memref<4x32x32xbf16, #tpu.memory_space<vmem>>, vector<1x32x32xbf16>
    %38 = vector.shape_cast %37 : vector<1x32x32xbf16> to vector<32x32xbf16>
    %c1_24 = arith.constant 1 : index
    %c0_25 = arith.constant 0 : index
    %c0_26 = arith.constant 0 : index
    %39 = vector.load %arg3[%c1_24, %c0_25, %c0_26] : memref<4x32x32xbf16, #tpu.memory_space<vmem>>, vector<1x32x32xbf16>
    %40 = vector.shape_cast %39 : vector<1x32x32xbf16> to vector<32x32xbf16>
    %c1_27 = arith.constant 1 : index
    %c0_28 = arith.constant 0 : index
    %c0_29 = arith.constant 0 : index
    %41 = vector.load %arg4[%c1_27, %c0_28, %c0_29] : memref<4x32x32xbf16, #tpu.memory_space<vmem>>, vector<1x32x32xbf16>
    %42 = vector.shape_cast %41 : vector<1x32x32xbf16> to vector<32x32xbf16>
    %c1_30 = arith.constant 1 : index
    %c0_31 = arith.constant 0 : index
    %c0_32 = arith.constant 0 : index
    %43 = vector.load %arg5[%c1_30, %c0_31, %c0_32] : memref<4x32x32xbf16, #tpu.memory_space<vmem>>, vector<1x32x32xbf16>
    %44 = vector.shape_cast %43 : vector<1x32x32xbf16> to vector<32x32xbf16>
    %cst_33 = arith.constant dense<0.000000e+00> : vector<64x32xf32>
    %45 = tpu.matmul %1, %38, %cst_33 {dimension_numbers = #tpu.dot_dimension_numbers<[1], [0], [0], [1], [0, 0, 1, 1], [], []>} : vector<64x32xbf16>, vector<32x32xbf16>, vector<64x32xf32> -> vector<64x32xf32>
    %cst_34 = arith.constant dense<0.000000e+00> : vector<64x32xf32>
    %46 = tpu.matmul %1, %40, %cst_34 {dimension_numbers = #tpu.dot_dimension_numbers<[1], [0], [0], [1], [0, 0, 1, 1], [], []>} : vector<64x32xbf16>, vector<32x32xbf16>, vector<64x32xf32> -> vector<64x32xf32>
    %cst_35 = arith.constant dense<0.000000e+00> : vector<64x32xf32>
    %47 = tpu.matmul %1, %42, %cst_35 {dimension_numbers = #tpu.dot_dimension_numbers<[1], [0], [0], [1], [0, 0, 1, 1], [], []>} : vector<64x32xbf16>, vector<32x32xbf16>, vector<64x32xf32> -> vector<64x32xf32>
    %48 = vector.shape_cast %45 : vector<64x32xf32> to vector<4x16x32xf32>
    %49 = arith.truncf %48 : vector<4x16x32xf32> to vector<4x16x32xbf16>
    %50 = vector.shape_cast %46 : vector<64x32xf32> to vector<4x16x32xf32>
    %51 = arith.truncf %50 : vector<4x16x32xf32> to vector<4x16x32xbf16>
    %52 = vector.shape_cast %47 : vector<64x32xf32> to vector<4x16x32xf32>
    %53 = arith.truncf %52 : vector<4x16x32xf32> to vector<4x16x32xbf16>
    "tpu.trace_start"() <{level = 10 : i32, message = "btd,bsd->bts"}> : () -> ()
    %cst_36 = arith.constant dense<0.000000e+00> : vector<4x16x16xf32>
    %54 = tpu.matmul %49, %51, %cst_36 {dimension_numbers = #tpu.dot_dimension_numbers<[2], [2], [1], [1], [0, 0, 0, 1, 1, 1], [0], [0]>} : vector<4x16x32xbf16>, vector<4x16x32xbf16>, vector<4x16x16xf32> -> vector<4x16x16xf32>
    "tpu.trace_stop"() : () -> ()
    %cst_37 = arith.constant dense<0xFF800000> : vector<4x16xf32>
    %55 = vector.multi_reduction <maximumf>, %54, %cst_37 [2] : vector<4x16x16xf32> to vector<4x16xf32>
    %56 = vector.shape_cast %55 : vector<4x16xf32> to vector<4x16x1xf32>
    %57 = vector.broadcast %56 : vector<4x16x1xf32> to vector<4x16x16xf32>
    %58 = arith.subf %54, %57 : vector<4x16x16xf32>
    %59 = math.exp %58 : vector<4x16x16xf32>
    %cst_38 = arith.constant dense<0.000000e+00> : vector<4x16xf32>
    %60 = vector.multi_reduction <add>, %59, %cst_38 [2] : vector<4x16x16xf32> to vector<4x16xf32>
    %61 = vector.shape_cast %60 : vector<4x16xf32> to vector<4x16x1xf32>
    %62 = tpu.reciprocal %61 {approx = true} : vector<4x16x1xf32> -> vector<4x16x1xf32>
    %63 = vector.broadcast %62 : vector<4x16x1xf32> to vector<4x16x16xf32>
    %64 = arith.mulf %59, %63 : vector<4x16x16xf32>
    %65 = arith.truncf %64 : vector<4x16x16xf32> to vector<4x16x16xbf16>
    "tpu.trace_start"() <{level = 10 : i32, message = "bts,bsd->btd"}> : () -> ()
    %cst_39 = arith.constant dense<0.000000e+00> : vector<4x16x32xf32>
    %66 = tpu.matmul %65, %53, %cst_39 {dimension_numbers = #tpu.dot_dimension_numbers<[2], [1], [1], [2], [0, 0, 0, 1, 1, 2], [0], [0]>} : vector<4x16x16xbf16>, vector<4x16x32xbf16>, vector<4x16x32xf32> -> vector<4x16x32xf32>
    "tpu.trace_stop"() : () -> ()
    %67 = vector.shape_cast %66 : vector<4x16x32xf32> to vector<64x32xf32>
    %68 = arith.truncf %67 : vector<64x32xf32> to vector<64x32xbf16>
    %cst_40 = arith.constant dense<0.000000e+00> : vector<64x32xf32>
    %69 = tpu.matmul %68, %44, %cst_40 {dimension_numbers = #tpu.dot_dimension_numbers<[1], [0], [0], [1], [0, 0, 1, 1], [], []>} : vector<64x32xbf16>, vector<32x32xbf16>, vector<64x32xf32> -> vector<64x32xf32>
    %70 = arith.addf %36, %69 : vector<64x32xf32>
    %c2 = arith.constant 2 : index
    %c0_41 = arith.constant 0 : index
    %c0_42 = arith.constant 0 : index
    %71 = vector.load %arg2[%c2, %c0_41, %c0_42] : memref<4x32x32xbf16, #tpu.memory_space<vmem>>, vector<1x32x32xbf16>
    %72 = vector.shape_cast %71 : vector<1x32x32xbf16> to vector<32x32xbf16>
    %c2_43 = arith.constant 2 : index
    %c0_44 = arith.constant 0 : index
    %c0_45 = arith.constant 0 : index
    %73 = vector.load %arg3[%c2_43, %c0_44, %c0_45] : memref<4x32x32xbf16, #tpu.memory_space<vmem>>, vector<1x32x32xbf16>
    %74 = vector.shape_cast %73 : vector<1x32x32xbf16> to vector<32x32xbf16>
    %c2_46 = arith.constant 2 : index
    %c0_47 = arith.constant 0 : index
    %c0_48 = arith.constant 0 : index
    %75 = vector.load %arg4[%c2_46, %c0_47, %c0_48] : memref<4x32x32xbf16, #tpu.memory_space<vmem>>, vector<1x32x32xbf16>
    %76 = vector.shape_cast %75 : vector<1x32x32xbf16> to vector<32x32xbf16>
    %c2_49 = arith.constant 2 : index
    %c0_50 = arith.constant 0 : index
    %c0_51 = arith.constant 0 : index
    %77 = vector.load %arg5[%c2_49, %c0_50, %c0_51] : memref<4x32x32xbf16, #tpu.memory_space<vmem>>, vector<1x32x32xbf16>
    %78 = vector.shape_cast %77 : vector<1x32x32xbf16> to vector<32x32xbf16>
    %cst_52 = arith.constant dense<0.000000e+00> : vector<64x32xf32>
    %79 = tpu.matmul %1, %72, %cst_52 {dimension_numbers = #tpu.dot_dimension_numbers<[1], [0], [0], [1], [0, 0, 1, 1], [], []>} : vector<64x32xbf16>, vector<32x32xbf16>, vector<64x32xf32> -> vector<64x32xf32>
    %cst_53 = arith.constant dense<0.000000e+00> : vector<64x32xf32>
    %80 = tpu.matmul %1, %74, %cst_53 {dimension_numbers = #tpu.dot_dimension_numbers<[1], [0], [0], [1], [0, 0, 1, 1], [], []>} : vector<64x32xbf16>, vector<32x32xbf16>, vector<64x32xf32> -> vector<64x32xf32>
    %cst_54 = arith.constant dense<0.000000e+00> : vector<64x32xf32>
    %81 = tpu.matmul %1, %76, %cst_54 {dimension_numbers = #tpu.dot_dimension_numbers<[1], [0], [0], [1], [0, 0, 1, 1], [], []>} : vector<64x32xbf16>, vector<32x32xbf16>, vector<64x32xf32> -> vector<64x32xf32>
    %82 = vector.shape_cast %79 : vector<64x32xf32> to vector<4x16x32xf32>
    %83 = arith.truncf %82 : vector<4x16x32xf32> to vector<4x16x32xbf16>
    %84 = vector.shape_cast %80 : vector<64x32xf32> to vector<4x16x32xf32>
    %85 = arith.truncf %84 : vector<4x16x32xf32> to vector<4x16x32xbf16>
    %86 = vector.shape_cast %81 : vector<64x32xf32> to vector<4x16x32xf32>
    %87 = arith.truncf %86 : vector<4x16x32xf32> to vector<4x16x32xbf16>
    "tpu.trace_start"() <{level = 10 : i32, message = "btd,bsd->bts"}> : () -> ()
    %cst_55 = arith.constant dense<0.000000e+00> : vector<4x16x16xf32>
    %88 = tpu.matmul %83, %85, %cst_55 {dimension_numbers = #tpu.dot_dimension_numbers<[2], [2], [1], [1], [0, 0, 0, 1, 1, 1], [0], [0]>} : vector<4x16x32xbf16>, vector<4x16x32xbf16>, vector<4x16x16xf32> -> vector<4x16x16xf32>
    "tpu.trace_stop"() : () -> ()
    %cst_56 = arith.constant dense<0xFF800000> : vector<4x16xf32>
    %89 = vector.multi_reduction <maximumf>, %88, %cst_56 [2] : vector<4x16x16xf32> to vector<4x16xf32>
    %90 = vector.shape_cast %89 : vector<4x16xf32> to vector<4x16x1xf32>
    %91 = vector.broadcast %90 : vector<4x16x1xf32> to vector<4x16x16xf32>
    %92 = arith.subf %88, %91 : vector<4x16x16xf32>
    %93 = math.exp %92 : vector<4x16x16xf32>
    %cst_57 = arith.constant dense<0.000000e+00> : vector<4x16xf32>
    %94 = vector.multi_reduction <add>, %93, %cst_57 [2] : vector<4x16x16xf32> to vector<4x16xf32>
    %95 = vector.shape_cast %94 : vector<4x16xf32> to vector<4x16x1xf32>
    %96 = tpu.reciprocal %95 {approx = true} : vector<4x16x1xf32> -> vector<4x16x1xf32>
    %97 = vector.broadcast %96 : vector<4x16x1xf32> to vector<4x16x16xf32>
    %98 = arith.mulf %93, %97 : vector<4x16x16xf32>
    %99 = arith.truncf %98 : vector<4x16x16xf32> to vector<4x16x16xbf16>
    "tpu.trace_start"() <{level = 10 : i32, message = "bts,bsd->btd"}> : () -> ()
    %cst_58 = arith.constant dense<0.000000e+00> : vector<4x16x32xf32>
    %100 = tpu.matmul %99, %87, %cst_58 {dimension_numbers = #tpu.dot_dimension_numbers<[2], [1], [1], [2], [0, 0, 0, 1, 1, 2], [0], [0]>} : vector<4x16x16xbf16>, vector<4x16x32xbf16>, vector<4x16x32xf32> -> vector<4x16x32xf32>
    "tpu.trace_stop"() : () -> ()
    %101 = vector.shape_cast %100 : vector<4x16x32xf32> to vector<64x32xf32>
    %102 = arith.truncf %101 : vector<64x32xf32> to vector<64x32xbf16>
    %cst_59 = arith.constant dense<0.000000e+00> : vector<64x32xf32>
    %103 = tpu.matmul %102, %78, %cst_59 {dimension_numbers = #tpu.dot_dimension_numbers<[1], [0], [0], [1], [0, 0, 1, 1], [], []>} : vector<64x32xbf16>, vector<32x32xbf16>, vector<64x32xf32> -> vector<64x32xf32>
    %104 = arith.addf %70, %103 : vector<64x32xf32>
    %c3 = arith.constant 3 : index
    %c0_60 = arith.constant 0 : index
    %c0_61 = arith.constant 0 : index
    %105 = vector.load %arg2[%c3, %c0_60, %c0_61] : memref<4x32x32xbf16, #tpu.memory_space<vmem>>, vector<1x32x32xbf16>
    %106 = vector.shape_cast %105 : vector<1x32x32xbf16> to vector<32x32xbf16>
    %c3_62 = arith.constant 3 : index
    %c0_63 = arith.constant 0 : index
    %c0_64 = arith.constant 0 : index
    %107 = vector.load %arg3[%c3_62, %c0_63, %c0_64] : memref<4x32x32xbf16, #tpu.memory_space<vmem>>, vector<1x32x32xbf16>
    %108 = vector.shape_cast %107 : vector<1x32x32xbf16> to vector<32x32xbf16>
    %c3_65 = arith.constant 3 : index
    %c0_66 = arith.constant 0 : index
    %c0_67 = arith.constant 0 : index
    %109 = vector.load %arg4[%c3_65, %c0_66, %c0_67] : memref<4x32x32xbf16, #tpu.memory_space<vmem>>, vector<1x32x32xbf16>
    %110 = vector.shape_cast %109 : vector<1x32x32xbf16> to vector<32x32xbf16>
    %c3_68 = arith.constant 3 : index
    %c0_69 = arith.constant 0 : index
    %c0_70 = arith.constant 0 : index
    %111 = vector.load %arg5[%c3_68, %c0_69, %c0_70] : memref<4x32x32xbf16, #tpu.memory_space<vmem>>, vector<1x32x32xbf16>
    %112 = vector.shape_cast %111 : vector<1x32x32xbf16> to vector<32x32xbf16>
    %cst_71 = arith.constant dense<0.000000e+00> : vector<64x32xf32>
    %113 = tpu.matmul %1, %106, %cst_71 {dimension_numbers = #tpu.dot_dimension_numbers<[1], [0], [0], [1], [0, 0, 1, 1], [], []>} : vector<64x32xbf16>, vector<32x32xbf16>, vector<64x32xf32> -> vector<64x32xf32>
    %cst_72 = arith.constant dense<0.000000e+00> : vector<64x32xf32>
    %114 = tpu.matmul %1, %108, %cst_72 {dimension_numbers = #tpu.dot_dimension_numbers<[1], [0], [0], [1], [0, 0, 1, 1], [], []>} : vector<64x32xbf16>, vector<32x32xbf16>, vector<64x32xf32> -> vector<64x32xf32>
    %cst_73 = arith.constant dense<0.000000e+00> : vector<64x32xf32>
    %115 = tpu.matmul %1, %110, %cst_73 {dimension_numbers = #tpu.dot_dimension_numbers<[1], [0], [0], [1], [0, 0, 1, 1], [], []>} : vector<64x32xbf16>, vector<32x32xbf16>, vector<64x32xf32> -> vector<64x32xf32>
    %116 = vector.shape_cast %113 : vector<64x32xf32> to vector<4x16x32xf32>
    %117 = arith.truncf %116 : vector<4x16x32xf32> to vector<4x16x32xbf16>
    %118 = vector.shape_cast %114 : vector<64x32xf32> to vector<4x16x32xf32>
    %119 = arith.truncf %118 : vector<4x16x32xf32> to vector<4x16x32xbf16>
    %120 = vector.shape_cast %115 : vector<64x32xf32> to vector<4x16x32xf32>
    %121 = arith.truncf %120 : vector<4x16x32xf32> to vector<4x16x32xbf16>
    "tpu.trace_start"() <{level = 10 : i32, message = "btd,bsd->bts"}> : () -> ()
    %cst_74 = arith.constant dense<0.000000e+00> : vector<4x16x16xf32>
    %122 = tpu.matmul %117, %119, %cst_74 {dimension_numbers = #tpu.dot_dimension_numbers<[2], [2], [1], [1], [0, 0, 0, 1, 1, 1], [0], [0]>} : vector<4x16x32xbf16>, vector<4x16x32xbf16>, vector<4x16x16xf32> -> vector<4x16x16xf32>
    "tpu.trace_stop"() : () -> ()
    %cst_75 = arith.constant dense<0xFF800000> : vector<4x16xf32>
    %123 = vector.multi_reduction <maximumf>, %122, %cst_75 [2] : vector<4x16x16xf32> to vector<4x16xf32>
    %124 = vector.shape_cast %123 : vector<4x16xf32> to vector<4x16x1xf32>
    %125 = vector.broadcast %124 : vector<4x16x1xf32> to vector<4x16x16xf32>
    %126 = arith.subf %122, %125 : vector<4x16x16xf32>
    %127 = math.exp %126 : vector<4x16x16xf32>
    %cst_76 = arith.constant dense<0.000000e+00> : vector<4x16xf32>
    %128 = vector.multi_reduction <add>, %127, %cst_76 [2] : vector<4x16x16xf32> to vector<4x16xf32>
    %129 = vector.shape_cast %128 : vector<4x16xf32> to vector<4x16x1xf32>
    %130 = tpu.reciprocal %129 {approx = true} : vector<4x16x1xf32> -> vector<4x16x1xf32>
    %131 = vector.broadcast %130 : vector<4x16x1xf32> to vector<4x16x16xf32>
    %132 = arith.mulf %127, %131 : vector<4x16x16xf32>
    %133 = arith.truncf %132 : vector<4x16x16xf32> to vector<4x16x16xbf16>
    "tpu.trace_start"() <{level = 10 : i32, message = "bts,bsd->btd"}> : () -> ()
    %cst_77 = arith.constant dense<0.000000e+00> : vector<4x16x32xf32>
    %134 = tpu.matmul %133, %121, %cst_77 {dimension_numbers = #tpu.dot_dimension_numbers<[2], [1], [1], [2], [0, 0, 0, 1, 1, 2], [0], [0]>} : vector<4x16x16xbf16>, vector<4x16x32xbf16>, vector<4x16x32xf32> -> vector<4x16x32xf32>
    "tpu.trace_stop"() : () -> ()
    %135 = vector.shape_cast %134 : vector<4x16x32xf32> to vector<64x32xf32>
    %136 = arith.truncf %135 : vector<64x32xf32> to vector<64x32xbf16>
    %cst_78 = arith.constant dense<0.000000e+00> : vector<64x32xf32>
    %137 = tpu.matmul %136, %112, %cst_78 {dimension_numbers = #tpu.dot_dimension_numbers<[1], [0], [0], [1], [0, 0, 1, 1], [], []>} : vector<64x32xbf16>, vector<32x32xbf16>, vector<64x32xf32> -> vector<64x32xf32>
    %138 = arith.addf %104, %137 : vector<64x32xf32>
    %c0_79 = arith.constant 0 : index
    %c0_80 = arith.constant 0 : index
    %139 = vector.load %arg6[%c0_79, %c0_80] : memref<1x32xf32, #tpu.memory_space<vmem>>, vector<1x32xf32>
    %140 = vector.broadcast %139 : vector<1x32xf32> to vector<64x32xf32>
    %141 = arith.addf %138, %140 : vector<64x32xf32>
    %142 = vector.shape_cast %141 : vector<64x32xf32> to vector<4x16x32xf32>
    %c0_81 = arith.constant 0 : index
    %c0_82 = arith.constant 0 : index
    %c0_83 = arith.constant 0 : index
    %143 = vector.load %arg7[%c0_81, %c0_82, %c0_83] : memref<4x16x32xf32, #tpu.memory_space<vmem>>, vector<4x16x32xf32>
    tpu.vector_store %arg7[%c0_81, %c0_82, %c0_83], %142 {strides = array<i32>} : memref<4x16x32xf32, #tpu.memory_space<vmem>>, vector<4x16x32xf32>,
    return
  }
  func.func @transform_0(%arg0: i32) -> (i32, i32, i32) {
    %c0_i32 = arith.constant 0 : i32
    %c0_i32_0 = arith.constant 0 : i32
    %c0_i32_1 = arith.constant 0 : i32
    return %arg0, %c0_i32, %c0_i32_0 : i32, i32, i32
  }
  func.func @transform_1(%arg0: i32) -> (i32, i32, i32) {
    %c0_i32 = arith.constant 0 : i32
    %c0_i32_0 = arith.constant 0 : i32
    %c0_i32_1 = arith.constant 0 : i32
    %c0_i32_2 = arith.constant 0 : i32
    return %c0_i32, %c0_i32_0, %c0_i32_1 : i32, i32, i32
  }
  func.func @transform_2(%arg0: i32) -> (i32, i32, i32) {
    %c0_i32 = arith.constant 0 : i32
    %c0_i32_0 = arith.constant 0 : i32
    %c0_i32_1 = arith.constant 0 : i32
    %c0_i32_2 = arith.constant 0 : i32
    return %c0_i32, %c0_i32_0, %c0_i32_1 : i32, i32, i32
  }
  func.func @transform_3(%arg0: i32) -> (i32, i32, i32) {
    %c0_i32 = arith.constant 0 : i32
    %c0_i32_0 = arith.constant 0 : i32
    %c0_i32_1 = arith.constant 0 : i32
    %c0_i32_2 = arith.constant 0 : i32
    return %c0_i32, %c0_i32_0, %c0_i32_1 : i32, i32, i32
  }
  func.func @transform_4(%arg0: i32) -> (i32, i32, i32) {
    %c0_i32 = arith.constant 0 : i32
    %c0_i32_0 = arith.constant 0 : i32
    %c0_i32_1 = arith.constant 0 : i32
    %c0_i32_2 = arith.constant 0 : i32
    return %c0_i32, %c0_i32_0, %c0_i32_1 : i32, i32, i32
  }
  func.func @transform_5(%arg0: i32) -> (i32, i32) {
    %c0_i32 = arith.constant 0 : i32
    %c0_i32_0 = arith.constant 0 : i32
    %c0_i32_1 = arith.constant 0 : i32
    return %c0_i32, %c0_i32_0 : i32, i32
  }
  func.func @transform_6(%arg0: i32) -> (i32, i32, i32) {
    %c0_i32 = arith.constant 0 : i32
    %c0_i32_0 = arith.constant 0 : i32
    %c0_i32_1 = arith.constant 0 : i32
    return %arg0, %c0_i32, %c0_i32_0 : i32, i32, i32
  }
}

</mosaic_0001>

<llo_original>
// kernel: tpu_custom_call.1
$region0: #{tpu_custom_call.1}
  #allocation0 [shape = 'u32[]', space=smem, size = 0x4, offset = 0x4, fixed_abs, tag = 'smem constant byte address 0x4 - core index']
  #allocation1 [shape = 'u32[144,128]{1,0:T(1,128)}', space=vmem, size = 0x12000, scoped, tag = 'internal scratch']
  %s0 = inlined_call_operand.hbm [shape: bf16[8,16,32], index: 0, kind: input, shape index: {}]
  %s1 = inlined_call_operand.hbm [shape: bf16[4,32,32], index: 1, kind: input, shape index: {}]
  %s2 = inlined_call_operand.hbm [shape: bf16[4,32,32], index: 2, kind: input, shape index: {}]
  %s3 = inlined_call_operand.hbm [shape: bf16[4,32,32], index: 3, kind: input, shape index: {}]
  %s4 = inlined_call_operand.hbm [shape: bf16[4,32,32], index: 4, kind: input, shape index: {}]
  %s5 = inlined_call_operand.vmem [shape: f32[1,32], index: 5, kind: input, shape index: {}]
  %s6 = inlined_call_operand.hbm [shape: f32[8,16,32], index: 6, kind: output, shape index: {}]
  %s7 = sld [smem:[#allocation0]]
  $region77: #{tpu_custom_call.1} parent=0
    _
  %s9 = ssub.s32 1, %s7
  %s10 = scalar_select 0, %s9, %s7
  $region1: #{tpu_custom_call.1} parent=0
    #allocation2 [shape = 'u8[32768]{0}', space=vmem, size = 0x8000, scoped, tag = 'input window, operand 0']
    #allocation3 [shape = 's32[2]{0}', space=sflag, size = 0x8, scoped, tag = 'scoped memory for tpu_custom_call.1']
    #allocation4 [shape = 's32[2]{0}', space=sflag, size = 0x8, scoped, tag = 'scoped memory for tpu_custom_call.1']
    #allocation5 [shape = 'u8[32768]{0}', space=vmem, size = 0x8000, scoped, tag = 'input window, operand 1, single buffered']
    #allocation6 [shape = 's32[1]{0}', space=sflag, size = 0x4, scoped, tag = 'scoped memory for tpu_custom_call.1']
    #allocation7 [shape = 'u8[32768]{0}', space=vmem, size = 0x8000, scoped, tag = 'input window, operand 2, single buffered']
    #allocation8 [shape = 'u8[32768]{0}', space=vmem, size = 0x8000, scoped, tag = 'input window, operand 3, single buffered']
    #allocation9 [shape = 's32[1]{0}', space=sflag, size = 0x4, scoped, tag = 'scoped memory for tpu_custom_call.1']
    #allocation10 [shape = 'u8[32768]{0}', space=vmem, size = 0x8000, scoped, tag = 'input window, operand 4, single buffered']
    #allocation11 [shape = 'u8[65536]{0}', space=vmem, size = 0x10000, scoped, tag = 'output window, operand 0']
    %11 = vsyncpa [#allocation3], 0
    %s12 = scalar_lea.sflag [#allocation3], 1
    %13 = vsyncpa %s12, 0
    %14 = vsyncpa [#allocation6], 0
    %15 = vsyncpa [#allocation9], 0
    %16 = vsyncpa [#allocation4], 0
    %s17 = scalar_lea.sflag [#allocation4], 1
    %18 = vsyncpa %s17, 0
    loop: start=0, step=1, limit=4
    $region2: #{tpu_custom_call.1} parent=1 // loop_pre_header
      _
    $region3: #{tpu_custom_call.1} parent=1 // loop_header
      %s20 = sphi 0, %s24
      %p21 = scmp.ge.s32.totalorder %s20, 4
      %s30 = sphi 0, %s32
      %s33 = sphi 0, %s30
      %s34 = sphi 0, %s33
      %s50 = sphi 0, %s34
      %s54 = sphi 0, %s54
      %s56 = sphi 0, %s54
      %s57 = sphi 0, %s56
      %s71 = sphi 0, %s57
      %s75 = sphi 0, %s75
      %s77 = sphi 0, %s75
      %s78 = sphi 0, %s77
      %s92 = sphi 0, %s78
      %s96 = sphi 0, %s96
      %s98 = sphi 0, %s96
      %s99 = sphi 0, %s98
      %s113 = sphi 0, %s99
      %s117 = sphi 0, %s117
      %s119 = sphi 0, %s117
      %s120 = sphi 0, %s119
      %s134 = sphi 0, %s120
      %s138 = sphi 0, %s138
      %s140 = sphi 0, %s138
      %s141 = sphi 0, %s140
      %s155 = sphi 0, %s141
      %s161 = sphi 0, %s163
      %s164 = sphi 0, %s161
      %s165 = sphi 0, %s164
      %s181 = sphi 0, %s165
    $region4: #{tpu_custom_call.1} parent=1 // loop_header_branch
      %23 = sbr.rel (%p21) target = $region8
    $region5: #{tpu_custom_call.1} parent=1 // loop_body
      %s25 = ssub.s32 %s20, 1
      %s26 = ssub.s32 %s20, 2
      %s27 = sadd.s32 %s20, 1
      %s28 = ssub.s32 %s20, %s27
      %p29 = scmp.eq.s32.totalorder %s28, 0
      %s31 = sadd.s32 %s30, 1
      %s32 = scalar_select %p29, %s30, %s31
      %p35 = pneg %p29
      %p36 = scmp.eq.s32.totalorder %s20, 1
      %p37 = por %p35, %p36
      %p38 = scmp.ne.s32.totalorder %s30, %s33
      %p39 = scmp.eq.s32.totalorder %s20, 0
      %p40 = por %p38, %p39
      %p41 = scmp.ne.s32.totalorder %s30, %s33
      %p42 = scmp.eq.s32.totalorder %s25, 1
      %p43 = por %p41, %p42
      %p44 = scmp.ne.s32.totalorder %s33, %s34
      %p45 = scmp.eq.s32.totalorder %s25, 0
      %p46 = por %p44, %p45
      %p47 = scmp.ne.s32.totalorder %s33, %s34
      %p48 = scmp.eq.s32.totalorder %s26, 1
      %p49 = por %p47, %p48
      %p51 = scmp.ne.s32.totalorder %s34, %s50
      %p52 = scmp.eq.s32.totalorder %s26, 0
      %p53 = por %p51, %p52
      %s55 = sadd.s32 %s54, 1
      %p58 = scmp.eq.s32.totalorder %s20, 1
      %p59 = scmp.ne.s32.totalorder %s54, %s56
      %p60 = scmp.eq.s32.totalorder %s20, 0
      %p61 = por %p59, %p60
      %p62 = scmp.ne.s32.totalorder %s54, %s56
      %p63 = scmp.eq.s32.totalorder %s25, 1
      %p64 = por %p62, %p63
      %p65 = scmp.ne.s32.totalorder %s56, %s57
      %p66 = scmp.eq.s32.totalorder %s25, 0
      %p67 = por %p65, %p66
      %p68 = scmp.ne.s32.totalorder %s56, %s57
      %p69 = scmp.eq.s32.totalorder %s26, 1
      %p70 = por %p68, %p69
      %p72 = scmp.ne.s32.totalorder %s57, %s71
      %p73 = scmp.eq.s32.totalorder %s26, 0
      %p74 = por %p72, %p73
      %s76 = sadd.s32 %s75, 1
      %p79 = scmp.eq.s32.totalorder %s20, 1
      %p80 = scmp.ne.s32.totalorder %s75, %s77
      %p81 = scmp.eq.s32.totalorder %s20, 0
      %p82 = por %p80, %p81
      %p83 = scmp.ne.s32.totalorder %s75, %s77
      %p84 = scmp.eq.s32.totalorder %s25, 1
      %p85 = por %p83, %p84
      %p86 = scmp.ne.s32.totalorder %s77, %s78
      %p87 = scmp.eq.s32.totalorder %s25, 0
      %p88 = por %p86, %p87
      %p89 = scmp.ne.s32.totalorder %s77, %s78
      %p90 = scmp.eq.s32.totalorder %s26, 1
      %p91 = por %p89, %p90
      %p93 = scmp.ne.s32.totalorder %s78, %s92
      %p94 = scmp.eq.s32.totalorder %s26, 0
      %p95 = por %p93, %p94
      %s97 = sadd.s32 %s96, 1
      %p100 = scmp.eq.s32.totalorder %s20, 1
      %p101 = scmp.ne.s32.totalorder %s96, %s98
      %p102 = scmp.eq.s32.totalorder %s20, 0
      %p103 = por %p101, %p102
      %p104 = scmp.ne.s32.totalorder %s96, %s98
      %p105 = scmp.eq.s32.totalorder %s25, 1
      %p106 = por %p104, %p105
      %p107 = scmp.ne.s32.totalorder %s98, %s99
      %p108 = scmp.eq.s32.totalorder %s25, 0
      %p109 = por %p107, %p108
      %p110 = scmp.ne.s32.totalorder %s98, %s99
      %p111 = scmp.eq.s32.totalorder %s26, 1
      %p112 = por %p110, %p111
      %p114 = scmp.ne.s32.totalorder %s99, %s113
      %p115 = scmp.eq.s32.totalorder %s26, 0
      %p116 = por %p114, %p115
      %s118 = sadd.s32 %s117, 1
      %p121 = scmp.eq.s32.totalorder %s20, 1
      %p122 = scmp.ne.s32.totalorder %s117, %s119
      %p123 = scmp.eq.s32.totalorder %s20, 0
      %p124 = por %p122, %p123
      %p125 = scmp.ne.s32.totalorder %s117, %s119
      %p126 = scmp.eq.s32.totalorder %s25, 1
      %p127 = por %p125, %p126
      %p128 = scmp.ne.s32.totalorder %s119, %s120
      %p129 = scmp.eq.s32.totalorder %s25, 0
      %p130 = por %p128, %p129
      %p131 = scmp.ne.s32.totalorder %s119, %s120
      %p132 = scmp.eq.s32.totalorder %s26, 1
      %p133 = por %p131, %p132
      %p135 = scmp.ne.s32.totalorder %s120, %s134
      %p136 = scmp.eq.s32.totalorder %s26, 0
      %p137 = por %p135, %p136
      %s139 = sadd.s32 %s138, 1
      %p142 = scmp.eq.s32.totalorder %s20, 1
      %p143 = scmp.ne.s32.totalorder %s138, %s140
      %p144 = scmp.eq.s32.totalorder %s20, 0
      %p145 = por %p143, %p144
      %p146 = scmp.ne.s32.totalorder %s138, %s140
      %p147 = scmp.eq.s32.totalorder %s25, 1
      %p148 = por %p146, %p147
      %p149 = scmp.ne.s32.totalorder %s140, %s141
      %p150 = scmp.eq.s32.totalorder %s25, 0
      %p151 = por %p149, %p150
      %p152 = scmp.ne.s32.totalorder %s140, %s141
      %p153 = scmp.eq.s32.totalorder %s26, 1
      %p154 = por %p152, %p153
      %p156 = scmp.ne.s32.totalorder %s141, %s155
      %p157 = scmp.eq.s32.totalorder %s26, 0
      %p158 = por %p156, %p157
      %s159 = ssub.s32 %s20, %s27
      %p160 = scmp.eq.s32.totalorder %s159, 0
      %s162 = sadd.s32 %s161, 1
      %s163 = scalar_select %p160, %s161, %s162
      %p166 = pneg %p160
      %p167 = scmp.eq.s32.totalorder %s20, 1
      %p168 = por %p166, %p167
      %p169 = scmp.ne.s32.totalorder %s161, %s164
      %p170 = scmp.eq.s32.totalorder %s20, 0
      %p171 = por %p169, %p170
      %p172 = scmp.ne.s32.totalorder %s161, %s164
      %p173 = scmp.eq.s32.totalorder %s25, 1
      %p174 = por %p172, %p173
      %p175 = scmp.ne.s32.totalorder %s164, %s165
      %p176 = scmp.eq.s32.totalorder %s25, 0
      %p177 = por %p175, %p176
      %p178 = scmp.ne.s32.totalorder %s164, %s165
      %p179 = scmp.eq.s32.totalorder %s26, 1
      %p180 = por %p178, %p179
      %p182 = scmp.ne.s32.totalorder %s165, %s181
      %p183 = scmp.eq.s32.totalorder %s26, 0
      %p184 = por %p182, %p183
      %p185 = scmp.le.s32.totalorder 1, %s20
      %p186 = scmp.lt.s32.totalorder %s20, 3
      %p187 = pnand %p185, %p186
      %p188 = pneg %p187
      // Predicated region
      $region9: #{tpu_custom_call.1} parent=5 // pred_check
        _
      $region10: #{tpu_custom_call.1} parent=5 // pred_check_branch
        %190 = sbr.rel (%p187) target = $region12
      $region11: #{tpu_custom_call.1} parent=5 // pred_region
        %s191 = ssub.s32 %s20, 1
        // Predicated region
        $region13: #{tpu_custom_call.1} parent=11 // pred_check
          %p192 = pneg %p67
        $region14: #{tpu_custom_call.1} parent=11 // pred_check_branch
          %194 = sbr.rel (%p192) target = $region16
        $region15: #{tpu_custom_call.1} parent=11 // pred_region
          %s196 = ssub.s32 1024, 1024
          %197 = vsyncadd [#allocation6], %s196
          %s198 = sshll.u32 [#allocation5], 4
          %s199 = int_to_ptr.vmem [resolvable:$true] %s198
          %204 = dma.hbm_to_vmem [thread:$0]  %s1, 1024, %s199, [#allocation6], 64, 64, 4
        $region16: #{tpu_custom_call.1} parent=11 // pred_fallthru
          _
        // Predicated region
        $region17: #{tpu_custom_call.1} parent=11 // pred_check
          %p205 = pneg %p88
        $region18: #{tpu_custom_call.1} parent=11 // pred_check_branch
          %207 = sbr.rel (%p205) target = $region20
        $region19: #{tpu_custom_call.1} parent=11 // pred_region
          %s209 = ssub.s32 1024, 1024
          %210 = vsyncadd [#allocation6], %s209
          %s211 = sshll.u32 [#allocation7], 4
          %s212 = int_to_ptr.vmem [resolvable:$true] %s211
          %217 = dma.hbm_to_vmem [thread:$0]  %s2, 1024, %s212, [#allocation6], 64, 64, 4
        $region20: #{tpu_custom_call.1} parent=11 // pred_fallthru
          _
        // Predicated region
        $region21: #{tpu_custom_call.1} parent=11 // pred_check
          %p218 = pneg %p109
        $region22: #{tpu_custom_call.1} parent=11 // pred_check_branch
          %220 = sbr.rel (%p218) target = $region24
        $region23: #{tpu_custom_call.1} parent=11 // pred_region
          %s222 = ssub.s32 1024, 1024
          %223 = vsyncadd [#allocation9], %s222
          %s224 = sshll.u32 [#allocation8], 4
          %s225 = int_to_ptr.vmem [resolvable:$true] %s224
          %230 = dma.hbm_to_vmem [thread:$0]  %s3, 1024, %s225, [#allocation9], 64, 64, 4
        $region24: #{tpu_custom_call.1} parent=11 // pred_fallthru
          _
        // Predicated region
        $region25: #{tpu_custom_call.1} parent=11 // pred_check
          %p231 = pneg %p130
        $region26: #{tpu_custom_call.1} parent=11 // pred_check_branch
          %233 = sbr.rel (%p231) target = $region28
        $region27: #{tpu_custom_call.1} parent=11 // pred_region
          %s235 = ssub.s32 1024, 1024
          %236 = vsyncadd [#allocation9], %s235
          %s237 = sshll.u32 [#allocation10], 4
          %s238 = int_to_ptr.vmem [resolvable:$true] %s237
          %243 = dma.hbm_to_vmem [thread:$0]  %s4, 1024, %s238, [#allocation9], 64, 64, 4
        $region28: #{tpu_custom_call.1} parent=11 // pred_fallthru
          _
        // Predicated region
        $region29: #{tpu_custom_call.1} parent=11 // pred_check
          %p244 = pneg %p151
        $region30: #{tpu_custom_call.1} parent=11 // pred_check_branch
          %246 = sbr.rel (%p244) target = $region32
        $region31: #{tpu_custom_call.1} parent=11 // pred_region
          _
        $region32: #{tpu_custom_call.1} parent=11 // pred_fallthru
          _
      $region12: #{tpu_custom_call.1} parent=5 // pred_fallthru
        _
      %p247 = scmp.lt.s32.totalorder %s20, 2
      // Predicated region
      $region33: #{tpu_custom_call.1} parent=5 // pred_check
        %p248 = pneg %p247
      $region34: #{tpu_custom_call.1} parent=5 // pred_check_branch
        %250 = sbr.rel (%p248) target = $region36
      $region35: #{tpu_custom_call.1} parent=5 // pred_region
        // Predicated region
        $region37: #{tpu_custom_call.1} parent=35 // pred_check
          %p251 = pneg %p40
        $region38: #{tpu_custom_call.1} parent=35 // pred_check_branch
          %253 = sbr.rel (%p251) target = $region40
        $region39: #{tpu_custom_call.1} parent=35 // pred_region
          %s254 = sand.u32 %s30, 1
          %s255 = scalar_lea.sflag [#allocation3], %s254
          %s256 = sand.u32 %s30, 1
          %s257 = smul.addr %s256, 32
          %s258 = scalar_lea.vmem [#allocation2], %s257
          %s259 = smul.u32 4, %s20
          %s261 = ssub.s32 512, 512
          %262 = vsyncadd %s255, %s261
          %s263 = smul.addr %s259, 2
          %s264 = smul.addr %s263, 64
          %s265 = scalar_lea.hbm %s0, %s264
          %s266 = sshll.u32 %s258, 4
          %s267 = int_to_ptr.vmem [resolvable:$true] %s266
          %272 = dma.hbm_to_vmem [thread:$0]  %s265, 512, %s267, %s255, 64, 64, 4
        $region40: #{tpu_custom_call.1} parent=35 // pred_fallthru
          _
      $region36: #{tpu_custom_call.1} parent=5 // pred_fallthru
        _
      %p273 = scmp.le.s32.totalorder 1, %s20
      %p274 = scmp.lt.s32.totalorder %s20, 3
      %p275 = pnand %p273, %p274
      %p276 = pneg %p275
      // Predicated region
      $region41: #{tpu_custom_call.1} parent=5 // pred_check
        _
      $region42: #{tpu_custom_call.1} parent=5 // pred_check_branch
        %278 = sbr.rel (%p275) target = $region44
      $region43: #{tpu_custom_call.1} parent=5 // pred_region
        %s279 = ssub.s32 %s20, 1
        %s280 = sand.u32 %s33, 1
        %s281 = scalar_lea.sflag [#allocation3], %s280
        %s282 = sand.u32 %s33, 1
        %s283 = smul.addr %s282, 32
        %s284 = scalar_lea.vmem [#allocation2], %s283
        // Predicated region
        $region45: #{tpu_custom_call.1} parent=43 // pred_check
          %p285 = pneg %p46
        $region46: #{tpu_custom_call.1} parent=43 // pred_check_branch
          %287 = sbr.rel (%p285) target = $region48
        $region47: #{tpu_custom_call.1} parent=43 // pred_region
          %288 = dma.done %s281, 512
        $region48: #{tpu_custom_call.1} parent=43 // pred_fallthru
          _
        // Predicated region
        $region49: #{tpu_custom_call.1} parent=43 // pred_check
          %p289 = pneg %p67
        $region50: #{tpu_custom_call.1} parent=43 // pred_check_branch
          %291 = sbr.rel (%p289) target = $region52
        $region51: #{tpu_custom_call.1} parent=43 // pred_region
          %292 = dma.done [#allocation6], 1024
        $region52: #{tpu_custom_call.1} parent=43 // pred_fallthru
          _
        // Predicated region
        $region53: #{tpu_custom_call.1} parent=43 // pred_check
          %p293 = pneg %p88
        $region54: #{tpu_custom_call.1} parent=43 // pred_check_branch
          %295 = sbr.rel (%p293) target = $region56
        $region55: #{tpu_custom_call.1} parent=43 // pred_region
          %296 = dma.done [#allocation6], 1024
        $region56: #{tpu_custom_call.1} parent=43 // pred_fallthru
          _
        // Predicated region
        $region57: #{tpu_custom_call.1} parent=43 // pred_check
          %p297 = pneg %p109
        $region58: #{tpu_custom_call.1} parent=43 // pred_check_branch
          %299 = sbr.rel (%p297) target = $region60
        $region59: #{tpu_custom_call.1} parent=43 // pred_region
          %300 = dma.done [#allocation9], 1024
        $region60: #{tpu_custom_call.1} parent=43 // pred_fallthru
          _
        // Predicated region
        $region61: #{tpu_custom_call.1} parent=43 // pred_check
          %p301 = pneg %p130
        $region62: #{tpu_custom_call.1} parent=43 // pred_check_branch
          %303 = sbr.rel (%p301) target = $region64
        $region63: #{tpu_custom_call.1} parent=43 // pred_region
          %304 = dma.done [#allocation9], 1024
        $region64: #{tpu_custom_call.1} parent=43 // pred_fallthru
          _
        %s305 = sand.u32 %s33, 1
        %s306 = scalar_lea.sflag [#allocation3], %s305
        %s307 = sand.u32 %s33, 1
        %s308 = smul.addr %s307, 32
        %s309 = scalar_lea.vmem [#allocation2], %s308
        %p310 = pneg %p46
        %p311 = pneg %p43
        %p312 = pneg %p67
        %p313 = pneg %p64
        %p314 = pneg %p88
        %p315 = pneg %p85
        %p316 = pneg %p109
        %p317 = pneg %p106
        %p318 = pneg %p130
        %p319 = pneg %p127
        %p320 = pneg %p151
        %p321 = pneg %p148
        %p322 = pneg %p177
        %p323 = pneg %p174
        %s324 = sand.u32 %s164, 1
        %s325 = scalar_lea.sflag [#allocation4], %s324
        %s326 = sand.u32 %s164, 1
        %s327 = smul.addr %s326, 64
        %s328 = scalar_lea.vmem [#allocation11], %s327
        %s329 = smul.u32 4, %s25
        %s330 = smul.u32 4, %s25
        %v332 = vld [vmem:[%s284] sm:$0xf]
        %v333 = vld [vmem:[%s284 + $0x4] sm:$0xf]
        %v334 = vld [vmem:[%s284 + $0x8] sm:$0xf]
        %v335 = vld [vmem:[%s284 + $0xc] sm:$0xf]
        %v336 = vld [vmem:[%s284 + $0x10] sm:$0xf]
        %v337 = vld [vmem:[%s284 + $0x14] sm:$0xf]
        %v338 = vld [vmem:[%s284 + $0x18] sm:$0xf]
        %v339 = vld [vmem:[%s284 + $0x1c] sm:$0xf]
        %v340 = vld [vmem:[#allocation5] sm:$0xf]
        %v341 = vld [vmem:[#allocation5 + $0x4] sm:$0xf]
        %v342 = vld [vmem:[#allocation5 + $0x8] sm:$0xf]
        %v343 = vld [vmem:[#allocation5 + $0xc] sm:$0xf]
        %v344 = vld [vmem:[#allocation7] sm:$0xf]
        %v345 = vld [vmem:[#allocation7 + $0x4] sm:$0xf]
        %v346 = vld [vmem:[#allocation7 + $0x8] sm:$0xf]
        %v347 = vld [vmem:[#allocation7 + $0xc] sm:$0xf]
        %v348 = vld [vmem:[#allocation8] sm:$0xf]
        %v349 = vld [vmem:[#allocation8 + $0x4] sm:$0xf]
        %v350 = vld [vmem:[#allocation8 + $0x8] sm:$0xf]
        %v351 = vld [vmem:[#allocation8 + $0xc] sm:$0xf]
        %v352 = vld [vmem:[#allocation10] sm:$0xf]
        %v353 = vld [vmem:[#allocation10 + $0x4] sm:$0xf]
        %v354 = vld [vmem:[#allocation10 + $0x8] sm:$0xf]
        %v355 = vld [vmem:[#allocation10 + $0xc] sm:$0xf]
        %v364 = vunpack.c.l.b16 %v332
        %v365 = vunpack.c.l.b16 %v333
        %v366 = vunpack.c.l.b16 %v334
        %v367 = vunpack.c.l.b16 %v335
        %v368 = vunpack.c.l.b16 %v336
        %v369 = vunpack.c.l.b16 %v337
        %v370 = vunpack.c.l.b16 %v338
        %v371 = vunpack.c.l.b16 %v339
        %v372 = vpack.c.b16 %v365, %v364
        %v373 = vpack.c.b16 %v367, %v366
        %v374 = vpack.c.b16 %v369, %v368
        %v375 = vpack.c.b16 %v371, %v370
        %v380 = vunpack.c.l.b16 %v340
        %v381 = vunpack.c.l.b16 %v341
        %v382 = vunpack.c.l.b16 %v342
        %v383 = vunpack.c.l.b16 %v343
        %v384 = vpack.c.b16 %v381, %v380
        %v385 = vpack.c.b16 %v383, %v382
        %vm388 = vcmask 261120
        %v390 = vsel %vm388, %v372, 0
        %v393 = vsel %vm388, %v373, 0
        %v396 = vsel %vm388, %v374, 0
        %v399 = vsel %vm388, %v375, 0
        %401 = vmatprep.subr.bf16.mxu0 0
        %402 = vmatpush1.bf16.msra.mxu0 0
        %403 = vmatprep.subr.bf16.mxu0 0
        %404 = vmatpush1.bf16.msra.mxu0 0
        %405 = vmatprep.subr.bf16.mxu0 0
        %406 = vmatpush1.bf16.msra.mxu0 0
        %407 = vmatprep.subr.bf16.mxu0 0
        %408 = vmatpush1.bf16.msra.mxu0 0
        %409 = vmatprep.subr.bf16.mxu0 0
        %410 = vmatpush1.bf16.msra.mxu0 0
        %411 = vmatprep.subr.bf16.mxu0 0
        %412 = vmatpush1.bf16.msra.mxu0 0
        %413 = vmatprep.subr.bf16.mxu0 0
        %414 = vmatpush1.bf16.msra.mxu0 %v385
        %415 = vmatprep.subr.bf16.mxu0 0
        %416 = vmatpush1.bf16.msra.mxu0 %v384
        %417 = vmatprep.subr.bf16.mxu0 0
        %418 = vmatpush2.bf16.msra.mxu0 0
        %419 = vmatprep.subr.bf16.mxu0 0
        %420 = vmatpush2.bf16.msra.mxu0 0
        %421 = vmatprep.subr.bf16.mxu0 0
        %422 = vmatpush2.bf16.msra.mxu0 0
        %423 = vmatprep.subr.bf16.mxu0 0
        %424 = vmatpush2.bf16.msra.mxu0 0
        %425 = vmatprep.subr.bf16.mxu0 0
        %426 = vmatpush2.bf16.msra.mxu0 0
        %427 = vmatprep.subr.bf16.mxu0 0
        %428 = vmatpush2.bf16.msra.mxu0 0
        %429 = vmatprep.subr.bf16.mxu0 0
        %430 = vmatpush2.bf16.msra.mxu0 0
        %431 = vmatprep.subr.bf16.mxu0 0
        %432 = vmatpush2.bf16.msra.mxu0 0
        %433 = vmatprep.mubr.bf16.mxu0 0
        %434 = vmatmul.mubr.bf16.gmra.mxu0 %v390
        %v435 = vpop.f32.mrf.mxu0
        %v436 = vadd.f32 0.0, %v435
        %v437 = vpop.f32.mrf.mxu0
        %v438 = vpop.f32.mrf.mxu0
        %v439 = vadd.f32 0.0, %v438
        %v440 = vpop.f32.mrf.mxu0
        %441 = vmatprep.mubr.bf16.mxu0 0
        %442 = vmatmul.mubr.bf16.gmra.mxu0 %v393
        %v443 = vpop.f32.mrf.mxu0
        %v444 = vadd.f32 0.0, %v443
        %v445 = vpop.f32.mrf.mxu0
        %v446 = vpop.f32.mrf.mxu0
        %v447 = vadd.f32 0.0, %v446
        %v448 = vpop.f32.mrf.mxu0
        %449 = vmatprep.mubr.bf16.mxu0 0
        %450 = vmatmul.mubr.bf16.gmra.mxu0 %v396
        %v451 = vpop.f32.mrf.mxu0
        %v452 = vadd.f32 0.0, %v451
        %v453 = vpop.f32.mrf.mxu0
        %v454 = vpop.f32.mrf.mxu0
        %v455 = vadd.f32 0.0, %v454
        %v456 = vpop.f32.mrf.mxu0
        %457 = vmatprep.mubr.bf16.mxu0 0
        %458 = vmatmul.mubr.bf16.gmra.mxu0 %v399
        %v459 = vpop.f32.mrf.mxu0
        %v460 = vadd.f32 0.0, %v459
        %v461 = vpop.f32.mrf.mxu0
        %v462 = vpop.f32.mrf.mxu0
        %v463 = vadd.f32 0.0, %v462
        %v464 = vpop.f32.mrf.mxu0
        %465 = vdwg.mxu0
        %v470 = vunpack.c.l.b16 %v344
        %v471 = vunpack.c.l.b16 %v345
        %v472 = vunpack.c.l.b16 %v346
        %v473 = vunpack.c.l.b16 %v347
        %v474 = vpack.c.b16 %v471, %v470
        %v475 = vpack.c.b16 %v473, %v472
        %478 = vmatprep.subr.bf16.mxu0 0
        %479 = vmatpush1.bf16.msra.mxu0 0
        %480 = vmatprep.subr.bf16.mxu0 0
        %481 = vmatpush1.bf16.msra.mxu0 0
        %482 = vmatprep.subr.bf16.mxu0 0
        %483 = vmatpush1.bf16.msra.mxu0 0
        %484 = vmatprep.subr.bf16.mxu0 0
        %485 = vmatpush1.bf16.msra.mxu0 0
        %486 = vmatprep.subr.bf16.mxu0 0
        %487 = vmatpush1.bf16.msra.mxu0 0
        %488 = vmatprep.subr.bf16.mxu0 0
        %489 = vmatpush1.bf16.msra.mxu0 0
        %490 = vmatprep.subr.bf16.mxu0 0
        %491 = vmatpush1.bf16.msra.mxu0 %v475
        %492 = vmatprep.subr.bf16.mxu0 0
        %493 = vmatpush1.bf16.msra.mxu0 %v474
        %494 = vmatprep.subr.bf16.mxu0 0
        %495 = vmatpush2.bf16.msra.mxu0 0
        %496 = vmatprep.subr.bf16.mxu0 0
        %497 = vmatpush2.bf16.msra.mxu0 0
        %498 = vmatprep.subr.bf16.mxu0 0
        %499 = vmatpush2.bf16.msra.mxu0 0
        %500 = vmatprep.subr.bf16.mxu0 0
        %501 = vmatpush2.bf16.msra.mxu0 0
        %502 = vmatprep.subr.bf16.mxu0 0
        %503 = vmatpush2.bf16.msra.mxu0 0
        %504 = vmatprep.subr.bf16.mxu0 0
        %505 = vmatpush2.bf16.msra.mxu0 0
        %506 = vmatprep.subr.bf16.mxu0 0
        %507 = vmatpush2.bf16.msra.mxu0 0
        %508 = vmatprep.subr.bf16.mxu0 0
        %509 = vmatpush2.bf16.msra.mxu0 0
        %510 = vmatprep.mubr.bf16.mxu0 0
        %511 = vmatmul.mubr.bf16.gmra.mxu0 %v390
        %v512 = vpop.f32.mrf.mxu0
        %v513 = vadd.f32 0.0, %v512
        %v514 = vpop.f32.mrf.mxu0
        %v515 = vpop.f32.mrf.mxu0
        %v516 = vadd.f32 0.0, %v515
        %v517 = vpop.f32.mrf.mxu0
        %518 = vmatprep.mubr.bf16.mxu0 0
        %519 = vmatmul.mubr.bf16.gmra.mxu0 %v393
        %v520 = vpop.f32.mrf.mxu0
        %v521 = vadd.f32 0.0, %v520
        %v522 = vpop.f32.mrf.mxu0
        %v523 = vpop.f32.mrf.mxu0
        %v524 = vadd.f32 0.0, %v523
        %v525 = vpop.f32.mrf.mxu0
        %526 = vmatprep.mubr.bf16.mxu0 0
        %527 = vmatmul.mubr.bf16.gmra.mxu0 %v396
        %v528 = vpop.f32.mrf.mxu0
        %v529 = vadd.f32 0.0, %v528
        %v530 = vpop.f32.mrf.mxu0
        %v531 = vpop.f32.mrf.mxu0
        %v532 = vadd.f32 0.0, %v531
        %v533 = vpop.f32.mrf.mxu0
        %534 = vmatprep.mubr.bf16.mxu0 0
        %535 = vmatmul.mubr.bf16.gmra.mxu0 %v399
        %v536 = vpop.f32.mrf.mxu0
        %v537 = vadd.f32 0.0, %v536
        %v538 = vpop.f32.mrf.mxu0
        %v539 = vpop.f32.mrf.mxu0
        %v540 = vadd.f32 0.0, %v539
        %v541 = vpop.f32.mrf.mxu0
        %542 = vdwg.mxu0
        %v547 = vunpack.c.l.b16 %v348
        %v548 = vunpack.c.l.b16 %v349
        %v549 = vunpack.c.l.b16 %v350
        %v550 = vunpack.c.l.b16 %v351
        %v551 = vpack.c.b16 %v548, %v547
        %v552 = vpack.c.b16 %v550, %v549
        %555 = vmatprep.subr.bf16.mxu0 0
        %556 = vmatpush1.bf16.msra.mxu0 0
        %557 = vmatprep.subr.bf16.mxu0 0
        %558 = vmatpush1.bf16.msra.mxu0 0
        %559 = vmatprep.subr.bf16.mxu0 0
        %560 = vmatpush1.bf16.msra.mxu0 0
        %561 = vmatprep.subr.bf16.mxu0 0
        %562 = vmatpush1.bf16.msra.mxu0 0
        %563 = vmatprep.subr.bf16.mxu0 0
        %564 = vmatpush1.bf16.msra.mxu0 0
        %565 = vmatprep.subr.bf16.mxu0 0
        %566 = vmatpush1.bf16.msra.mxu0 0
        %567 = vmatprep.subr.bf16.mxu0 0
        %568 = vmatpush1.bf16.msra.mxu0 %v552
        %569 = vmatprep.subr.bf16.mxu0 0
        %570 = vmatpush1.bf16.msra.mxu0 %v551
        %571 = vmatprep.subr.bf16.mxu0 0
        %572 = vmatpush2.bf16.msra.mxu0 0
        %573 = vmatprep.subr.bf16.mxu0 0
        %574 = vmatpush2.bf16.msra.mxu0 0
        %575 = vmatprep.subr.bf16.mxu0 0
        %576 = vmatpush2.bf16.msra.mxu0 0
        %577 = vmatprep.subr.bf16.mxu0 0
        %578 = vmatpush2.bf16.msra.mxu0 0
        %579 = vmatprep.subr.bf16.mxu0 0
        %580 = vmatpush2.bf16.msra.mxu0 0
        %581 = vmatprep.subr.bf16.mxu0 0
        %582 = vmatpush2.bf16.msra.mxu0 0
        %583 = vmatprep.subr.bf16.mxu0 0
        %584 = vmatpush2.bf16.msra.mxu0 0
        %585 = vmatprep.subr.bf16.mxu0 0
        %586 = vmatpush2.bf16.msra.mxu0 0
        %587 = vmatprep.mubr.bf16.mxu0 0
        %588 = vmatmul.mubr.bf16.gmra.mxu0 %v390
        %v589 = vpop.f32.mrf.mxu0
        %v590 = vadd.f32 0.0, %v589
        %v591 = vpop.f32.mrf.mxu0
        %v592 = vpop.f32.mrf.mxu0
        %v593 = vadd.f32 0.0, %v592
        %v594 = vpop.f32.mrf.mxu0
        %595 = vmatprep.mubr.bf16.mxu0 0
        %596 = vmatmul.mubr.bf16.gmra.mxu0 %v393
        %v597 = vpop.f32.mrf.mxu0
        %v598 = vadd.f32 0.0, %v597
        %v599 = vpop.f32.mrf.mxu0
        %v600 = vpop.f32.mrf.mxu0
        %v601 = vadd.f32 0.0, %v600
        %v602 = vpop.f32.mrf.mxu0
        %603 = vmatprep.mubr.bf16.mxu0 0
        %604 = vmatmul.mubr.bf16.gmra.mxu0 %v396
        %v605 = vpop.f32.mrf.mxu0
        %v606 = vadd.f32 0.0, %v605
        %v607 = vpop.f32.mrf.mxu0
        %v608 = vpop.f32.mrf.mxu0
        %v609 = vadd.f32 0.0, %v608
        %v610 = vpop.f32.mrf.mxu0
        %611 = vmatprep.mubr.bf16.mxu0 0
        %612 = vmatmul.mubr.bf16.gmra.mxu0 %v399
        %v613 = vpop.f32.mrf.mxu0
        %v614 = vadd.f32 0.0, %v613
        %v615 = vpop.f32.mrf.mxu0
        %v616 = vpop.f32.mrf.mxu0
        %v617 = vadd.f32 0.0, %v616
        %v618 = vpop.f32.mrf.mxu0
        %619 = vdwg.mxu0
        %v620 = vpack.c.bf16 %v439, %v436
        %v621 = vpack.c.bf16 %v447, %v444
        %v622 = vpack.c.bf16 %v455, %v452
        %v623 = vpack.c.bf16 %v463, %v460
        %v624 = vpack.c.bf16 %v516, %v513
        %v625 = vpack.c.bf16 %v524, %v521
        %v626 = vpack.c.bf16 %v532, %v529
        %v627 = vpack.c.bf16 %v540, %v537
        %v628 = vpack.c.bf16 %v593, %v590
        %v629 = vpack.c.bf16 %v601, %v598
        %v630 = vpack.c.bf16 %v609, %v606
        %v631 = vpack.c.bf16 %v617, %v614
        %v633 = vsel %vm388, %v620, 0
        %v636 = vsel %vm388, %v624, 0
        %638 = vmatprep.subr.bf16.mxu0 0
        %639 = vmatpush1.bf16.xpose.msra.mxu0 0
        %640 = vmatprep.subr.bf16.mxu0 0
        %641 = vmatpush1.bf16.xpose.msra.mxu0 0
        %642 = vmatprep.subr.bf16.mxu0 0
        %643 = vmatpush1.bf16.xpose.msra.mxu0 0
        %644 = vmatprep.subr.bf16.mxu0 0
        %645 = vmatpush1.bf16.xpose.msra.mxu0 0
        %646 = vmatprep.subr.bf16.mxu0 0
        %647 = vmatpush1.bf16.xpose.msra.mxu0 0
        %648 = vmatprep.subr.bf16.mxu0 0
        %649 = vmatpush1.bf16.xpose.msra.mxu0 0
        %650 = vmatprep.subr.bf16.mxu0 0
        %651 = vmatpush1.bf16.xpose.msra.mxu0 0
        %652 = vmatprep.subr.bf16.mxu0 0
        %653 = vmatpush1.bf16.xpose.msra.mxu0 %v636
        %654 = vmatprep.subr.bf16.mxu0 0
        %655 = vmatpush2.bf16.xpose.msra.mxu0 0
        %656 = vmatprep.subr.bf16.mxu0 0
        %657 = vmatpush2.bf16.xpose.msra.mxu0 0
        %658 = vmatprep.subr.bf16.mxu0 0
        %659 = vmatpush2.bf16.xpose.msra.mxu0 0
        %660 = vmatprep.subr.bf16.mxu0 0
        %661 = vmatpush2.bf16.xpose.msra.mxu0 0
        %662 = vmatprep.subr.bf16.mxu0 0
        %663 = vmatpush2.bf16.xpose.msra.mxu0 0
        %664 = vmatprep.subr.bf16.mxu0 0
        %665 = vmatpush2.bf16.xpose.msra.mxu0 0
        %666 = vmatprep.subr.bf16.mxu0 0
        %667 = vmatpush2.bf16.xpose.msra.mxu0 0
        %668 = vmatprep.subr.bf16.mxu0 0
        %669 = vmatpush2.bf16.xpose.msra.mxu0 0
        %670 = vmatprep.mubr.bf16.mxu0 0
        %671 = vmatmul.mubr.bf16.gmra.mxu0 %v633
        %v672 = vpop.f32.mrf.mxu0
        %v673 = vadd.f32 0.0, %v672
        %v674 = vpop.f32.mrf.mxu0
        %v675 = vpop.f32.mrf.mxu0
        %v676 = vadd.f32 0.0, %v675
        %v677 = vpop.f32.mrf.mxu0
        %678 = vdwg.mxu0
        %v680 = vsel %vm388, %v621, 0
        %v683 = vsel %vm388, %v625, 0
        %685 = vmatprep.subr.bf16.mxu0 0
        %686 = vmatpush1.bf16.xpose.msra.mxu0 0
        %687 = vmatprep.subr.bf16.mxu0 0
        %688 = vmatpush1.bf16.xpose.msra.mxu0 0
        %689 = vmatprep.subr.bf16.mxu0 0
        %690 = vmatpush1.bf16.xpose.msra.mxu0 0
        %691 = vmatprep.subr.bf16.mxu0 0
        %692 = vmatpush1.bf16.xpose.msra.mxu0 0
        %693 = vmatprep.subr.bf16.mxu0 0
        %694 = vmatpush1.bf16.xpose.msra.mxu0 0
        %695 = vmatprep.subr.bf16.mxu0 0
        %696 = vmatpush1.bf16.xpose.msra.mxu0 0
        %697 = vmatprep.subr.bf16.mxu0 0
        %698 = vmatpush1.bf16.xpose.msra.mxu0 0
        %699 = vmatprep.subr.bf16.mxu0 0
        %700 = vmatpush1.bf16.xpose.msra.mxu0 %v683
        %701 = vmatprep.subr.bf16.mxu0 0
        %702 = vmatpush2.bf16.xpose.msra.mxu0 0
        %703 = vmatprep.subr.bf16.mxu0 0
        %704 = vmatpush2.bf16.xpose.msra.mxu0 0
        %705 = vmatprep.subr.bf16.mxu0 0
        %706 = vmatpush2.bf16.xpose.msra.mxu0 0
        %707 = vmatprep.subr.bf16.mxu0 0
        %708 = vmatpush2.bf16.xpose.msra.mxu0 0
        %709 = vmatprep.subr.bf16.mxu0 0
        %710 = vmatpush2.bf16.xpose.msra.mxu0 0
        %711 = vmatprep.subr.bf16.mxu0 0
        %712 = vmatpush2.bf16.xpose.msra.mxu0 0
        %713 = vmatprep.subr.bf16.mxu0 0
        %714 = vmatpush2.bf16.xpose.msra.mxu0 0
        %715 = vmatprep.subr.bf16.mxu0 0
        %716 = vmatpush2.bf16.xpose.msra.mxu0 0
        %717 = vmatprep.mubr.bf16.mxu0 0
        %718 = vmatmul.mubr.bf16.gmra.mxu0 %v680
        %v719 = vpop.f32.mrf.mxu0
        %v720 = vadd.f32 0.0, %v719
        %v721 = vpop.f32.mrf.mxu0
        %v722 = vpop.f32.mrf.mxu0
        %v723 = vadd.f32 0.0, %v722
        %v724 = vpop.f32.mrf.mxu0
        %725 = vdwg.mxu0
        %v727 = vsel %vm388, %v622, 0
        %v730 = vsel %vm388, %v626, 0
        %732 = vmatprep.subr.bf16.mxu0 0
        %733 = vmatpush1.bf16.xpose.msra.mxu0 0
        %734 = vmatprep.subr.bf16.mxu0 0
        %735 = vmatpush1.bf16.xpose.msra.mxu0 0
        %736 = vmatprep.subr.bf16.mxu0 0
        %737 = vmatpush1.bf16.xpose.msra.mxu0 0
        %738 = vmatprep.subr.bf16.mxu0 0
        %739 = vmatpush1.bf16.xpose.msra.mxu0 0
        %740 = vmatprep.subr.bf16.mxu0 0
        %741 = vmatpush1.bf16.xpose.msra.mxu0 0
        %742 = vmatprep.subr.bf16.mxu0 0
        %743 = vmatpush1.bf16.xpose.msra.mxu0 0
        %744 = vmatprep.subr.bf16.mxu0 0
        %745 = vmatpush1.bf16.xpose.msra.mxu0 0
        %746 = vmatprep.subr.bf16.mxu0 0
        %747 = vmatpush1.bf16.xpose.msra.mxu0 %v730
        %748 = vmatprep.subr.bf16.mxu0 0
        %749 = vmatpush2.bf16.xpose.msra.mxu0 0
        %750 = vmatprep.subr.bf16.mxu0 0
        %751 = vmatpush2.bf16.xpose.msra.mxu0 0
        %752 = vmatprep.subr.bf16.mxu0 0
        %753 = vmatpush2.bf16.xpose.msra.mxu0 0
        %754 = vmatprep.subr.bf16.mxu0 0
        %755 = vmatpush2.bf16.xpose.msra.mxu0 0
        %756 = vmatprep.subr.bf16.mxu0 0
        %757 = vmatpush2.bf16.xpose.msra.mxu0 0
        %758 = vmatprep.subr.bf16.mxu0 0
        %759 = vmatpush2.bf16.xpose.msra.mxu0 0
        %760 = vmatprep.subr.bf16.mxu0 0
        %761 = vmatpush2.bf16.xpose.msra.mxu0 0
        %762 = vmatprep.subr.bf16.mxu0 0
        %763 = vmatpush2.bf16.xpose.msra.mxu0 0
        %764 = vmatprep.mubr.bf16.mxu0 0
        %765 = vmatmul.mubr.bf16.gmra.mxu0 %v727
        %v766 = vpop.f32.mrf.mxu0
        %v767 = vadd.f32 0.0, %v766
        %v768 = vpop.f32.mrf.mxu0
        %v769 = vpop.f32.mrf.mxu0
        %v770 = vadd.f32 0.0, %v769
        %v771 = vpop.f32.mrf.mxu0
        %772 = vdwg.mxu0
        %v774 = vsel %vm388, %v623, 0
        %v777 = vsel %vm388, %v627, 0
        %779 = vmatprep.subr.bf16.mxu0 0
        %780 = vmatpush1.bf16.xpose.msra.mxu0 0
        %781 = vmatprep.subr.bf16.mxu0 0
        %782 = vmatpush1.bf16.xpose.msra.mxu0 0
        %783 = vmatprep.subr.bf16.mxu0 0
        %784 = vmatpush1.bf16.xpose.msra.mxu0 0
        %785 = vmatprep.subr.bf16.mxu0 0
        %786 = vmatpush1.bf16.xpose.msra.mxu0 0
        %787 = vmatprep.subr.bf16.mxu0 0
        %788 = vmatpush1.bf16.xpose.msra.mxu0 0
        %789 = vmatprep.subr.bf16.mxu0 0
        %790 = vmatpush1.bf16.xpose.msra.mxu0 0
        %791 = vmatprep.subr.bf16.mxu0 0
        %792 = vmatpush1.bf16.xpose.msra.mxu0 0
        %793 = vmatprep.subr.bf16.mxu0 0
        %794 = vmatpush1.bf16.xpose.msra.mxu0 %v777
        %795 = vmatprep.subr.bf16.mxu0 0
        %796 = vmatpush2.bf16.xpose.msra.mxu0 0
        %797 = vmatprep.subr.bf16.mxu0 0
        %798 = vmatpush2.bf16.xpose.msra.mxu0 0
        %799 = vmatprep.subr.bf16.mxu0 0
        %800 = vmatpush2.bf16.xpose.msra.mxu0 0
        %801 = vmatprep.subr.bf16.mxu0 0
        %802 = vmatpush2.bf16.xpose.msra.mxu0 0
        %803 = vmatprep.subr.bf16.mxu0 0
        %804 = vmatpush2.bf16.xpose.msra.mxu0 0
        %805 = vmatprep.subr.bf16.mxu0 0
        %806 = vmatpush2.bf16.xpose.msra.mxu0 0
        %807 = vmatprep.subr.bf16.mxu0 0
        %808 = vmatpush2.bf16.xpose.msra.mxu0 0
        %809 = vmatprep.subr.bf16.mxu0 0
        %810 = vmatpush2.bf16.xpose.msra.mxu0 0
        %811 = vmatprep.mubr.bf16.mxu0 0
        %812 = vmatmul.mubr.bf16.gmra.mxu0 %v774
        %v813 = vpop.f32.mrf.mxu0
        %v814 = vadd.f32 0.0, %v813
        %v815 = vpop.f32.mrf.mxu0
        %v816 = vpop.f32.mrf.mxu0
        %v817 = vadd.f32 0.0, %v816
        %v818 = vpop.f32.mrf.mxu0
        %819 = vdwg.mxu0
        %vm820 = vcmask 130048
        %v821 = vsel %vm820, %v673, -inf
        %822 = vmax.xlane.f32.xlu0 %v821
        %v823 = vpop.xlane.xlu0 %822
        %v824 = vsel %vm820, %v676, -inf
        %825 = vmax.xlane.f32.xlu0 %v824
        %v826 = vpop.xlane.xlu0 %825
        %v827 = vsel %vm820, %v720, -inf
        %828 = vmax.xlane.f32.xlu0 %v827
        %v829 = vpop.xlane.xlu0 %828
        %v830 = vsel %vm820, %v723, -inf
        %831 = vmax.xlane.f32.xlu0 %v830
        %v832 = vpop.xlane.xlu0 %831
        %v833 = vsel %vm820, %v767, -inf
        %834 = vmax.xlane.f32.xlu0 %v833
        %v835 = vpop.xlane.xlu0 %834
        %v836 = vsel %vm820, %v770, -inf
        %837 = vmax.xlane.f32.xlu0 %v836
        %v838 = vpop.xlane.xlu0 %837
        %v839 = vsel %vm820, %v814, -inf
        %840 = vmax.xlane.f32.xlu0 %v839
        %v841 = vpop.xlane.xlu0 %840
        %v842 = vsel %vm820, %v817, -inf
        %843 = vmax.xlane.f32.xlu0 %v842
        %v844 = vpop.xlane.xlu0 %843
        %v845 = vsub.f32 %v673, %v823
        %v846 = vsub.f32 %v676, %v826
        %v847 = vsub.f32 %v720, %v829
        %v848 = vsub.f32 %v723, %v832
        %v849 = vsub.f32 %v767, %v835
        %v850 = vsub.f32 %v770, %v838
        %v851 = vsub.f32 %v814, %v841
        %v852 = vsub.f32 %v817, %v844
        %v853 = vmul.f32 %v845, 1.442695
        %v854 = vpow.pop %v853
        %v855 = vmul.f32 %v846, 1.442695
        %v856 = vpow.pop %v855
        %v857 = vmul.f32 %v847, 1.442695
        %v858 = vpow.pop %v857
        %v859 = vmul.f32 %v848, 1.442695
        %v860 = vpow.pop %v859
        %v861 = vmul.f32 %v849, 1.442695
        %v862 = vpow.pop %v861
        %v863 = vmul.f32 %v850, 1.442695
        %v864 = vpow.pop %v863
        %v865 = vmul.f32 %v851, 1.442695
        %v866 = vpow.pop %v865
        %v867 = vmul.f32 %v852, 1.442695
        %v868 = vpow.pop %v867
        %v869 = vsel %vm820, %v854, 0.0
        %870 = vadd.xlane.f32.xlu0 %v869
        %v871 = vpop.xlane.xlu0 %870
        %v872 = vsel %vm820, %v856, 0.0
        %873 = vadd.xlane.f32.xlu0 %v872
        %v874 = vpop.xlane.xlu0 %873
        %v875 = vsel %vm820, %v858, 0.0
        %876 = vadd.xlane.f32.xlu0 %v875
        %v877 = vpop.xlane.xlu0 %876
        %v878 = vsel %vm820, %v860, 0.0
        %879 = vadd.xlane.f32.xlu0 %v878
        %v880 = vpop.xlane.xlu0 %879
        %v881 = vsel %vm820, %v862, 0.0
        %882 = vadd.xlane.f32.xlu0 %v881
        %v883 = vpop.xlane.xlu0 %882
        %v884 = vsel %vm820, %v864, 0.0
        %885 = vadd.xlane.f32.xlu0 %v884
        %v886 = vpop.xlane.xlu0 %885
        %v887 = vsel %vm820, %v866, 0.0
        %888 = vadd.xlane.f32.xlu0 %v887
        %v889 = vpop.xlane.xlu0 %888
        %v890 = vsel %vm820, %v868, 0.0
        %891 = vadd.xlane.f32.xlu0 %v890
        %v892 = vpop.xlane.xlu0 %891
        %v893 = vrcp.pop %v871
        %v894 = vrcp.pop %v874
        %v895 = vrcp.pop %v877
        %v896 = vrcp.pop %v880
        %v897 = vrcp.pop %v883
        %v898 = vrcp.pop %v886
        %v899 = vrcp.pop %v889
        %v900 = vrcp.pop %v892
        %v901 = vmul.f32 %v854, %v893
        %v902 = vmul.f32 %v856, %v894
        %v903 = vmul.f32 %v858, %v895
        %v904 = vmul.f32 %v860, %v896
        %v905 = vmul.f32 %v862, %v897
        %v906 = vmul.f32 %v864, %v898
        %v907 = vmul.f32 %v866, %v899
        %v908 = vmul.f32 %v868, %v900
        %v909 = vpack.c.bf16 %v902, %v901
        %v910 = vpack.c.bf16 %v904, %v903
        %v911 = vpack.c.bf16 %v906, %v905
        %v912 = vpack.c.bf16 %v908, %v907
        %v914 = vsel %vm820, %v909, 0
        %916 = vmatprep.subr.bf16.mxu0 0
        %917 = vmatpush1.bf16.msra.mxu0 0
        %918 = vmatprep.subr.bf16.mxu0 0
        %919 = vmatpush1.bf16.msra.mxu0 0
        %920 = vmatprep.subr.bf16.mxu0 0
        %921 = vmatpush1.bf16.msra.mxu0 0
        %922 = vmatprep.subr.bf16.mxu0 0
        %923 = vmatpush1.bf16.msra.mxu0 0
        %924 = vmatprep.subr.bf16.mxu0 0
        %925 = vmatpush1.bf16.msra.mxu0 0
        %926 = vmatprep.subr.bf16.mxu0 0
        %927 = vmatpush1.bf16.msra.mxu0 0
        %928 = vmatprep.subr.bf16.mxu0 0
        %929 = vmatpush1.bf16.msra.mxu0 0
        %930 = vmatprep.subr.bf16.mxu0 0
        %931 = vmatpush1.bf16.msra.mxu0 %v628
        %932 = vmatprep.subr.bf16.mxu0 0
        %933 = vmatpush2.bf16.msra.mxu0 0
        %934 = vmatprep.subr.bf16.mxu0 0
        %935 = vmatpush2.bf16.msra.mxu0 0
        %936 = vmatprep.subr.bf16.mxu0 0
        %937 = vmatpush2.bf16.msra.mxu0 0
        %938 = vmatprep.subr.bf16.mxu0 0
        %939 = vmatpush2.bf16.msra.mxu0 0
        %940 = vmatprep.subr.bf16.mxu0 0
        %941 = vmatpush2.bf16.msra.mxu0 0
        %942 = vmatprep.subr.bf16.mxu0 0
        %943 = vmatpush2.bf16.msra.mxu0 0
        %944 = vmatprep.subr.bf16.mxu0 0
        %945 = vmatpush2.bf16.msra.mxu0 0
        %946 = vmatprep.subr.bf16.mxu0 0
        %947 = vmatpush2.bf16.msra.mxu0 0
        %948 = vmatprep.mubr.bf16.mxu0 0
        %949 = vmatmul.mubr.bf16.gmra.mxu0 %v914
        %v950 = vpop.f32.mrf.mxu0
        %v951 = vadd.f32 0.0, %v950
        %v952 = vpop.f32.mrf.mxu0
        %v953 = vpop.f32.mrf.mxu0
        %v954 = vadd.f32 0.0, %v953
        %v955 = vpop.f32.mrf.mxu0
        %956 = vdwg.mxu0
        %v958 = vsel %vm820, %v910, 0
        %960 = vmatprep.subr.bf16.mxu0 0
        %961 = vmatpush1.bf16.msra.mxu0 0
        %962 = vmatprep.subr.bf16.mxu0 0
        %963 = vmatpush1.bf16.msra.mxu0 0
        %964 = vmatprep.subr.bf16.mxu0 0
        %965 = vmatpush1.bf16.msra.mxu0 0
        %966 = vmatprep.subr.bf16.mxu0 0
        %967 = vmatpush1.bf16.msra.mxu0 0
        %968 = vmatprep.subr.bf16.mxu0 0
        %969 = vmatpush1.bf16.msra.mxu0 0
        %970 = vmatprep.subr.bf16.mxu0 0
        %971 = vmatpush1.bf16.msra.mxu0 0
        %972 = vmatprep.subr.bf16.mxu0 0
        %973 = vmatpush1.bf16.msra.mxu0 0
        %974 = vmatprep.subr.bf16.mxu0 0
        %975 = vmatpush1.bf16.msra.mxu0 %v629
        %976 = vmatprep.subr.bf16.mxu0 0
        %977 = vmatpush2.bf16.msra.mxu0 0
        %978 = vmatprep.subr.bf16.mxu0 0
        %979 = vmatpush2.bf16.msra.mxu0 0
        %980 = vmatprep.subr.bf16.mxu0 0
        %981 = vmatpush2.bf16.msra.mxu0 0
        %982 = vmatprep.subr.bf16.mxu0 0
        %983 = vmatpush2.bf16.msra.mxu0 0
        %984 = vmatprep.subr.bf16.mxu0 0
        %985 = vmatpush2.bf16.msra.mxu0 0
        %986 = vmatprep.subr.bf16.mxu0 0
        %987 = vmatpush2.bf16.msra.mxu0 0
        %988 = vmatprep.subr.bf16.mxu0 0
        %989 = vmatpush2.bf16.msra.mxu0 0
        %990 = vmatprep.subr.bf16.mxu0 0
        %991 = vmatpush2.bf16.msra.mxu0 0
        %992 = vmatprep.mubr.bf16.mxu0 0
        %993 = vmatmul.mubr.bf16.gmra.mxu0 %v958
        %v994 = vpop.f32.mrf.mxu0
        %v995 = vadd.f32 0.0, %v994
        %v996 = vpop.f32.mrf.mxu0
        %v997 = vpop.f32.mrf.mxu0
        %v998 = vadd.f32 0.0, %v997
        %v999 = vpop.f32.mrf.mxu0
        %1000 = vdwg.mxu0
        %v1002 = vsel %vm820, %v911, 0
        %1004 = vmatprep.subr.bf16.mxu0 0
        %1005 = vmatpush1.bf16.msra.mxu0 0
        %1006 = vmatprep.subr.bf16.mxu0 0
        %1007 = vmatpush1.bf16.msra.mxu0 0
        %1008 = vmatprep.subr.bf16.mxu0 0
        %1009 = vmatpush1.bf16.msra.mxu0 0
        %1010 = vmatprep.subr.bf16.mxu0 0
        %1011 = vmatpush1.bf16.msra.mxu0 0
        %1012 = vmatprep.subr.bf16.mxu0 0
        %1013 = vmatpush1.bf16.msra.mxu0 0
        %1014 = vmatprep.subr.bf16.mxu0 0
        %1015 = vmatpush1.bf16.msra.mxu0 0
        %1016 = vmatprep.subr.bf16.mxu0 0
        %1017 = vmatpush1.bf16.msra.mxu0 0
        %1018 = vmatprep.subr.bf16.mxu0 0
        %1019 = vmatpush1.bf16.msra.mxu0 %v630
        %1020 = vmatprep.subr.bf16.mxu0 0
        %1021 = vmatpush2.bf16.msra.mxu0 0
        %1022 = vmatprep.subr.bf16.mxu0 0
        %1023 = vmatpush2.bf16.msra.mxu0 0
        %1024 = vmatprep.subr.bf16.mxu0 0
        %1025 = vmatpush2.bf16.msra.mxu0 0
        %1026 = vmatprep.subr.bf16.mxu0 0
        %1027 = vmatpush2.bf16.msra.mxu0 0
        %1028 = vmatprep.subr.bf16.mxu0 0
        %1029 = vmatpush2.bf16.msra.mxu0 0
        %1030 = vmatprep.subr.bf16.mxu0 0
        %1031 = vmatpush2.bf16.msra.mxu0 0
        %1032 = vmatprep.subr.bf16.mxu0 0
        %1033 = vmatpush2.bf16.msra.mxu0 0
        %1034 = vmatprep.subr.bf16.mxu0 0
        %1035 = vmatpush2.bf16.msra.mxu0 0
        %1036 = vmatprep.mubr.bf16.mxu0 0
        %1037 = vmatmul.mubr.bf16.gmra.mxu0 %v1002
        %v1038 = vpop.f32.mrf.mxu0
        %v1039 = vadd.f32 0.0, %v1038
        %v1040 = vpop.f32.mrf.mxu0
        %v1041 = vpop.f32.mrf.mxu0
        %v1042 = vadd.f32 0.0, %v1041
        %v1043 = vpop.f32.mrf.mxu0
        %1044 = vdwg.mxu0
        %v1046 = vsel %vm820, %v912, 0
        %1048 = vmatprep.subr.bf16.mxu0 0
        %1049 = vmatpush1.bf16.msra.mxu0 0
        %1050 = vmatprep.subr.bf16.mxu0 0
        %1051 = vmatpush1.bf16.msra.mxu0 0
        %1052 = vmatprep.subr.bf16.mxu0 0
        %1053 = vmatpush1.bf16.msra.mxu0 0
        %1054 = vmatprep.subr.bf16.mxu0 0
        %1055 = vmatpush1.bf16.msra.mxu0 0
        %1056 = vmatprep.subr.bf16.mxu0 0
        %1057 = vmatpush1.bf16.msra.mxu0 0
        %1058 = vmatprep.subr.bf16.mxu0 0
        %1059 = vmatpush1.bf16.msra.mxu0 0
        %1060 = vmatprep.subr.bf16.mxu0 0
        %1061 = vmatpush1.bf16.msra.mxu0 0
        %1062 = vmatprep.subr.bf16.mxu0 0
        %1063 = vmatpush1.bf16.msra.mxu0 %v631
        %1064 = vmatprep.subr.bf16.mxu0 0
        %1065 = vmatpush2.bf16.msra.mxu0 0
        %1066 = vmatprep.subr.bf16.mxu0 0
        %1067 = vmatpush2.bf16.msra.mxu0 0
        %1068 = vmatprep.subr.bf16.mxu0 0
        %1069 = vmatpush2.bf16.msra.mxu0 0
        %1070 = vmatprep.subr.bf16.mxu0 0
        %1071 = vmatpush2.bf16.msra.mxu0 0
        %1072 = vmatprep.subr.bf16.mxu0 0
        %1073 = vmatpush2.bf16.msra.mxu0 0
        %1074 = vmatprep.subr.bf16.mxu0 0
        %1075 = vmatpush2.bf16.msra.mxu0 0
        %1076 = vmatprep.subr.bf16.mxu0 0
        %1077 = vmatpush2.bf16.msra.mxu0 0
        %1078 = vmatprep.subr.bf16.mxu0 0
        %1079 = vmatpush2.bf16.msra.mxu0 0
        %1080 = vmatprep.mubr.bf16.mxu0 0
        %1081 = vmatmul.mubr.bf16.gmra.mxu0 %v1046
        %v1082 = vpop.f32.mrf.mxu0
        %v1083 = vadd.f32 0.0, %v1082
        %v1084 = vpop.f32.mrf.mxu0
        %v1085 = vpop.f32.mrf.mxu0
        %v1086 = vadd.f32 0.0, %v1085
        %v1087 = vpop.f32.mrf.mxu0
        %1088 = vdwg.mxu0
        %v1089 = vpack.c.bf16 %v954, %v951
        %v1090 = vpack.c.bf16 %v998, %v995
        %v1091 = vpack.c.bf16 %v1042, %v1039
        %v1092 = vpack.c.bf16 %v1086, %v1083
        %s1093 = scalar_lea.vmem [#allocation5], 16
        %v1094 = vld [vmem:[%s1093] sm:$0xf]
        %v1095 = vld [vmem:[%s1093 + $0x4] sm:$0xf]
        %v1096 = vld [vmem:[%s1093 + $0x8] sm:$0xf]
        %v1097 = vld [vmem:[%s1093 + $0xc] sm:$0xf]
        %s1098 = scalar_lea.vmem [#allocation7], 16
        %v1099 = vld [vmem:[%s1098] sm:$0xf]
        %v1100 = vld [vmem:[%s1098 + $0x4] sm:$0xf]
        %v1101 = vld [vmem:[%s1098 + $0x8] sm:$0xf]
        %v1102 = vld [vmem:[%s1098 + $0xc] sm:$0xf]
        %s1103 = scalar_lea.vmem [#allocation8], 16
        %v1104 = vld [vmem:[%s1103] sm:$0xf]
        %v1105 = vld [vmem:[%s1103 + $0x4] sm:$0xf]
        %v1106 = vld [vmem:[%s1103 + $0x8] sm:$0xf]
        %v1107 = vld [vmem:[%s1103 + $0xc] sm:$0xf]
        %s1108 = scalar_lea.vmem [#allocation10], 16
        %v1109 = vld [vmem:[%s1108] sm:$0xf]
        %v1110 = vld [vmem:[%s1108 + $0x4] sm:$0xf]
        %v1111 = vld [vmem:[%s1108 + $0x8] sm:$0xf]
        %v1112 = vld [vmem:[%s1108 + $0xc] sm:$0xf]
        %v1117 = vunpack.c.l.b16 %v1094
        %v1118 = vunpack.c.l.b16 %v1095
        %v1119 = vunpack.c.l.b16 %v1096
        %v1120 = vunpack.c.l.b16 %v1097
        %v1121 = vpack.c.b16 %v1118, %v1117
        %v1122 = vpack.c.b16 %v1120, %v1119
        %1125 = vmatprep.subr.bf16.mxu0 0
        %1126 = vmatpush1.bf16.msra.mxu0 0
        %1127 = vmatprep.subr.bf16.mxu0 0
        %1128 = vmatpush1.bf16.msra.mxu0 0
        %1129 = vmatprep.subr.bf16.mxu0 0
        %1130 = vmatpush1.bf16.msra.mxu0 0
        %1131 = vmatprep.subr.bf16.mxu0 0
        %1132 = vmatpush1.bf16.msra.mxu0 0
        %1133 = vmatprep.subr.bf16.mxu0 0
        %1134 = vmatpush1.bf16.msra.mxu0 0
        %1135 = vmatprep.subr.bf16.mxu0 0
        %1136 = vmatpush1.bf16.msra.mxu0 0
        %1137 = vmatprep.subr.bf16.mxu0 0
        %1138 = vmatpush1.bf16.msra.mxu0 %v1122
        %1139 = vmatprep.subr.bf16.mxu0 0
        %1140 = vmatpush1.bf16.msra.mxu0 %v1121
        %1141 = vmatprep.subr.bf16.mxu0 0
        %1142 = vmatpush2.bf16.msra.mxu0 0
        %1143 = vmatprep.subr.bf16.mxu0 0
        %1144 = vmatpush2.bf16.msra.mxu0 0
        %1145 = vmatprep.subr.bf16.mxu0 0
        %1146 = vmatpush2.bf16.msra.mxu0 0
        %1147 = vmatprep.subr.bf16.mxu0 0
        %1148 = vmatpush2.bf16.msra.mxu0 0
        %1149 = vmatprep.subr.bf16.mxu0 0
        %1150 = vmatpush2.bf16.msra.mxu0 0
        %1151 = vmatprep.subr.bf16.mxu0 0
        %1152 = vmatpush2.bf16.msra.mxu0 0
        %1153 = vmatprep.subr.bf16.mxu0 0
        %1154 = vmatpush2.bf16.msra.mxu0 0
        %1155 = vmatprep.subr.bf16.mxu0 0
        %1156 = vmatpush2.bf16.msra.mxu0 0
        %1157 = vmatprep.mubr.bf16.mxu0 0
        %1158 = vmatmul.mubr.bf16.gmra.mxu0 %v390
        %v1159 = vpop.f32.mrf.mxu0
        %v1160 = vadd.f32 0.0, %v1159
        %v1161 = vpop.f32.mrf.mxu0
        %v1162 = vpop.f32.mrf.mxu0
        %v1163 = vadd.f32 0.0, %v1162
        %v1164 = vpop.f32.mrf.mxu0
        %1165 = vmatprep.mubr.bf16.mxu0 0
        %1166 = vmatmul.mubr.bf16.gmra.mxu0 %v393
        %v1167 = vpop.f32.mrf.mxu0
        %v1168 = vadd.f32 0.0, %v1167
        %v1169 = vpop.f32.mrf.mxu0
        %v1170 = vpop.f32.mrf.mxu0
        %v1171 = vadd.f32 0.0, %v1170
        %v1172 = vpop.f32.mrf.mxu0
        %1173 = vmatprep.mubr.bf16.mxu0 0
        %1174 = vmatmul.mubr.bf16.gmra.mxu0 %v396
        %v1175 = vpop.f32.mrf.mxu0
        %v1176 = vadd.f32 0.0, %v1175
        %v1177 = vpop.f32.mrf.mxu0
        %v1178 = vpop.f32.mrf.mxu0
        %v1179 = vadd.f32 0.0, %v1178
        %v1180 = vpop.f32.mrf.mxu0
        %1181 = vmatprep.mubr.bf16.mxu0 0
        %1182 = vmatmul.mubr.bf16.gmra.mxu0 %v399
        %v1183 = vpop.f32.mrf.mxu0
        %v1184 = vadd.f32 0.0, %v1183
        %v1185 = vpop.f32.mrf.mxu0
        %v1186 = vpop.f32.mrf.mxu0
        %v1187 = vadd.f32 0.0, %v1186
        %v1188 = vpop.f32.mrf.mxu0
        %1189 = vdwg.mxu0
        %v1194 = vunpack.c.l.b16 %v1099
        %v1195 = vunpack.c.l.b16 %v1100
        %v1196 = vunpack.c.l.b16 %v1101
        %v1197 = vunpack.c.l.b16 %v1102
        %v1198 = vpack.c.b16 %v1195, %v1194
        %v1199 = vpack.c.b16 %v1197, %v1196
        %1202 = vmatprep.subr.bf16.mxu0 0
        %1203 = vmatpush1.bf16.msra.mxu0 0
        %1204 = vmatprep.subr.bf16.mxu0 0
        %1205 = vmatpush1.bf16.msra.mxu0 0
        %1206 = vmatprep.subr.bf16.mxu0 0
        %1207 = vmatpush1.bf16.msra.mxu0 0
        %1208 = vmatprep.subr.bf16.mxu0 0
        %1209 = vmatpush1.bf16.msra.mxu0 0
        %1210 = vmatprep.subr.bf16.mxu0 0
        %1211 = vmatpush1.bf16.msra.mxu0 0
        %1212 = vmatprep.subr.bf16.mxu0 0
        %1213 = vmatpush1.bf16.msra.mxu0 0
        %1214 = vmatprep.subr.bf16.mxu0 0
        %1215 = vmatpush1.bf16.msra.mxu0 %v1199
        %1216 = vmatprep.subr.bf16.mxu0 0
        %1217 = vmatpush1.bf16.msra.mxu0 %v1198
        %1218 = vmatprep.subr.bf16.mxu0 0
        %1219 = vmatpush2.bf16.msra.mxu0 0
        %1220 = vmatprep.subr.bf16.mxu0 0
        %1221 = vmatpush2.bf16.msra.mxu0 0
        %1222 = vmatprep.subr.bf16.mxu0 0
        %1223 = vmatpush2.bf16.msra.mxu0 0
        %1224 = vmatprep.subr.bf16.mxu0 0
        %1225 = vmatpush2.bf16.msra.mxu0 0
        %1226 = vmatprep.subr.bf16.mxu0 0
        %1227 = vmatpush2.bf16.msra.mxu0 0
        %1228 = vmatprep.subr.bf16.mxu0 0
        %1229 = vmatpush2.bf16.msra.mxu0 0
        %1230 = vmatprep.subr.bf16.mxu0 0
        %1231 = vmatpush2.bf16.msra.mxu0 0
        %1232 = vmatprep.subr.bf16.mxu0 0
        %1233 = vmatpush2.bf16.msra.mxu0 0
        %1234 = vmatprep.mubr.bf16.mxu0 0
        %1235 = vmatmul.mubr.bf16.gmra.mxu0 %v390
        %v1236 = vpop.f32.mrf.mxu0
        %v1237 = vadd.f32 0.0, %v1236
        %v1238 = vpop.f32.mrf.mxu0
        %v1239 = vpop.f32.mrf.mxu0
        %v1240 = vadd.f32 0.0, %v1239
        %v1241 = vpop.f32.mrf.mxu0
        %1242 = vmatprep.mubr.bf16.mxu0 0
        %1243 = vmatmul.mubr.bf16.gmra.mxu0 %v393
        %v1244 = vpop.f32.mrf.mxu0
        %v1245 = vadd.f32 0.0, %v1244
        %v1246 = vpop.f32.mrf.mxu0
        %v1247 = vpop.f32.mrf.mxu0
        %v1248 = vadd.f32 0.0, %v1247
        %v1249 = vpop.f32.mrf.mxu0
        %1250 = vmatprep.mubr.bf16.mxu0 0
        %1251 = vmatmul.mubr.bf16.gmra.mxu0 %v396
        %v1252 = vpop.f32.mrf.mxu0
        %v1253 = vadd.f32 0.0, %v1252
        %v1254 = vpop.f32.mrf.mxu0
        %v1255 = vpop.f32.mrf.mxu0
        %v1256 = vadd.f32 0.0, %v1255
        %v1257 = vpop.f32.mrf.mxu0
        %1258 = vmatprep.mubr.bf16.mxu0 0
        %1259 = vmatmul.mubr.bf16.gmra.mxu0 %v399
        %v1260 = vpop.f32.mrf.mxu0
        %v1261 = vadd.f32 0.0, %v1260
        %v1262 = vpop.f32.mrf.mxu0
        %v1263 = vpop.f32.mrf.mxu0
        %v1264 = vadd.f32 0.0, %v1263
        %v1265 = vpop.f32.mrf.mxu0
        %1266 = vdwg.mxu0
        %v1271 = vunpack.c.l.b16 %v1104
        %v1272 = vunpack.c.l.b16 %v1105
        %v1273 = vunpack.c.l.b16 %v1106
        %v1274 = vunpack.c.l.b16 %v1107
        %v1275 = vpack.c.b16 %v1272, %v1271
        %v1276 = vpack.c.b16 %v1274, %v1273
        %1279 = vmatprep.subr.bf16.mxu0 0
        %1280 = vmatpush1.bf16.msra.mxu0 0
        %1281 = vmatprep.subr.bf16.mxu0 0
        %1282 = vmatpush1.bf16.msra.mxu0 0
        %1283 = vmatprep.subr.bf16.mxu0 0
        %1284 = vmatpush1.bf16.msra.mxu0 0
        %1285 = vmatprep.subr.bf16.mxu0 0
        %1286 = vmatpush1.bf16.msra.mxu0 0
        %1287 = vmatprep.subr.bf16.mxu0 0
        %1288 = vmatpush1.bf16.msra.mxu0 0
        %1289 = vmatprep.subr.bf16.mxu0 0
        %1290 = vmatpush1.bf16.msra.mxu0 0
        %1291 = vmatprep.subr.bf16.mxu0 0
        %1292 = vmatpush1.bf16.msra.mxu0 %v1276
        %1293 = vmatprep.subr.bf16.mxu0 0
        %1294 = vmatpush1.bf16.msra.mxu0 %v1275
        %1295 = vmatprep.subr.bf16.mxu0 0
        %1296 = vmatpush2.bf16.msra.mxu0 0
        %1297 = vmatprep.subr.bf16.mxu0 0
        %1298 = vmatpush2.bf16.msra.mxu0 0
        %1299 = vmatprep.subr.bf16.mxu0 0
        %1300 = vmatpush2.bf16.msra.mxu0 0
        %1301 = vmatprep.subr.bf16.mxu0 0
        %1302 = vmatpush2.bf16.msra.mxu0 0
        %1303 = vmatprep.subr.bf16.mxu0 0
        %1304 = vmatpush2.bf16.msra.mxu0 0
        %1305 = vmatprep.subr.bf16.mxu0 0
        %1306 = vmatpush2.bf16.msra.mxu0 0
        %1307 = vmatprep.subr.bf16.mxu0 0
        %1308 = vmatpush2.bf16.msra.mxu0 0
        %1309 = vmatprep.subr.bf16.mxu0 0
        %1310 = vmatpush2.bf16.msra.mxu0 0
        %1311 = vmatprep.mubr.bf16.mxu0 0
        %1312 = vmatmul.mubr.bf16.gmra.mxu0 %v390
        %v1313 = vpop.f32.mrf.mxu0
        %v1314 = vadd.f32 0.0, %v1313
        %v1315 = vpop.f32.mrf.mxu0
        %v1316 = vpop.f32.mrf.mxu0
        %v1317 = vadd.f32 0.0, %v1316
        %v1318 = vpop.f32.mrf.mxu0
        %1319 = vmatprep.mubr.bf16.mxu0 0
        %1320 = vmatmul.mubr.bf16.gmra.mxu0 %v393
        %v1321 = vpop.f32.mrf.mxu0
        %v1322 = vadd.f32 0.0, %v1321
        %v1323 = vpop.f32.mrf.mxu0
        %v1324 = vpop.f32.mrf.mxu0
        %v1325 = vadd.f32 0.0, %v1324
        %v1326 = vpop.f32.mrf.mxu0
        %1327 = vmatprep.mubr.bf16.mxu0 0
        %1328 = vmatmul.mubr.bf16.gmra.mxu0 %v396
        %v1329 = vpop.f32.mrf.mxu0
        %v1330 = vadd.f32 0.0, %v1329
        %v1331 = vpop.f32.mrf.mxu0
        %v1332 = vpop.f32.mrf.mxu0
        %v1333 = vadd.f32 0.0, %v1332
        %v1334 = vpop.f32.mrf.mxu0
        %1335 = vmatprep.mubr.bf16.mxu0 0
        %1336 = vmatmul.mubr.bf16.gmra.mxu0 %v399
        %v1337 = vpop.f32.mrf.mxu0
        %v1338 = vadd.f32 0.0, %v1337
        %v1339 = vpop.f32.mrf.mxu0
        %v1340 = vpop.f32.mrf.mxu0
        %v1341 = vadd.f32 0.0, %v1340
        %v1342 = vpop.f32.mrf.mxu0
        %1343 = vdwg.mxu0
        %v1344 = vpack.c.bf16 %v1163, %v1160
        %v1345 = vpack.c.bf16 %v1171, %v1168
        %v1346 = vpack.c.bf16 %v1179, %v1176
        %v1347 = vpack.c.bf16 %v1187, %v1184
        %v1348 = vpack.c.bf16 %v1240, %v1237
        %v1349 = vpack.c.bf16 %v1248, %v1245
        %v1350 = vpack.c.bf16 %v1256, %v1253
        %v1351 = vpack.c.bf16 %v1264, %v1261
        %v1352 = vpack.c.bf16 %v1317, %v1314
        %v1353 = vpack.c.bf16 %v1325, %v1322
        %v1354 = vpack.c.bf16 %v1333, %v1330
        %v1355 = vpack.c.bf16 %v1341, %v1338
        %v1357 = vsel %vm388, %v1344, 0
        %v1360 = vsel %vm388, %v1348, 0
        %1362 = vmatprep.subr.bf16.mxu0 0
        %1363 = vmatpush1.bf16.xpose.msra.mxu0 0
        %1364 = vmatprep.subr.bf16.mxu0 0
        %1365 = vmatpush1.bf16.xpose.msra.mxu0 0
        %1366 = vmatprep.subr.bf16.mxu0 0
        %1367 = vmatpush1.bf16.xpose.msra.mxu0 0
        %1368 = vmatprep.subr.bf16.mxu0 0
        %1369 = vmatpush1.bf16.xpose.msra.mxu0 0
        %1370 = vmatprep.subr.bf16.mxu0 0
        %1371 = vmatpush1.bf16.xpose.msra.mxu0 0
        %1372 = vmatprep.subr.bf16.mxu0 0
        %1373 = vmatpush1.bf16.xpose.msra.mxu0 0
        %1374 = vmatprep.subr.bf16.mxu0 0
        %1375 = vmatpush1.bf16.xpose.msra.mxu0 0
        %1376 = vmatprep.subr.bf16.mxu0 0
        %1377 = vmatpush1.bf16.xpose.msra.mxu0 %v1360
        %1378 = vmatprep.subr.bf16.mxu0 0
        %1379 = vmatpush2.bf16.xpose.msra.mxu0 0
        %1380 = vmatprep.subr.bf16.mxu0 0
        %1381 = vmatpush2.bf16.xpose.msra.mxu0 0
        %1382 = vmatprep.subr.bf16.mxu0 0
        %1383 = vmatpush2.bf16.xpose.msra.mxu0 0
        %1384 = vmatprep.subr.bf16.mxu0 0
        %1385 = vmatpush2.bf16.xpose.msra.mxu0 0
        %1386 = vmatprep.subr.bf16.mxu0 0
        %1387 = vmatpush2.bf16.xpose.msra.mxu0 0
        %1388 = vmatprep.subr.bf16.mxu0 0
        %1389 = vmatpush2.bf16.xpose.msra.mxu0 0
        %1390 = vmatprep.subr.bf16.mxu0 0
        %1391 = vmatpush2.bf16.xpose.msra.mxu0 0
        %1392 = vmatprep.subr.bf16.mxu0 0
        %1393 = vmatpush2.bf16.xpose.msra.mxu0 0
        %1394 = vmatprep.mubr.bf16.mxu0 0
        %1395 = vmatmul.mubr.bf16.gmra.mxu0 %v1357
        %v1396 = vpop.f32.mrf.mxu0
        %v1397 = vadd.f32 0.0, %v1396
        %v1398 = vpop.f32.mrf.mxu0
        %v1399 = vpop.f32.mrf.mxu0
        %v1400 = vadd.f32 0.0, %v1399
        %v1401 = vpop.f32.mrf.mxu0
        %1402 = vdwg.mxu0
        %v1404 = vsel %vm388, %v1345, 0
        %v1407 = vsel %vm388, %v1349, 0
        %1409 = vmatprep.subr.bf16.mxu0 0
        %1410 = vmatpush1.bf16.xpose.msra.mxu0 0
        %1411 = vmatprep.subr.bf16.mxu0 0
        %1412 = vmatpush1.bf16.xpose.msra.mxu0 0
        %1413 = vmatprep.subr.bf16.mxu0 0
        %1414 = vmatpush1.bf16.xpose.msra.mxu0 0
        %1415 = vmatprep.subr.bf16.mxu0 0
        %1416 = vmatpush1.bf16.xpose.msra.mxu0 0
        %1417 = vmatprep.subr.bf16.mxu0 0
        %1418 = vmatpush1.bf16.xpose.msra.mxu0 0
        %1419 = vmatprep.subr.bf16.mxu0 0
        %1420 = vmatpush1.bf16.xpose.msra.mxu0 0
        %1421 = vmatprep.subr.bf16.mxu0 0
        %1422 = vmatpush1.bf16.xpose.msra.mxu0 0
        %1423 = vmatprep.subr.bf16.mxu0 0
        %1424 = vmatpush1.bf16.xpose.msra.mxu0 %v1407
        %1425 = vmatprep.subr.bf16.mxu0 0
        %1426 = vmatpush2.bf16.xpose.msra.mxu0 0
        %1427 = vmatprep.subr.bf16.mxu0 0
        %1428 = vmatpush2.bf16.xpose.msra.mxu0 0
        %1429 = vmatprep.subr.bf16.mxu0 0
        %1430 = vmatpush2.bf16.xpose.msra.mxu0 0
        %1431 = vmatprep.subr.bf16.mxu0 0
        %1432 = vmatpush2.bf16.xpose.msra.mxu0 0
        %1433 = vmatprep.subr.bf16.mxu0 0
        %1434 = vmatpush2.bf16.xpose.msra.mxu0 0
        %1435 = vmatprep.subr.bf16.mxu0 0
        %1436 = vmatpush2.bf16.xpose.msra.mxu0 0
        %1437 = vmatprep.subr.bf16.mxu0 0
        %1438 = vmatpush2.bf16.xpose.msra.mxu0 0
        %1439 = vmatprep.subr.bf16.mxu0 0
        %1440 = vmatpush2.bf16.xpose.msra.mxu0 0
        %1441 = vmatprep.mubr.bf16.mxu0 0
        %1442 = vmatmul.mubr.bf16.gmra.mxu0 %v1404
        %v1443 = vpop.f32.mrf.mxu0
        %v1444 = vadd.f32 0.0, %v1443
        %v1445 = vpop.f32.mrf.mxu0
        %v1446 = vpop.f32.mrf.mxu0
        %v1447 = vadd.f32 0.0, %v1446
        %v1448 = vpop.f32.mrf.mxu0
        %1449 = vdwg.mxu0
        %v1451 = vsel %vm388, %v1346, 0
        %v1454 = vsel %vm388, %v1350, 0
        %1456 = vmatprep.subr.bf16.mxu0 0
        %1457 = vmatpush1.bf16.xpose.msra.mxu0 0
        %1458 = vmatprep.subr.bf16.mxu0 0
        %1459 = vmatpush1.bf16.xpose.msra.mxu0 0
        %1460 = vmatprep.subr.bf16.mxu0 0
        %1461 = vmatpush1.bf16.xpose.msra.mxu0 0
        %1462 = vmatprep.subr.bf16.mxu0 0
        %1463 = vmatpush1.bf16.xpose.msra.mxu0 0
        %1464 = vmatprep.subr.bf16.mxu0 0
        %1465 = vmatpush1.bf16.xpose.msra.mxu0 0
        %1466 = vmatprep.subr.bf16.mxu0 0
        %1467 = vmatpush1.bf16.xpose.msra.mxu0 0
        %1468 = vmatprep.subr.bf16.mxu0 0
        %1469 = vmatpush1.bf16.xpose.msra.mxu0 0
        %1470 = vmatprep.subr.bf16.mxu0 0
        %1471 = vmatpush1.bf16.xpose.msra.mxu0 %v1454
        %1472 = vmatprep.subr.bf16.mxu0 0
        %1473 = vmatpush2.bf16.xpose.msra.mxu0 0
        %1474 = vmatprep.subr.bf16.mxu0 0
        %1475 = vmatpush2.bf16.xpose.msra.mxu0 0
        %1476 = vmatprep.subr.bf16.mxu0 0
        %1477 = vmatpush2.bf16.xpose.msra.mxu0 0
        %1478 = vmatprep.subr.bf16.mxu0 0
        %1479 = vmatpush2.bf16.xpose.msra.mxu0 0
        %1480 = vmatprep.subr.bf16.mxu0 0
        %1481 = vmatpush2.bf16.xpose.msra.mxu0 0
        %1482 = vmatprep.subr.bf16.mxu0 0
        %1483 = vmatpush2.bf16.xpose.msra.mxu0 0
        %1484 = vmatprep.subr.bf16.mxu0 0
        %1485 = vmatpush2.bf16.xpose.msra.mxu0 0
        %1486 = vmatprep.subr.bf16.mxu0 0
        %1487 = vmatpush2.bf16.xpose.msra.mxu0 0
        %1488 = vmatprep.mubr.bf16.mxu0 0
        %1489 = vmatmul.mubr.bf16.gmra.mxu0 %v1451
        %v1490 = vpop.f32.mrf.mxu0
        %v1491 = vadd.f32 0.0, %v1490
        %v1492 = vpop.f32.mrf.mxu0
        %v1493 = vpop.f32.mrf.mxu0
        %v1494 = vadd.f32 0.0, %v1493
        %v1495 = vpop.f32.mrf.mxu0
        %1496 = vdwg.mxu0
        %v1498 = vsel %vm388, %v1347, 0
        %v1501 = vsel %vm388, %v1351, 0
        %1503 = vmatprep.subr.bf16.mxu0 0
        %1504 = vmatpush1.bf16.xpose.msra.mxu0 0
        %1505 = vmatprep.subr.bf16.mxu0 0
        %1506 = vmatpush1.bf16.xpose.msra.mxu0 0
        %1507 = vmatprep.subr.bf16.mxu0 0
        %1508 = vmatpush1.bf16.xpose.msra.mxu0 0
        %1509 = vmatprep.subr.bf16.mxu0 0
        %1510 = vmatpush1.bf16.xpose.msra.mxu0 0
        %1511 = vmatprep.subr.bf16.mxu0 0
        %1512 = vmatpush1.bf16.xpose.msra.mxu0 0
        %1513 = vmatprep.subr.bf16.mxu0 0
        %1514 = vmatpush1.bf16.xpose.msra.mxu0 0
        %1515 = vmatprep.subr.bf16.mxu0 0
        %1516 = vmatpush1.bf16.xpose.msra.mxu0 0
        %1517 = vmatprep.subr.bf16.mxu0 0
        %1518 = vmatpush1.bf16.xpose.msra.mxu0 %v1501
        %1519 = vmatprep.subr.bf16.mxu0 0
        %1520 = vmatpush2.bf16.xpose.msra.mxu0 0
        %1521 = vmatprep.subr.bf16.mxu0 0
        %1522 = vmatpush2.bf16.xpose.msra.mxu0 0
        %1523 = vmatprep.subr.bf16.mxu0 0
        %1524 = vmatpush2.bf16.xpose.msra.mxu0 0
        %1525 = vmatprep.subr.bf16.mxu0 0
        %1526 = vmatpush2.bf16.xpose.msra.mxu0 0
        %1527 = vmatprep.subr.bf16.mxu0 0
        %1528 = vmatpush2.bf16.xpose.msra.mxu0 0
        %1529 = vmatprep.subr.bf16.mxu0 0
        %1530 = vmatpush2.bf16.xpose.msra.mxu0 0
        %1531 = vmatprep.subr.bf16.mxu0 0
        %1532 = vmatpush2.bf16.xpose.msra.mxu0 0
        %1533 = vmatprep.subr.bf16.mxu0 0
        %1534 = vmatpush2.bf16.xpose.msra.mxu0 0
        %1535 = vmatprep.mubr.bf16.mxu0 0
        %1536 = vmatmul.mubr.bf16.gmra.mxu0 %v1498
        %v1537 = vpop.f32.mrf.mxu0
        %v1538 = vadd.f32 0.0, %v1537
        %v1539 = vpop.f32.mrf.mxu0
        %v1540 = vpop.f32.mrf.mxu0
        %v1541 = vadd.f32 0.0, %v1540
        %v1542 = vpop.f32.mrf.mxu0
        %1543 = vdwg.mxu0
        %v1544 = vsel %vm820, %v1397, -inf
        %1545 = vmax.xlane.f32.xlu0 %v1544
        %v1546 = vpop.xlane.xlu0 %1545
        %v1547 = vsel %vm820, %v1400, -inf
        %1548 = vmax.xlane.f32.xlu0 %v1547
        %v1549 = vpop.xlane.xlu0 %1548
        %v1550 = vsel %vm820, %v1444, -inf
        %1551 = vmax.xlane.f32.xlu0 %v1550
        %v1552 = vpop.xlane.xlu0 %1551
        %v1553 = vsel %vm820, %v1447, -inf
        %1554 = vmax.xlane.f32.xlu0 %v1553
        %v1555 = vpop.xlane.xlu0 %1554
        %v1556 = vsel %vm820, %v1491, -inf
        %1557 = vmax.xlane.f32.xlu0 %v1556
        %v1558 = vpop.xlane.xlu0 %1557
        %v1559 = vsel %vm820, %v1494, -inf
        %1560 = vmax.xlane.f32.xlu0 %v1559
        %v1561 = vpop.xlane.xlu0 %1560
        %v1562 = vsel %vm820, %v1538, -inf
        %1563 = vmax.xlane.f32.xlu0 %v1562
        %v1564 = vpop.xlane.xlu0 %1563
        %v1565 = vsel %vm820, %v1541, -inf
        %1566 = vmax.xlane.f32.xlu0 %v1565
        %v1567 = vpop.xlane.xlu0 %1566
        %v1568 = vsub.f32 %v1397, %v1546
        %v1569 = vsub.f32 %v1400, %v1549
        %v1570 = vsub.f32 %v1444, %v1552
        %v1571 = vsub.f32 %v1447, %v1555
        %v1572 = vsub.f32 %v1491, %v1558
        %v1573 = vsub.f32 %v1494, %v1561
        %v1574 = vsub.f32 %v1538, %v1564
        %v1575 = vsub.f32 %v1541, %v1567
        %v1576 = vmul.f32 %v1568, 1.442695
        %v1577 = vpow.pop %v1576
        %v1578 = vmul.f32 %v1569, 1.442695
        %v1579 = vpow.pop %v1578
        %v1580 = vmul.f32 %v1570, 1.442695
        %v1581 = vpow.pop %v1580
        %v1582 = vmul.f32 %v1571, 1.442695
        %v1583 = vpow.pop %v1582
        %v1584 = vmul.f32 %v1572, 1.442695
        %v1585 = vpow.pop %v1584
        %v1586 = vmul.f32 %v1573, 1.442695
        %v1587 = vpow.pop %v1586
        %v1588 = vmul.f32 %v1574, 1.442695
        %v1589 = vpow.pop %v1588
        %v1590 = vmul.f32 %v1575, 1.442695
        %v1591 = vpow.pop %v1590
        %v1592 = vsel %vm820, %v1577, 0.0
        %1593 = vadd.xlane.f32.xlu0 %v1592
        %v1594 = vpop.xlane.xlu0 %1593
        %v1595 = vsel %vm820, %v1579, 0.0
        %1596 = vadd.xlane.f32.xlu0 %v1595
        %v1597 = vpop.xlane.xlu0 %1596
        %v1598 = vsel %vm820, %v1581, 0.0
        %1599 = vadd.xlane.f32.xlu0 %v1598
        %v1600 = vpop.xlane.xlu0 %1599
        %v1601 = vsel %vm820, %v1583, 0.0
        %1602 = vadd.xlane.f32.xlu0 %v1601
        %v1603 = vpop.xlane.xlu0 %1602
        %v1604 = vsel %vm820, %v1585, 0.0
        %1605 = vadd.xlane.f32.xlu0 %v1604
        %v1606 = vpop.xlane.xlu0 %1605
        %v1607 = vsel %vm820, %v1587, 0.0
        %1608 = vadd.xlane.f32.xlu0 %v1607
        %v1609 = vpop.xlane.xlu0 %1608
        %v1610 = vsel %vm820, %v1589, 0.0
        %1611 = vadd.xlane.f32.xlu0 %v1610
        %v1612 = vpop.xlane.xlu0 %1611
        %v1613 = vsel %vm820, %v1591, 0.0
        %1614 = vadd.xlane.f32.xlu0 %v1613
        %v1615 = vpop.xlane.xlu0 %1614
        %v1616 = vrcp.pop %v1594
        %v1617 = vrcp.pop %v1597
        %v1618 = vrcp.pop %v1600
        %v1619 = vrcp.pop %v1603
        %v1620 = vrcp.pop %v1606
        %v1621 = vrcp.pop %v1609
        %v1622 = vrcp.pop %v1612
        %v1623 = vrcp.pop %v1615
        %v1624 = vmul.f32 %v1577, %v1616
        %v1625 = vmul.f32 %v1579, %v1617
        %v1626 = vmul.f32 %v1581, %v1618
        %v1627 = vmul.f32 %v1583, %v1619
        %v1628 = vmul.f32 %v1585, %v1620
        %v1629 = vmul.f32 %v1587, %v1621
        %v1630 = vmul.f32 %v1589, %v1622
        %v1631 = vmul.f32 %v1591, %v1623
        %v1632 = vpack.c.bf16 %v1625, %v1624
        %v1633 = vpack.c.bf16 %v1627, %v1626
        %v1634 = vpack.c.bf16 %v1629, %v1628
        %v1635 = vpack.c.bf16 %v1631, %v1630
        %v1637 = vsel %vm820, %v1632, 0
        %1639 = vmatprep.subr.bf16.mxu0 0
        %1640 = vmatpush1.bf16.msra.mxu0 0
        %1641 = vmatprep.subr.bf16.mxu0 0
        %1642 = vmatpush1.bf16.msra.mxu0 0
        %1643 = vmatprep.subr.bf16.mxu0 0
        %1644 = vmatpush1.bf16.msra.mxu0 0
        %1645 = vmatprep.subr.bf16.mxu0 0
        %1646 = vmatpush1.bf16.msra.mxu0 0
        %1647 = vmatprep.subr.bf16.mxu0 0
        %1648 = vmatpush1.bf16.msra.mxu0 0
        %1649 = vmatprep.subr.bf16.mxu0 0
        %1650 = vmatpush1.bf16.msra.mxu0 0
        %1651 = vmatprep.subr.bf16.mxu0 0
        %1652 = vmatpush1.bf16.msra.mxu0 0
        %1653 = vmatprep.subr.bf16.mxu0 0
        %1654 = vmatpush1.bf16.msra.mxu0 %v1352
        %1655 = vmatprep.subr.bf16.mxu0 0
        %1656 = vmatpush2.bf16.msra.mxu0 0
        %1657 = vmatprep.subr.bf16.mxu0 0
        %1658 = vmatpush2.bf16.msra.mxu0 0
        %1659 = vmatprep.subr.bf16.mxu0 0
        %1660 = vmatpush2.bf16.msra.mxu0 0
        %1661 = vmatprep.subr.bf16.mxu0 0
        %1662 = vmatpush2.bf16.msra.mxu0 0
        %1663 = vmatprep.subr.bf16.mxu0 0
        %1664 = vmatpush2.bf16.msra.mxu0 0
        %1665 = vmatprep.subr.bf16.mxu0 0
        %1666 = vmatpush2.bf16.msra.mxu0 0
        %1667 = vmatprep.subr.bf16.mxu0 0
        %1668 = vmatpush2.bf16.msra.mxu0 0
        %1669 = vmatprep.subr.bf16.mxu0 0
        %1670 = vmatpush2.bf16.msra.mxu0 0
        %1671 = vmatprep.mubr.bf16.mxu0 0
        %1672 = vmatmul.mubr.bf16.gmra.mxu0 %v1637
        %v1673 = vpop.f32.mrf.mxu0
        %v1674 = vadd.f32 0.0, %v1673
        %v1675 = vpop.f32.mrf.mxu0
        %v1676 = vpop.f32.mrf.mxu0
        %v1677 = vadd.f32 0.0, %v1676
        %v1678 = vpop.f32.mrf.mxu0
        %1679 = vdwg.mxu0
        %v1681 = vsel %vm820, %v1633, 0
        %1683 = vmatprep.subr.bf16.mxu0 0
        %1684 = vmatpush1.bf16.msra.mxu0 0
        %1685 = vmatprep.subr.bf16.mxu0 0
        %1686 = vmatpush1.bf16.msra.mxu0 0
        %1687 = vmatprep.subr.bf16.mxu0 0
        %1688 = vmatpush1.bf16.msra.mxu0 0
        %1689 = vmatprep.subr.bf16.mxu0 0
        %1690 = vmatpush1.bf16.msra.mxu0 0
        %1691 = vmatprep.subr.bf16.mxu0 0
        %1692 = vmatpush1.bf16.msra.mxu0 0
        %1693 = vmatprep.subr.bf16.mxu0 0
        %1694 = vmatpush1.bf16.msra.mxu0 0
        %1695 = vmatprep.subr.bf16.mxu0 0
        %1696 = vmatpush1.bf16.msra.mxu0 0
        %1697 = vmatprep.subr.bf16.mxu0 0
        %1698 = vmatpush1.bf16.msra.mxu0 %v1353
        %1699 = vmatprep.subr.bf16.mxu0 0
        %1700 = vmatpush2.bf16.msra.mxu0 0
        %1701 = vmatprep.subr.bf16.mxu0 0
        %1702 = vmatpush2.bf16.msra.mxu0 0
        %1703 = vmatprep.subr.bf16.mxu0 0
        %1704 = vmatpush2.bf16.msra.mxu0 0
        %1705 = vmatprep.subr.bf16.mxu0 0
        %1706 = vmatpush2.bf16.msra.mxu0 0
        %1707 = vmatprep.subr.bf16.mxu0 0
        %1708 = vmatpush2.bf16.msra.mxu0 0
        %1709 = vmatprep.subr.bf16.mxu0 0
        %1710 = vmatpush2.bf16.msra.mxu0 0
        %1711 = vmatprep.subr.bf16.mxu0 0
        %1712 = vmatpush2.bf16.msra.mxu0 0
        %1713 = vmatprep.subr.bf16.mxu0 0
        %1714 = vmatpush2.bf16.msra.mxu0 0
        %1715 = vmatprep.mubr.bf16.mxu0 0
        %1716 = vmatmul.mubr.bf16.gmra.mxu0 %v1681
        %v1717 = vpop.f32.mrf.mxu0
        %v1718 = vadd.f32 0.0, %v1717
        %v1719 = vpop.f32.mrf.mxu0
        %v1720 = vpop.f32.mrf.mxu0
        %v1721 = vadd.f32 0.0, %v1720
        %v1722 = vpop.f32.mrf.mxu0
        %1723 = vdwg.mxu0
        %v1725 = vsel %vm820, %v1634, 0
        %1727 = vmatprep.subr.bf16.mxu0 0
        %1728 = vmatpush1.bf16.msra.mxu0 0
        %1729 = vmatprep.subr.bf16.mxu0 0
        %1730 = vmatpush1.bf16.msra.mxu0 0
        %1731 = vmatprep.subr.bf16.mxu0 0
        %1732 = vmatpush1.bf16.msra.mxu0 0
        %1733 = vmatprep.subr.bf16.mxu0 0
        %1734 = vmatpush1.bf16.msra.mxu0 0
        %1735 = vmatprep.subr.bf16.mxu0 0
        %1736 = vmatpush1.bf16.msra.mxu0 0
        %1737 = vmatprep.subr.bf16.mxu0 0
        %1738 = vmatpush1.bf16.msra.mxu0 0
        %1739 = vmatprep.subr.bf16.mxu0 0
        %1740 = vmatpush1.bf16.msra.mxu0 0
        %1741 = vmatprep.subr.bf16.mxu0 0
        %1742 = vmatpush1.bf16.msra.mxu0 %v1354
        %1743 = vmatprep.subr.bf16.mxu0 0
        %1744 = vmatpush2.bf16.msra.mxu0 0
        %1745 = vmatprep.subr.bf16.mxu0 0
        %1746 = vmatpush2.bf16.msra.mxu0 0
        %1747 = vmatprep.subr.bf16.mxu0 0
        %1748 = vmatpush2.bf16.msra.mxu0 0
        %1749 = vmatprep.subr.bf16.mxu0 0
        %1750 = vmatpush2.bf16.msra.mxu0 0
        %1751 = vmatprep.subr.bf16.mxu0 0
        %1752 = vmatpush2.bf16.msra.mxu0 0
        %1753 = vmatprep.subr.bf16.mxu0 0
        %1754 = vmatpush2.bf16.msra.mxu0 0
        %1755 = vmatprep.subr.bf16.mxu0 0
        %1756 = vmatpush2.bf16.msra.mxu0 0
        %1757 = vmatprep.subr.bf16.mxu0 0
        %1758 = vmatpush2.bf16.msra.mxu0 0
        %1759 = vmatprep.mubr.bf16.mxu0 0
        %1760 = vmatmul.mubr.bf16.gmra.mxu0 %v1725
        %v1761 = vpop.f32.mrf.mxu0
        %v1762 = vadd.f32 0.0, %v1761
        %v1763 = vpop.f32.mrf.mxu0
        %v1764 = vpop.f32.mrf.mxu0
        %v1765 = vadd.f32 0.0, %v1764
        %v1766 = vpop.f32.mrf.mxu0
        %1767 = vdwg.mxu0
        %v1769 = vsel %vm820, %v1635, 0
        %1771 = vmatprep.subr.bf16.mxu0 0
        %1772 = vmatpush1.bf16.msra.mxu0 0
        %1773 = vmatprep.subr.bf16.mxu0 0
        %1774 = vmatpush1.bf16.msra.mxu0 0
        %1775 = vmatprep.subr.bf16.mxu0 0
        %1776 = vmatpush1.bf16.msra.mxu0 0
        %1777 = vmatprep.subr.bf16.mxu0 0
        %1778 = vmatpush1.bf16.msra.mxu0 0
        %1779 = vmatprep.subr.bf16.mxu0 0
        %1780 = vmatpush1.bf16.msra.mxu0 0
        %1781 = vmatprep.subr.bf16.mxu0 0
        %1782 = vmatpush1.bf16.msra.mxu0 0
        %1783 = vmatprep.subr.bf16.mxu0 0
        %1784 = vmatpush1.bf16.msra.mxu0 0
        %1785 = vmatprep.subr.bf16.mxu0 0
        %1786 = vmatpush1.bf16.msra.mxu0 %v1355
        %1787 = vmatprep.subr.bf16.mxu0 0
        %1788 = vmatpush2.bf16.msra.mxu0 0
        %1789 = vmatprep.subr.bf16.mxu0 0
        %1790 = vmatpush2.bf16.msra.mxu0 0
        %1791 = vmatprep.subr.bf16.mxu0 0
        %1792 = vmatpush2.bf16.msra.mxu0 0
        %1793 = vmatprep.subr.bf16.mxu0 0
        %1794 = vmatpush2.bf16.msra.mxu0 0
        %1795 = vmatprep.subr.bf16.mxu0 0
        %1796 = vmatpush2.bf16.msra.mxu0 0
        %1797 = vmatprep.subr.bf16.mxu0 0
        %1798 = vmatpush2.bf16.msra.mxu0 0
        %1799 = vmatprep.subr.bf16.mxu0 0
        %1800 = vmatpush2.bf16.msra.mxu0 0
        %1801 = vmatprep.subr.bf16.mxu0 0
        %1802 = vmatpush2.bf16.msra.mxu0 0
        %1803 = vmatprep.mubr.bf16.mxu0 0
        %1804 = vmatmul.mubr.bf16.gmra.mxu0 %v1769
        %v1805 = vpop.f32.mrf.mxu0
        %v1806 = vadd.f32 0.0, %v1805
        %v1807 = vpop.f32.mrf.mxu0
        %v1808 = vpop.f32.mrf.mxu0
        %v1809 = vadd.f32 0.0, %v1808
        %v1810 = vpop.f32.mrf.mxu0
        %1811 = vdwg.mxu0
        %v1812 = vpack.c.bf16 %v1677, %v1674
        %v1813 = vpack.c.bf16 %v1721, %v1718
        %v1814 = vpack.c.bf16 %v1765, %v1762
        %v1815 = vpack.c.bf16 %v1809, %v1806
        %v1820 = vunpack.c.l.b16 %v1109
        %v1821 = vunpack.c.l.b16 %v1110
        %v1822 = vunpack.c.l.b16 %v1111
        %v1823 = vunpack.c.l.b16 %v1112
        %v1824 = vpack.c.b16 %v1821, %v1820
        %v1825 = vpack.c.b16 %v1823, %v1822
        %v1829 = vsel %vm388, %v1812, 0
        %v1832 = vsel %vm388, %v1813, 0
        %v1835 = vsel %vm388, %v1814, 0
        %v1838 = vsel %vm388, %v1815, 0
        %1840 = vmatprep.subr.bf16.mxu0 0
        %1841 = vmatpush1.bf16.msra.mxu0 0
        %1842 = vmatprep.subr.bf16.mxu0 0
        %1843 = vmatpush1.bf16.msra.mxu0 0
        %1844 = vmatprep.subr.bf16.mxu0 0
        %1845 = vmatpush1.bf16.msra.mxu0 0
        %1846 = vmatprep.subr.bf16.mxu0 0
        %1847 = vmatpush1.bf16.msra.mxu0 0
        %1848 = vmatprep.subr.bf16.mxu0 0
        %1849 = vmatpush1.bf16.msra.mxu0 0
        %1850 = vmatprep.subr.bf16.mxu0 0
        %1851 = vmatpush1.bf16.msra.mxu0 0
        %1852 = vmatprep.subr.bf16.mxu0 0
        %1853 = vmatpush1.bf16.msra.mxu0 %v1825
        %1854 = vmatprep.subr.bf16.mxu0 0
        %1855 = vmatpush1.bf16.msra.mxu0 %v1824
        %1856 = vmatprep.subr.bf16.mxu0 0
        %1857 = vmatpush2.bf16.msra.mxu0 0
        %1858 = vmatprep.subr.bf16.mxu0 0
        %1859 = vmatpush2.bf16.msra.mxu0 0
        %1860 = vmatprep.subr.bf16.mxu0 0
        %1861 = vmatpush2.bf16.msra.mxu0 0
        %1862 = vmatprep.subr.bf16.mxu0 0
        %1863 = vmatpush2.bf16.msra.mxu0 0
        %1864 = vmatprep.subr.bf16.mxu0 0
        %1865 = vmatpush2.bf16.msra.mxu0 0
        %1866 = vmatprep.subr.bf16.mxu0 0
        %1867 = vmatpush2.bf16.msra.mxu0 0
        %1868 = vmatprep.subr.bf16.mxu0 0
        %1869 = vmatpush2.bf16.msra.mxu0 0
        %1870 = vmatprep.subr.bf16.mxu0 0
        %1871 = vmatpush2.bf16.msra.mxu0 0
        %1872 = vmatprep.mubr.bf16.mxu0 0
        %1873 = vmatmul.mubr.bf16.gmra.mxu0 %v1829
        %v1874 = vpop.f32.mrf.mxu0
        %v1875 = vadd.f32 0.0, %v1874
        %v1876 = vpop.f32.mrf.mxu0
        %v1877 = vpop.f32.mrf.mxu0
        %v1878 = vadd.f32 0.0, %v1877
        %v1879 = vpop.f32.mrf.mxu0
        %1880 = vmatprep.mubr.bf16.mxu0 0
        %1881 = vmatmul.mubr.bf16.gmra.mxu0 %v1832
        %v1882 = vpop.f32.mrf.mxu0
        %v1883 = vadd.f32 0.0, %v1882
        %v1884 = vpop.f32.mrf.mxu0
        %v1885 = vpop.f32.mrf.mxu0
        %v1886 = vadd.f32 0.0, %v1885
        %v1887 = vpop.f32.mrf.mxu0
        %1888 = vmatprep.mubr.bf16.mxu0 0
        %1889 = vmatmul.mubr.bf16.gmra.mxu0 %v1835
        %v1890 = vpop.f32.mrf.mxu0
        %v1891 = vadd.f32 0.0, %v1890
        %v1892 = vpop.f32.mrf.mxu0
        %v1893 = vpop.f32.mrf.mxu0
        %v1894 = vadd.f32 0.0, %v1893
        %v1895 = vpop.f32.mrf.mxu0
        %1896 = vmatprep.mubr.bf16.mxu0 0
        %1897 = vmatmul.mubr.bf16.gmra.mxu0 %v1838
        %v1898 = vpop.f32.mrf.mxu0
        %v1899 = vadd.f32 0.0, %v1898
        %v1900 = vpop.f32.mrf.mxu0
        %v1901 = vpop.f32.mrf.mxu0
        %v1902 = vadd.f32 0.0, %v1901
        %v1903 = vpop.f32.mrf.mxu0
        %1904 = vdwg.mxu0
        %v1909 = vunpack.c.l.b16 %v352
        %v1910 = vunpack.c.l.b16 %v353
        %v1911 = vunpack.c.l.b16 %v354
        %v1912 = vunpack.c.l.b16 %v355
        %v1913 = vpack.c.b16 %v1910, %v1909
        %v1914 = vpack.c.b16 %v1912, %v1911
        %v1918 = vsel %vm388, %v1089, 0
        %v1921 = vsel %vm388, %v1090, 0
        %v1924 = vsel %vm388, %v1091, 0
        %v1927 = vsel %vm388, %v1092, 0
        %1929 = vmatprep.subr.bf16.mxu0 0
        %1930 = vmatpush1.bf16.msra.mxu0 0
        %1931 = vmatprep.subr.bf16.mxu0 0
        %1932 = vmatpush1.bf16.msra.mxu0 0
        %1933 = vmatprep.subr.bf16.mxu0 0
        %1934 = vmatpush1.bf16.msra.mxu0 0
        %1935 = vmatprep.subr.bf16.mxu0 0
        %1936 = vmatpush1.bf16.msra.mxu0 0
        %1937 = vmatprep.subr.bf16.mxu0 0
        %1938 = vmatpush1.bf16.msra.mxu0 0
        %1939 = vmatprep.subr.bf16.mxu0 0
        %1940 = vmatpush1.bf16.msra.mxu0 0
        %1941 = vmatprep.subr.bf16.mxu0 0
        %1942 = vmatpush1.bf16.msra.mxu0 %v1914
        %1943 = vmatprep.subr.bf16.mxu0 0
        %1944 = vmatpush1.bf16.msra.mxu0 %v1913
        %1945 = vmatprep.subr.bf16.mxu0 0
        %1946 = vmatpush2.bf16.msra.mxu0 0
        %1947 = vmatprep.subr.bf16.mxu0 0
        %1948 = vmatpush2.bf16.msra.mxu0 0
        %1949 = vmatprep.subr.bf16.mxu0 0
        %1950 = vmatpush2.bf16.msra.mxu0 0
        %1951 = vmatprep.subr.bf16.mxu0 0
        %1952 = vmatpush2.bf16.msra.mxu0 0
        %1953 = vmatprep.subr.bf16.mxu0 0
        %1954 = vmatpush2.bf16.msra.mxu0 0
        %1955 = vmatprep.subr.bf16.mxu0 0
        %1956 = vmatpush2.bf16.msra.mxu0 0
        %1957 = vmatprep.subr.bf16.mxu0 0
        %1958 = vmatpush2.bf16.msra.mxu0 0
        %1959 = vmatprep.subr.bf16.mxu0 0
        %1960 = vmatpush2.bf16.msra.mxu0 0
        %1961 = vmatprep.mubr.bf16.mxu0 0
        %1962 = vmatmul.mubr.bf16.gmra.mxu0 %v1918
        %v1963 = vpop.f32.mrf.mxu0
        %v1964 = vadd.f32 %v1875, %v1963
        %v1965 = vpop.f32.mrf.mxu0
        %v1966 = vpop.f32.mrf.mxu0
        %v1967 = vadd.f32 %v1878, %v1966
        %v1968 = vpop.f32.mrf.mxu0
        %1969 = vmatprep.mubr.bf16.mxu0 0
        %1970 = vmatmul.mubr.bf16.gmra.mxu0 %v1921
        %v1971 = vpop.f32.mrf.mxu0
        %v1972 = vadd.f32 %v1883, %v1971
        %v1973 = vpop.f32.mrf.mxu0
        %v1974 = vpop.f32.mrf.mxu0
        %v1975 = vadd.f32 %v1886, %v1974
        %v1976 = vpop.f32.mrf.mxu0
        %1977 = vmatprep.mubr.bf16.mxu0 0
        %1978 = vmatmul.mubr.bf16.gmra.mxu0 %v1924
        %v1979 = vpop.f32.mrf.mxu0
        %v1980 = vadd.f32 %v1891, %v1979
        %v1981 = vpop.f32.mrf.mxu0
        %v1982 = vpop.f32.mrf.mxu0
        %v1983 = vadd.f32 %v1894, %v1982
        %v1984 = vpop.f32.mrf.mxu0
        %1985 = vmatprep.mubr.bf16.mxu0 0
        %1986 = vmatmul.mubr.bf16.gmra.mxu0 %v1927
        %v1987 = vpop.f32.mrf.mxu0
        %v1988 = vadd.f32 %v1899, %v1987
        %v1989 = vpop.f32.mrf.mxu0
        %v1990 = vpop.f32.mrf.mxu0
        %v1991 = vadd.f32 %v1902, %v1990
        %v1992 = vpop.f32.mrf.mxu0
        %1993 = vdwg.mxu0
        %s1994 = scalar_lea.vmem [#allocation5], 32
        %v1995 = vld [vmem:[%s1994] sm:$0xf]
        %v1996 = vld [vmem:[%s1994 + $0x4] sm:$0xf]
        %v1997 = vld [vmem:[%s1994 + $0x8] sm:$0xf]
        %v1998 = vld [vmem:[%s1994 + $0xc] sm:$0xf]
        %s1999 = scalar_lea.vmem [#allocation7], 32
        %v2000 = vld [vmem:[%s1999] sm:$0xf]
        %v2001 = vld [vmem:[%s1999 + $0x4] sm:$0xf]
        %v2002 = vld [vmem:[%s1999 + $0x8] sm:$0xf]
        %v2003 = vld [vmem:[%s1999 + $0xc] sm:$0xf]
        %s2004 = scalar_lea.vmem [#allocation8], 32
        %v2005 = vld [vmem:[%s2004] sm:$0xf]
        %v2006 = vld [vmem:[%s2004 + $0x4] sm:$0xf]
        %v2007 = vld [vmem:[%s2004 + $0x8] sm:$0xf]
        %v2008 = vld [vmem:[%s2004 + $0xc] sm:$0xf]
        %s2009 = scalar_lea.vmem [#allocation10], 32
        %v2010 = vld [vmem:[%s2009] sm:$0xf]
        %v2011 = vld [vmem:[%s2009 + $0x4] sm:$0xf]
        %v2012 = vld [vmem:[%s2009 + $0x8] sm:$0xf]
        %v2013 = vld [vmem:[%s2009 + $0xc] sm:$0xf]
        %v2018 = vunpack.c.l.b16 %v1995
        %v2019 = vunpack.c.l.b16 %v1996
        %v2020 = vunpack.c.l.b16 %v1997
        %v2021 = vunpack.c.l.b16 %v1998
        %v2022 = vpack.c.b16 %v2019, %v2018
        %v2023 = vpack.c.b16 %v2021, %v2020
        %2026 = vmatprep.subr.bf16.mxu0 0
        %2027 = vmatpush1.bf16.msra.mxu0 0
        %2028 = vmatprep.subr.bf16.mxu0 0
        %2029 = vmatpush1.bf16.msra.mxu0 0
        %2030 = vmatprep.subr.bf16.mxu0 0
        %2031 = vmatpush1.bf16.msra.mxu0 0
        %2032 = vmatprep.subr.bf16.mxu0 0
        %2033 = vmatpush1.bf16.msra.mxu0 0
        %2034 = vmatprep.subr.bf16.mxu0 0
        %2035 = vmatpush1.bf16.msra.mxu0 0
        %2036 = vmatprep.subr.bf16.mxu0 0
        %2037 = vmatpush1.bf16.msra.mxu0 0
        %2038 = vmatprep.subr.bf16.mxu0 0
        %2039 = vmatpush1.bf16.msra.mxu0 %v2023
        %2040 = vmatprep.subr.bf16.mxu0 0
        %2041 = vmatpush1.bf16.msra.mxu0 %v2022
        %2042 = vmatprep.subr.bf16.mxu0 0
        %2043 = vmatpush2.bf16.msra.mxu0 0
        %2044 = vmatprep.subr.bf16.mxu0 0
        %2045 = vmatpush2.bf16.msra.mxu0 0
        %2046 = vmatprep.subr.bf16.mxu0 0
        %2047 = vmatpush2.bf16.msra.mxu0 0
        %2048 = vmatprep.subr.bf16.mxu0 0
        %2049 = vmatpush2.bf16.msra.mxu0 0
        %2050 = vmatprep.subr.bf16.mxu0 0
        %2051 = vmatpush2.bf16.msra.mxu0 0
        %2052 = vmatprep.subr.bf16.mxu0 0
        %2053 = vmatpush2.bf16.msra.mxu0 0
        %2054 = vmatprep.subr.bf16.mxu0 0
        %2055 = vmatpush2.bf16.msra.mxu0 0
        %2056 = vmatprep.subr.bf16.mxu0 0
        %2057 = vmatpush2.bf16.msra.mxu0 0
        %2058 = vmatprep.mubr.bf16.mxu0 0
        %2059 = vmatmul.mubr.bf16.gmra.mxu0 %v390
        %v2060 = vpop.f32.mrf.mxu0
        %v2061 = vadd.f32 0.0, %v2060
        %v2062 = vpop.f32.mrf.mxu0
        %v2063 = vpop.f32.mrf.mxu0
        %v2064 = vadd.f32 0.0, %v2063
        %v2065 = vpop.f32.mrf.mxu0
        %2066 = vmatprep.mubr.bf16.mxu0 0
        %2067 = vmatmul.mubr.bf16.gmra.mxu0 %v393
        %v2068 = vpop.f32.mrf.mxu0
        %v2069 = vadd.f32 0.0, %v2068
        %v2070 = vpop.f32.mrf.mxu0
        %v2071 = vpop.f32.mrf.mxu0
        %v2072 = vadd.f32 0.0, %v2071
        %v2073 = vpop.f32.mrf.mxu0
        %2074 = vmatprep.mubr.bf16.mxu0 0
        %2075 = vmatmul.mubr.bf16.gmra.mxu0 %v396
        %v2076 = vpop.f32.mrf.mxu0
        %v2077 = vadd.f32 0.0, %v2076
        %v2078 = vpop.f32.mrf.mxu0
        %v2079 = vpop.f32.mrf.mxu0
        %v2080 = vadd.f32 0.0, %v2079
        %v2081 = vpop.f32.mrf.mxu0
        %2082 = vmatprep.mubr.bf16.mxu0 0
        %2083 = vmatmul.mubr.bf16.gmra.mxu0 %v399
        %v2084 = vpop.f32.mrf.mxu0
        %v2085 = vadd.f32 0.0, %v2084
        %v2086 = vpop.f32.mrf.mxu0
        %v2087 = vpop.f32.mrf.mxu0
        %v2088 = vadd.f32 0.0, %v2087
        %v2089 = vpop.f32.mrf.mxu0
        %2090 = vdwg.mxu0
        %v2095 = vunpack.c.l.b16 %v2000
        %v2096 = vunpack.c.l.b16 %v2001
        %v2097 = vunpack.c.l.b16 %v2002
        %v2098 = vunpack.c.l.b16 %v2003
        %v2099 = vpack.c.b16 %v2096, %v2095
        %v2100 = vpack.c.b16 %v2098, %v2097
        %2103 = vmatprep.subr.bf16.mxu0 0
        %2104 = vmatpush1.bf16.msra.mxu0 0
        %2105 = vmatprep.subr.bf16.mxu0 0
        %2106 = vmatpush1.bf16.msra.mxu0 0
        %2107 = vmatprep.subr.bf16.mxu0 0
        %2108 = vmatpush1.bf16.msra.mxu0 0
        %2109 = vmatprep.subr.bf16.mxu0 0
        %2110 = vmatpush1.bf16.msra.mxu0 0
        %2111 = vmatprep.subr.bf16.mxu0 0
        %2112 = vmatpush1.bf16.msra.mxu0 0
        %2113 = vmatprep.subr.bf16.mxu0 0
        %2114 = vmatpush1.bf16.msra.mxu0 0
        %2115 = vmatprep.subr.bf16.mxu0 0
        %2116 = vmatpush1.bf16.msra.mxu0 %v2100
        %2117 = vmatprep.subr.bf16.mxu0 0
        %2118 = vmatpush1.bf16.msra.mxu0 %v2099
        %2119 = vmatprep.subr.bf16.mxu0 0
        %2120 = vmatpush2.bf16.msra.mxu0 0
        %2121 = vmatprep.subr.bf16.mxu0 0
        %2122 = vmatpush2.bf16.msra.mxu0 0
        %2123 = vmatprep.subr.bf16.mxu0 0
        %2124 = vmatpush2.bf16.msra.mxu0 0
        %2125 = vmatprep.subr.bf16.mxu0 0
        %2126 = vmatpush2.bf16.msra.mxu0 0
        %2127 = vmatprep.subr.bf16.mxu0 0
        %2128 = vmatpush2.bf16.msra.mxu0 0
        %2129 = vmatprep.subr.bf16.mxu0 0
        %2130 = vmatpush2.bf16.msra.mxu0 0
        %2131 = vmatprep.subr.bf16.mxu0 0
        %2132 = vmatpush2.bf16.msra.mxu0 0
        %2133 = vmatprep.subr.bf16.mxu0 0
        %2134 = vmatpush2.bf16.msra.mxu0 0
        %2135 = vmatprep.mubr.bf16.mxu0 0
        %2136 = vmatmul.mubr.bf16.gmra.mxu0 %v390
        %v2137 = vpop.f32.mrf.mxu0
        %v2138 = vadd.f32 0.0, %v2137
        %v2139 = vpop.f32.mrf.mxu0
        %v2140 = vpop.f32.mrf.mxu0
        %v2141 = vadd.f32 0.0, %v2140
        %v2142 = vpop.f32.mrf.mxu0
        %2143 = vmatprep.mubr.bf16.mxu0 0
        %2144 = vmatmul.mubr.bf16.gmra.mxu0 %v393
        %v2145 = vpop.f32.mrf.mxu0
        %v2146 = vadd.f32 0.0, %v2145
        %v2147 = vpop.f32.mrf.mxu0
        %v2148 = vpop.f32.mrf.mxu0
        %v2149 = vadd.f32 0.0, %v2148
        %v2150 = vpop.f32.mrf.mxu0
        %2151 = vmatprep.mubr.bf16.mxu0 0
        %2152 = vmatmul.mubr.bf16.gmra.mxu0 %v396
        %v2153 = vpop.f32.mrf.mxu0
        %v2154 = vadd.f32 0.0, %v2153
        %v2155 = vpop.f32.mrf.mxu0
        %v2156 = vpop.f32.mrf.mxu0
        %v2157 = vadd.f32 0.0, %v2156
        %v2158 = vpop.f32.mrf.mxu0
        %2159 = vmatprep.mubr.bf16.mxu0 0
        %2160 = vmatmul.mubr.bf16.gmra.mxu0 %v399
        %v2161 = vpop.f32.mrf.mxu0
        %v2162 = vadd.f32 0.0, %v2161
        %v2163 = vpop.f32.mrf.mxu0
        %v2164 = vpop.f32.mrf.mxu0
        %v2165 = vadd.f32 0.0, %v2164
        %v2166 = vpop.f32.mrf.mxu0
        %2167 = vdwg.mxu0
        %v2172 = vunpack.c.l.b16 %v2005
        %v2173 = vunpack.c.l.b16 %v2006
        %v2174 = vunpack.c.l.b16 %v2007
        %v2175 = vunpack.c.l.b16 %v2008
        %v2176 = vpack.c.b16 %v2173, %v2172
        %v2177 = vpack.c.b16 %v2175, %v2174
        %2180 = vmatprep.subr.bf16.mxu0 0
        %2181 = vmatpush1.bf16.msra.mxu0 0
        %2182 = vmatprep.subr.bf16.mxu0 0
        %2183 = vmatpush1.bf16.msra.mxu0 0
        %2184 = vmatprep.subr.bf16.mxu0 0
        %2185 = vmatpush1.bf16.msra.mxu0 0
        %2186 = vmatprep.subr.bf16.mxu0 0
        %2187 = vmatpush1.bf16.msra.mxu0 0
        %2188 = vmatprep.subr.bf16.mxu0 0
        %2189 = vmatpush1.bf16.msra.mxu0 0
        %2190 = vmatprep.subr.bf16.mxu0 0
        %2191 = vmatpush1.bf16.msra.mxu0 0
        %2192 = vmatprep.subr.bf16.mxu0 0
        %2193 = vmatpush1.bf16.msra.mxu0 %v2177
        %2194 = vmatprep.subr.bf16.mxu0 0
        %2195 = vmatpush1.bf16.msra.mxu0 %v2176
        %2196 = vmatprep.subr.bf16.mxu0 0
        %2197 = vmatpush2.bf16.msra.mxu0 0
        %2198 = vmatprep.subr.bf16.mxu0 0
        %2199 = vmatpush2.bf16.msra.mxu0 0
        %2200 = vmatprep.subr.bf16.mxu0 0
        %2201 = vmatpush2.bf16.msra.mxu0 0
        %2202 = vmatprep.subr.bf16.mxu0 0
        %2203 = vmatpush2.bf16.msra.mxu0 0
        %2204 = vmatprep.subr.bf16.mxu0 0
        %2205 = vmatpush2.bf16.msra.mxu0 0
        %2206 = vmatprep.subr.bf16.mxu0 0
        %2207 = vmatpush2.bf16.msra.mxu0 0
        %2208 = vmatprep.subr.bf16.mxu0 0
        %2209 = vmatpush2.bf16.msra.mxu0 0
        %2210 = vmatprep.subr.bf16.mxu0 0
        %2211 = vmatpush2.bf16.msra.mxu0 0
        %2212 = vmatprep.mubr.bf16.mxu0 0
        %2213 = vmatmul.mubr.bf16.gmra.mxu0 %v390
        %v2214 = vpop.f32.mrf.mxu0
        %v2215 = vadd.f32 0.0, %v2214
        %v2216 = vpop.f32.mrf.mxu0
        %v2217 = vpop.f32.mrf.mxu0
        %v2218 = vadd.f32 0.0, %v2217
        %v2219 = vpop.f32.mrf.mxu0
        %2220 = vmatprep.mubr.bf16.mxu0 0
        %2221 = vmatmul.mubr.bf16.gmra.mxu0 %v393
        %v2222 = vpop.f32.mrf.mxu0
        %v2223 = vadd.f32 0.0, %v2222
        %v2224 = vpop.f32.mrf.mxu0
        %v2225 = vpop.f32.mrf.mxu0
        %v2226 = vadd.f32 0.0, %v2225
        %v2227 = vpop.f32.mrf.mxu0
        %2228 = vmatprep.mubr.bf16.mxu0 0
        %2229 = vmatmul.mubr.bf16.gmra.mxu0 %v396
        %v2230 = vpop.f32.mrf.mxu0
        %v2231 = vadd.f32 0.0, %v2230
        %v2232 = vpop.f32.mrf.mxu0
        %v2233 = vpop.f32.mrf.mxu0
        %v2234 = vadd.f32 0.0, %v2233
        %v2235 = vpop.f32.mrf.mxu0
        %2236 = vmatprep.mubr.bf16.mxu0 0
        %2237 = vmatmul.mubr.bf16.gmra.mxu0 %v399
        %v2238 = vpop.f32.mrf.mxu0
        %v2239 = vadd.f32 0.0, %v2238
        %v2240 = vpop.f32.mrf.mxu0
        %v2241 = vpop.f32.mrf.mxu0
        %v2242 = vadd.f32 0.0, %v2241
        %v2243 = vpop.f32.mrf.mxu0
        %2244 = vdwg.mxu0
        %v2245 = vpack.c.bf16 %v2064, %v2061
        %v2246 = vpack.c.bf16 %v2072, %v2069
        %v2247 = vpack.c.bf16 %v2080, %v2077
        %v2248 = vpack.c.bf16 %v2088, %v2085
        %v2249 = vpack.c.bf16 %v2141, %v2138
        %v2250 = vpack.c.bf16 %v2149, %v2146
        %v2251 = vpack.c.bf16 %v2157, %v2154
        %v2252 = vpack.c.bf16 %v2165, %v2162
        %v2253 = vpack.c.bf16 %v2218, %v2215
        %v2254 = vpack.c.bf16 %v2226, %v2223
        %v2255 = vpack.c.bf16 %v2234, %v2231
        %v2256 = vpack.c.bf16 %v2242, %v2239
        %v2258 = vsel %vm388, %v2245, 0
        %v2261 = vsel %vm388, %v2249, 0
        %2263 = vmatprep.subr.bf16.mxu0 0
        %2264 = vmatpush1.bf16.xpose.msra.mxu0 0
        %2265 = vmatprep.subr.bf16.mxu0 0
        %2266 = vmatpush1.bf16.xpose.msra.mxu0 0
        %2267 = vmatprep.subr.bf16.mxu0 0
        %2268 = vmatpush1.bf16.xpose.msra.mxu0 0
        %2269 = vmatprep.subr.bf16.mxu0 0
        %2270 = vmatpush1.bf16.xpose.msra.mxu0 0
        %2271 = vmatprep.subr.bf16.mxu0 0
        %2272 = vmatpush1.bf16.xpose.msra.mxu0 0
        %2273 = vmatprep.subr.bf16.mxu0 0
        %2274 = vmatpush1.bf16.xpose.msra.mxu0 0
        %2275 = vmatprep.subr.bf16.mxu0 0
        %2276 = vmatpush1.bf16.xpose.msra.mxu0 0
        %2277 = vmatprep.subr.bf16.mxu0 0
        %2278 = vmatpush1.bf16.xpose.msra.mxu0 %v2261
        %2279 = vmatprep.subr.bf16.mxu0 0
        %2280 = vmatpush2.bf16.xpose.msra.mxu0 0
        %2281 = vmatprep.subr.bf16.mxu0 0
        %2282 = vmatpush2.bf16.xpose.msra.mxu0 0
        %2283 = vmatprep.subr.bf16.mxu0 0
        %2284 = vmatpush2.bf16.xpose.msra.mxu0 0
        %2285 = vmatprep.subr.bf16.mxu0 0
        %2286 = vmatpush2.bf16.xpose.msra.mxu0 0
        %2287 = vmatprep.subr.bf16.mxu0 0
        %2288 = vmatpush2.bf16.xpose.msra.mxu0 0
        %2289 = vmatprep.subr.bf16.mxu0 0
        %2290 = vmatpush2.bf16.xpose.msra.mxu0 0
        %2291 = vmatprep.subr.bf16.mxu0 0
        %2292 = vmatpush2.bf16.xpose.msra.mxu0 0
        %2293 = vmatprep.subr.bf16.mxu0 0
        %2294 = vmatpush2.bf16.xpose.msra.mxu0 0
        %2295 = vmatprep.mubr.bf16.mxu0 0
        %2296 = vmatmul.mubr.bf16.gmra.mxu0 %v2258
        %v2297 = vpop.f32.mrf.mxu0
        %v2298 = vadd.f32 0.0, %v2297
        %v2299 = vpop.f32.mrf.mxu0
        %v2300 = vpop.f32.mrf.mxu0
        %v2301 = vadd.f32 0.0, %v2300
        %v2302 = vpop.f32.mrf.mxu0
        %2303 = vdwg.mxu0
        %v2305 = vsel %vm388, %v2246, 0
        %v2308 = vsel %vm388, %v2250, 0
        %2310 = vmatprep.subr.bf16.mxu0 0
        %2311 = vmatpush1.bf16.xpose.msra.mxu0 0
        %2312 = vmatprep.subr.bf16.mxu0 0
        %2313 = vmatpush1.bf16.xpose.msra.mxu0 0
        %2314 = vmatprep.subr.bf16.mxu0 0
        %2315 = vmatpush1.bf16.xpose.msra.mxu0 0
        %2316 = vmatprep.subr.bf16.mxu0 0
        %2317 = vmatpush1.bf16.xpose.msra.mxu0 0
        %2318 = vmatprep.subr.bf16.mxu0 0
        %2319 = vmatpush1.bf16.xpose.msra.mxu0 0
        %2320 = vmatprep.subr.bf16.mxu0 0
        %2321 = vmatpush1.bf16.xpose.msra.mxu0 0
        %2322 = vmatprep.subr.bf16.mxu0 0
        %2323 = vmatpush1.bf16.xpose.msra.mxu0 0
        %2324 = vmatprep.subr.bf16.mxu0 0
        %2325 = vmatpush1.bf16.xpose.msra.mxu0 %v2308
        %2326 = vmatprep.subr.bf16.mxu0 0
        %2327 = vmatpush2.bf16.xpose.msra.mxu0 0
        %2328 = vmatprep.subr.bf16.mxu0 0
        %2329 = vmatpush2.bf16.xpose.msra.mxu0 0
        %2330 = vmatprep.subr.bf16.mxu0 0
        %2331 = vmatpush2.bf16.xpose.msra.mxu0 0
        %2332 = vmatprep.subr.bf16.mxu0 0
        %2333 = vmatpush2.bf16.xpose.msra.mxu0 0
        %2334 = vmatprep.subr.bf16.mxu0 0
        %2335 = vmatpush2.bf16.xpose.msra.mxu0 0
        %2336 = vmatprep.subr.bf16.mxu0 0
        %2337 = vmatpush2.bf16.xpose.msra.mxu0 0
        %2338 = vmatprep.subr.bf16.mxu0 0
        %2339 = vmatpush2.bf16.xpose.msra.mxu0 0
        %2340 = vmatprep.subr.bf16.mxu0 0
        %2341 = vmatpush2.bf16.xpose.msra.mxu0 0
        %2342 = vmatprep.mubr.bf16.mxu0 0
        %2343 = vmatmul.mubr.bf16.gmra.mxu0 %v2305
        %v2344 = vpop.f32.mrf.mxu0
        %v2345 = vadd.f32 0.0, %v2344
        %v2346 = vpop.f32.mrf.mxu0
        %v2347 = vpop.f32.mrf.mxu0
        %v2348 = vadd.f32 0.0, %v2347
        %v2349 = vpop.f32.mrf.mxu0
        %2350 = vdwg.mxu0
        %v2352 = vsel %vm388, %v2247, 0
        %v2355 = vsel %vm388, %v2251, 0
        %2357 = vmatprep.subr.bf16.mxu0 0
        %2358 = vmatpush1.bf16.xpose.msra.mxu0 0
        %2359 = vmatprep.subr.bf16.mxu0 0
        %2360 = vmatpush1.bf16.xpose.msra.mxu0 0
        %2361 = vmatprep.subr.bf16.mxu0 0
        %2362 = vmatpush1.bf16.xpose.msra.mxu0 0
        %2363 = vmatprep.subr.bf16.mxu0 0
        %2364 = vmatpush1.bf16.xpose.msra.mxu0 0
        %2365 = vmatprep.subr.bf16.mxu0 0
        %2366 = vmatpush1.bf16.xpose.msra.mxu0 0
        %2367 = vmatprep.subr.bf16.mxu0 0
        %2368 = vmatpush1.bf16.xpose.msra.mxu0 0
        %2369 = vmatprep.subr.bf16.mxu0 0
        %2370 = vmatpush1.bf16.xpose.msra.mxu0 0
        %2371 = vmatprep.subr.bf16.mxu0 0
        %2372 = vmatpush1.bf16.xpose.msra.mxu0 %v2355
        %2373 = vmatprep.subr.bf16.mxu0 0
        %2374 = vmatpush2.bf16.xpose.msra.mxu0 0
        %2375 = vmatprep.subr.bf16.mxu0 0
        %2376 = vmatpush2.bf16.xpose.msra.mxu0 0
        %2377 = vmatprep.subr.bf16.mxu0 0
        %2378 = vmatpush2.bf16.xpose.msra.mxu0 0
        %2379 = vmatprep.subr.bf16.mxu0 0
        %2380 = vmatpush2.bf16.xpose.msra.mxu0 0
        %2381 = vmatprep.subr.bf16.mxu0 0
        %2382 = vmatpush2.bf16.xpose.msra.mxu0 0
        %2383 = vmatprep.subr.bf16.mxu0 0
        %2384 = vmatpush2.bf16.xpose.msra.mxu0 0
        %2385 = vmatprep.subr.bf16.mxu0 0
        %2386 = vmatpush2.bf16.xpose.msra.mxu0 0
        %2387 = vmatprep.subr.bf16.mxu0 0
        %2388 = vmatpush2.bf16.xpose.msra.mxu0 0
        %2389 = vmatprep.mubr.bf16.mxu0 0
        %2390 = vmatmul.mubr.bf16.gmra.mxu0 %v2352
        %v2391 = vpop.f32.mrf.mxu0
        %v2392 = vadd.f32 0.0, %v2391
        %v2393 = vpop.f32.mrf.mxu0
        %v2394 = vpop.f32.mrf.mxu0
        %v2395 = vadd.f32 0.0, %v2394
        %v2396 = vpop.f32.mrf.mxu0
        %2397 = vdwg.mxu0
        %v2399 = vsel %vm388, %v2248, 0
        %v2402 = vsel %vm388, %v2252, 0
        %2404 = vmatprep.subr.bf16.mxu0 0
        %2405 = vmatpush1.bf16.xpose.msra.mxu0 0
        %2406 = vmatprep.subr.bf16.mxu0 0
        %2407 = vmatpush1.bf16.xpose.msra.mxu0 0
        %2408 = vmatprep.subr.bf16.mxu0 0
        %2409 = vmatpush1.bf16.xpose.msra.mxu0 0
        %2410 = vmatprep.subr.bf16.mxu0 0
        %2411 = vmatpush1.bf16.xpose.msra.mxu0 0
        %2412 = vmatprep.subr.bf16.mxu0 0
        %2413 = vmatpush1.bf16.xpose.msra.mxu0 0
        %2414 = vmatprep.subr.bf16.mxu0 0
        %2415 = vmatpush1.bf16.xpose.msra.mxu0 0
        %2416 = vmatprep.subr.bf16.mxu0 0
        %2417 = vmatpush1.bf16.xpose.msra.mxu0 0
        %2418 = vmatprep.subr.bf16.mxu0 0
        %2419 = vmatpush1.bf16.xpose.msra.mxu0 %v2402
        %2420 = vmatprep.subr.bf16.mxu0 0
        %2421 = vmatpush2.bf16.xpose.msra.mxu0 0
        %2422 = vmatprep.subr.bf16.mxu0 0
        %2423 = vmatpush2.bf16.xpose.msra.mxu0 0
        %2424 = vmatprep.subr.bf16.mxu0 0
        %2425 = vmatpush2.bf16.xpose.msra.mxu0 0
        %2426 = vmatprep.subr.bf16.mxu0 0
        %2427 = vmatpush2.bf16.xpose.msra.mxu0 0
        %2428 = vmatprep.subr.bf16.mxu0 0
        %2429 = vmatpush2.bf16.xpose.msra.mxu0 0
        %2430 = vmatprep.subr.bf16.mxu0 0
        %2431 = vmatpush2.bf16.xpose.msra.mxu0 0
        %2432 = vmatprep.subr.bf16.mxu0 0
        %2433 = vmatpush2.bf16.xpose.msra.mxu0 0
        %2434 = vmatprep.subr.bf16.mxu0 0
        %2435 = vmatpush2.bf16.xpose.msra.mxu0 0
        %2436 = vmatprep.mubr.bf16.mxu0 0
        %2437 = vmatmul.mubr.bf16.gmra.mxu0 %v2399
        %v2438 = vpop.f32.mrf.mxu0
        %v2439 = vadd.f32 0.0, %v2438
        %v2440 = vpop.f32.mrf.mxu0
        %v2441 = vpop.f32.mrf.mxu0
        %v2442 = vadd.f32 0.0, %v2441
        %v2443 = vpop.f32.mrf.mxu0
        %2444 = vdwg.mxu0
        %v2445 = vsel %vm820, %v2298, -inf
        %2446 = vmax.xlane.f32.xlu0 %v2445
        %v2447 = vpop.xlane.xlu0 %2446
        %v2448 = vsel %vm820, %v2301, -inf
        %2449 = vmax.xlane.f32.xlu0 %v2448
        %v2450 = vpop.xlane.xlu0 %2449
        %v2451 = vsel %vm820, %v2345, -inf
        %2452 = vmax.xlane.f32.xlu0 %v2451
        %v2453 = vpop.xlane.xlu0 %2452
        %v2454 = vsel %vm820, %v2348, -inf
        %2455 = vmax.xlane.f32.xlu0 %v2454
        %v2456 = vpop.xlane.xlu0 %2455
        %v2457 = vsel %vm820, %v2392, -inf
        %2458 = vmax.xlane.f32.xlu0 %v2457
        %v2459 = vpop.xlane.xlu0 %2458
        %v2460 = vsel %vm820, %v2395, -inf
        %2461 = vmax.xlane.f32.xlu0 %v2460
        %v2462 = vpop.xlane.xlu0 %2461
        %v2463 = vsel %vm820, %v2439, -inf
        %2464 = vmax.xlane.f32.xlu0 %v2463
        %v2465 = vpop.xlane.xlu0 %2464
        %v2466 = vsel %vm820, %v2442, -inf
        %2467 = vmax.xlane.f32.xlu0 %v2466
        %v2468 = vpop.xlane.xlu0 %2467
        %v2469 = vsub.f32 %v2298, %v2447
        %v2470 = vsub.f32 %v2301, %v2450
        %v2471 = vsub.f32 %v2345, %v2453
        %v2472 = vsub.f32 %v2348, %v2456
        %v2473 = vsub.f32 %v2392, %v2459
        %v2474 = vsub.f32 %v2395, %v2462
        %v2475 = vsub.f32 %v2439, %v2465
        %v2476 = vsub.f32 %v2442, %v2468
        %v2477 = vmul.f32 %v2469, 1.442695
        %v2478 = vpow.pop %v2477
        %v2479 = vmul.f32 %v2470, 1.442695
        %v2480 = vpow.pop %v2479
        %v2481 = vmul.f32 %v2471, 1.442695
        %v2482 = vpow.pop %v2481
        %v2483 = vmul.f32 %v2472, 1.442695
        %v2484 = vpow.pop %v2483
        %v2485 = vmul.f32 %v2473, 1.442695
        %v2486 = vpow.pop %v2485
        %v2487 = vmul.f32 %v2474, 1.442695
        %v2488 = vpow.pop %v2487
        %v2489 = vmul.f32 %v2475, 1.442695
        %v2490 = vpow.pop %v2489
        %v2491 = vmul.f32 %v2476, 1.442695
        %v2492 = vpow.pop %v2491
        %v2493 = vsel %vm820, %v2478, 0.0
        %2494 = vadd.xlane.f32.xlu0 %v2493
        %v2495 = vpop.xlane.xlu0 %2494
        %v2496 = vsel %vm820, %v2480, 0.0
        %2497 = vadd.xlane.f32.xlu0 %v2496
        %v2498 = vpop.xlane.xlu0 %2497
        %v2499 = vsel %vm820, %v2482, 0.0
        %2500 = vadd.xlane.f32.xlu0 %v2499
        %v2501 = vpop.xlane.xlu0 %2500
        %v2502 = vsel %vm820, %v2484, 0.0
        %2503 = vadd.xlane.f32.xlu0 %v2502
        %v2504 = vpop.xlane.xlu0 %2503
        %v2505 = vsel %vm820, %v2486, 0.0
        %2506 = vadd.xlane.f32.xlu0 %v2505
        %v2507 = vpop.xlane.xlu0 %2506
        %v2508 = vsel %vm820, %v2488, 0.0
        %2509 = vadd.xlane.f32.xlu0 %v2508
        %v2510 = vpop.xlane.xlu0 %2509
        %v2511 = vsel %vm820, %v2490, 0.0
        %2512 = vadd.xlane.f32.xlu0 %v2511
        %v2513 = vpop.xlane.xlu0 %2512
        %v2514 = vsel %vm820, %v2492, 0.0
        %2515 = vadd.xlane.f32.xlu0 %v2514
        %v2516 = vpop.xlane.xlu0 %2515
        %v2517 = vrcp.pop %v2495
        %v2518 = vrcp.pop %v2498
        %v2519 = vrcp.pop %v2501
        %v2520 = vrcp.pop %v2504
        %v2521 = vrcp.pop %v2507
        %v2522 = vrcp.pop %v2510
        %v2523 = vrcp.pop %v2513
        %v2524 = vrcp.pop %v2516
        %v2525 = vmul.f32 %v2478, %v2517
        %v2526 = vmul.f32 %v2480, %v2518
        %v2527 = vmul.f32 %v2482, %v2519
        %v2528 = vmul.f32 %v2484, %v2520
        %v2529 = vmul.f32 %v2486, %v2521
        %v2530 = vmul.f32 %v2488, %v2522
        %v2531 = vmul.f32 %v2490, %v2523
        %v2532 = vmul.f32 %v2492, %v2524
        %v2533 = vpack.c.bf16 %v2526, %v2525
        %v2534 = vpack.c.bf16 %v2528, %v2527
        %v2535 = vpack.c.bf16 %v2530, %v2529
        %v2536 = vpack.c.bf16 %v2532, %v2531
        %v2538 = vsel %vm820, %v2533, 0
        %2540 = vmatprep.subr.bf16.mxu0 0
        %2541 = vmatpush1.bf16.msra.mxu0 0
        %2542 = vmatprep.subr.bf16.mxu0 0
        %2543 = vmatpush1.bf16.msra.mxu0 0
        %2544 = vmatprep.subr.bf16.mxu0 0
        %2545 = vmatpush1.bf16.msra.mxu0 0
        %2546 = vmatprep.subr.bf16.mxu0 0
        %2547 = vmatpush1.bf16.msra.mxu0 0
        %2548 = vmatprep.subr.bf16.mxu0 0
        %2549 = vmatpush1.bf16.msra.mxu0 0
        %2550 = vmatprep.subr.bf16.mxu0 0
        %2551 = vmatpush1.bf16.msra.mxu0 0
        %2552 = vmatprep.subr.bf16.mxu0 0
        %2553 = vmatpush1.bf16.msra.mxu0 0
        %2554 = vmatprep.subr.bf16.mxu0 0
        %2555 = vmatpush1.bf16.msra.mxu0 %v2253
        %2556 = vmatprep.subr.bf16.mxu0 0
        %2557 = vmatpush2.bf16.msra.mxu0 0
        %2558 = vmatprep.subr.bf16.mxu0 0
        %2559 = vmatpush2.bf16.msra.mxu0 0
        %2560 = vmatprep.subr.bf16.mxu0 0
        %2561 = vmatpush2.bf16.msra.mxu0 0
        %2562 = vmatprep.subr.bf16.mxu0 0
        %2563 = vmatpush2.bf16.msra.mxu0 0
        %2564 = vmatprep.subr.bf16.mxu0 0
        %2565 = vmatpush2.bf16.msra.mxu0 0
        %2566 = vmatprep.subr.bf16.mxu0 0
        %2567 = vmatpush2.bf16.msra.mxu0 0
        %2568 = vmatprep.subr.bf16.mxu0 0
        %2569 = vmatpush2.bf16.msra.mxu0 0
        %2570 = vmatprep.subr.bf16.mxu0 0
        %2571 = vmatpush2.bf16.msra.mxu0 0
        %2572 = vmatprep.mubr.bf16.mxu0 0
        %2573 = vmatmul.mubr.bf16.gmra.mxu0 %v2538
        %v2574 = vpop.f32.mrf.mxu0
        %v2575 = vadd.f32 0.0, %v2574
        %v2576 = vpop.f32.mrf.mxu0
        %v2577 = vpop.f32.mrf.mxu0
        %v2578 = vadd.f32 0.0, %v2577
        %v2579 = vpop.f32.mrf.mxu0
        %2580 = vdwg.mxu0
        %v2582 = vsel %vm820, %v2534, 0
        %2584 = vmatprep.subr.bf16.mxu0 0
        %2585 = vmatpush1.bf16.msra.mxu0 0
        %2586 = vmatprep.subr.bf16.mxu0 0
        %2587 = vmatpush1.bf16.msra.mxu0 0
        %2588 = vmatprep.subr.bf16.mxu0 0
        %2589 = vmatpush1.bf16.msra.mxu0 0
        %2590 = vmatprep.subr.bf16.mxu0 0
        %2591 = vmatpush1.bf16.msra.mxu0 0
        %2592 = vmatprep.subr.bf16.mxu0 0
        %2593 = vmatpush1.bf16.msra.mxu0 0
        %2594 = vmatprep.subr.bf16.mxu0 0
        %2595 = vmatpush1.bf16.msra.mxu0 0
        %2596 = vmatprep.subr.bf16.mxu0 0
        %2597 = vmatpush1.bf16.msra.mxu0 0
        %2598 = vmatprep.subr.bf16.mxu0 0
        %2599 = vmatpush1.bf16.msra.mxu0 %v2254
        %2600 = vmatprep.subr.bf16.mxu0 0
        %2601 = vmatpush2.bf16.msra.mxu0 0
        %2602 = vmatprep.subr.bf16.mxu0 0
        %2603 = vmatpush2.bf16.msra.mxu0 0
        %2604 = vmatprep.subr.bf16.mxu0 0
        %2605 = vmatpush2.bf16.msra.mxu0 0
        %2606 = vmatprep.subr.bf16.mxu0 0
        %2607 = vmatpush2.bf16.msra.mxu0 0
        %2608 = vmatprep.subr.bf16.mxu0 0
        %2609 = vmatpush2.bf16.msra.mxu0 0
        %2610 = vmatprep.subr.bf16.mxu0 0
        %2611 = vmatpush2.bf16.msra.mxu0 0
        %2612 = vmatprep.subr.bf16.mxu0 0
        %2613 = vmatpush2.bf16.msra.mxu0 0
        %2614 = vmatprep.subr.bf16.mxu0 0
        %2615 = vmatpush2.bf16.msra.mxu0 0
        %2616 = vmatprep.mubr.bf16.mxu0 0
        %2617 = vmatmul.mubr.bf16.gmra.mxu0 %v2582
        %v2618 = vpop.f32.mrf.mxu0
        %v2619 = vadd.f32 0.0, %v2618
        %v2620 = vpop.f32.mrf.mxu0
        %v2621 = vpop.f32.mrf.mxu0
        %v2622 = vadd.f32 0.0, %v2621
        %v2623 = vpop.f32.mrf.mxu0
        %2624 = vdwg.mxu0
        %v2626 = vsel %vm820, %v2535, 0
        %2628 = vmatprep.subr.bf16.mxu0 0
        %2629 = vmatpush1.bf16.msra.mxu0 0
        %2630 = vmatprep.subr.bf16.mxu0 0
        %2631 = vmatpush1.bf16.msra.mxu0 0
        %2632 = vmatprep.subr.bf16.mxu0 0
        %2633 = vmatpush1.bf16.msra.mxu0 0
        %2634 = vmatprep.subr.bf16.mxu0 0
        %2635 = vmatpush1.bf16.msra.mxu0 0
        %2636 = vmatprep.subr.bf16.mxu0 0
        %2637 = vmatpush1.bf16.msra.mxu0 0
        %2638 = vmatprep.subr.bf16.mxu0 0
        %2639 = vmatpush1.bf16.msra.mxu0 0
        %2640 = vmatprep.subr.bf16.mxu0 0
        %2641 = vmatpush1.bf16.msra.mxu0 0
        %2642 = vmatprep.subr.bf16.mxu0 0
        %2643 = vmatpush1.bf16.msra.mxu0 %v2255
        %2644 = vmatprep.subr.bf16.mxu0 0
        %2645 = vmatpush2.bf16.msra.mxu0 0
        %2646 = vmatprep.subr.bf16.mxu0 0
        %2647 = vmatpush2.bf16.msra.mxu0 0
        %2648 = vmatprep.subr.bf16.mxu0 0
        %2649 = vmatpush2.bf16.msra.mxu0 0
        %2650 = vmatprep.subr.bf16.mxu0 0
        %2651 = vmatpush2.bf16.msra.mxu0 0
        %2652 = vmatprep.subr.bf16.mxu0 0
        %2653 = vmatpush2.bf16.msra.mxu0 0
        %2654 = vmatprep.subr.bf16.mxu0 0
        %2655 = vmatpush2.bf16.msra.mxu0 0
        %2656 = vmatprep.subr.bf16.mxu0 0
        %2657 = vmatpush2.bf16.msra.mxu0 0
        %2658 = vmatprep.subr.bf16.mxu0 0
        %2659 = vmatpush2.bf16.msra.mxu0 0
        %2660 = vmatprep.mubr.bf16.mxu0 0
        %2661 = vmatmul.mubr.bf16.gmra.mxu0 %v2626
        %v2662 = vpop.f32.mrf.mxu0
        %v2663 = vadd.f32 0.0, %v2662
        %v2664 = vpop.f32.mrf.mxu0
        %v2665 = vpop.f32.mrf.mxu0
        %v2666 = vadd.f32 0.0, %v2665
        %v2667 = vpop.f32.mrf.mxu0
        %2668 = vdwg.mxu0
        %v2670 = vsel %vm820, %v2536, 0
        %2672 = vmatprep.subr.bf16.mxu0 0
        %2673 = vmatpush1.bf16.msra.mxu0 0
        %2674 = vmatprep.subr.bf16.mxu0 0
        %2675 = vmatpush1.bf16.msra.mxu0 0
        %2676 = vmatprep.subr.bf16.mxu0 0
        %2677 = vmatpush1.bf16.msra.mxu0 0
        %2678 = vmatprep.subr.bf16.mxu0 0
        %2679 = vmatpush1.bf16.msra.mxu0 0
        %2680 = vmatprep.subr.bf16.mxu0 0
        %2681 = vmatpush1.bf16.msra.mxu0 0
        %2682 = vmatprep.subr.bf16.mxu0 0
        %2683 = vmatpush1.bf16.msra.mxu0 0
        %2684 = vmatprep.subr.bf16.mxu0 0
        %2685 = vmatpush1.bf16.msra.mxu0 0
        %2686 = vmatprep.subr.bf16.mxu0 0
        %2687 = vmatpush1.bf16.msra.mxu0 %v2256
        %2688 = vmatprep.subr.bf16.mxu0 0
        %2689 = vmatpush2.bf16.msra.mxu0 0
        %2690 = vmatprep.subr.bf16.mxu0 0
        %2691 = vmatpush2.bf16.msra.mxu0 0
        %2692 = vmatprep.subr.bf16.mxu0 0
        %2693 = vmatpush2.bf16.msra.mxu0 0
        %2694 = vmatprep.subr.bf16.mxu0 0
        %2695 = vmatpush2.bf16.msra.mxu0 0
        %2696 = vmatprep.subr.bf16.mxu0 0
        %2697 = vmatpush2.bf16.msra.mxu0 0
        %2698 = vmatprep.subr.bf16.mxu0 0
        %2699 = vmatpush2.bf16.msra.mxu0 0
        %2700 = vmatprep.subr.bf16.mxu0 0
        %2701 = vmatpush2.bf16.msra.mxu0 0
        %2702 = vmatprep.subr.bf16.mxu0 0
        %2703 = vmatpush2.bf16.msra.mxu0 0
        %2704 = vmatprep.mubr.bf16.mxu0 0
        %2705 = vmatmul.mubr.bf16.gmra.mxu0 %v2670
        %v2706 = vpop.f32.mrf.mxu0
        %v2707 = vadd.f32 0.0, %v2706
        %v2708 = vpop.f32.mrf.mxu0
        %v2709 = vpop.f32.mrf.mxu0
        %v2710 = vadd.f32 0.0, %v2709
        %v2711 = vpop.f32.mrf.mxu0
        %2712 = vdwg.mxu0
        %v2713 = vpack.c.bf16 %v2578, %v2575
        %v2714 = vpack.c.bf16 %v2622, %v2619
        %v2715 = vpack.c.bf16 %v2666, %v2663
        %v2716 = vpack.c.bf16 %v2710, %v2707
        %v2721 = vunpack.c.l.b16 %v2010
        %v2722 = vunpack.c.l.b16 %v2011
        %v2723 = vunpack.c.l.b16 %v2012
        %v2724 = vunpack.c.l.b16 %v2013
        %v2725 = vpack.c.b16 %v2722, %v2721
        %v2726 = vpack.c.b16 %v2724, %v2723
        %v2730 = vsel %vm388, %v2713, 0
        %v2733 = vsel %vm388, %v2714, 0
        %v2736 = vsel %vm388, %v2715, 0
        %v2739 = vsel %vm388, %v2716, 0
        %2741 = vmatprep.subr.bf16.mxu0 0
        %2742 = vmatpush1.bf16.msra.mxu0 0
        %2743 = vmatprep.subr.bf16.mxu0 0
        %2744 = vmatpush1.bf16.msra.mxu0 0
        %2745 = vmatprep.subr.bf16.mxu0 0
        %2746 = vmatpush1.bf16.msra.mxu0 0
        %2747 = vmatprep.subr.bf16.mxu0 0
        %2748 = vmatpush1.bf16.msra.mxu0 0
        %2749 = vmatprep.subr.bf16.mxu0 0
        %2750 = vmatpush1.bf16.msra.mxu0 0
        %2751 = vmatprep.subr.bf16.mxu0 0
        %2752 = vmatpush1.bf16.msra.mxu0 0
        %2753 = vmatprep.subr.bf16.mxu0 0
        %2754 = vmatpush1.bf16.msra.mxu0 %v2726
        %2755 = vmatprep.subr.bf16.mxu0 0
        %2756 = vmatpush1.bf16.msra.mxu0 %v2725
        %2757 = vmatprep.subr.bf16.mxu0 0
        %2758 = vmatpush2.bf16.msra.mxu0 0
        %2759 = vmatprep.subr.bf16.mxu0 0
        %2760 = vmatpush2.bf16.msra.mxu0 0
        %2761 = vmatprep.subr.bf16.mxu0 0
        %2762 = vmatpush2.bf16.msra.mxu0 0
        %2763 = vmatprep.subr.bf16.mxu0 0
        %2764 = vmatpush2.bf16.msra.mxu0 0
        %2765 = vmatprep.subr.bf16.mxu0 0
        %2766 = vmatpush2.bf16.msra.mxu0 0
        %2767 = vmatprep.subr.bf16.mxu0 0
        %2768 = vmatpush2.bf16.msra.mxu0 0
        %2769 = vmatprep.subr.bf16.mxu0 0
        %2770 = vmatpush2.bf16.msra.mxu0 0
        %2771 = vmatprep.subr.bf16.mxu0 0
        %2772 = vmatpush2.bf16.msra.mxu0 0
        %2773 = vmatprep.mubr.bf16.mxu0 0
        %2774 = vmatmul.mubr.bf16.gmra.mxu0 %v2730
        %v2775 = vpop.f32.mrf.mxu0
        %v2776 = vadd.f32 0.0, %v2775
        %v2777 = vpop.f32.mrf.mxu0
        %v2778 = vpop.f32.mrf.mxu0
        %v2779 = vadd.f32 0.0, %v2778
        %v2780 = vpop.f32.mrf.mxu0
        %2781 = vmatprep.mubr.bf16.mxu0 0
        %2782 = vmatmul.mubr.bf16.gmra.mxu0 %v2733
        %v2783 = vpop.f32.mrf.mxu0
        %v2784 = vadd.f32 0.0, %v2783
        %v2785 = vpop.f32.mrf.mxu0
        %v2786 = vpop.f32.mrf.mxu0
        %v2787 = vadd.f32 0.0, %v2786
        %v2788 = vpop.f32.mrf.mxu0
        %2789 = vmatprep.mubr.bf16.mxu0 0
        %2790 = vmatmul.mubr.bf16.gmra.mxu0 %v2736
        %v2791 = vpop.f32.mrf.mxu0
        %v2792 = vadd.f32 0.0, %v2791
        %v2793 = vpop.f32.mrf.mxu0
        %v2794 = vpop.f32.mrf.mxu0
        %v2795 = vadd.f32 0.0, %v2794
        %v2796 = vpop.f32.mrf.mxu0
        %2797 = vmatprep.mubr.bf16.mxu0 0
        %2798 = vmatmul.mubr.bf16.gmra.mxu0 %v2739
        %v2799 = vpop.f32.mrf.mxu0
        %v2800 = vadd.f32 0.0, %v2799
        %v2801 = vpop.f32.mrf.mxu0
        %v2802 = vpop.f32.mrf.mxu0
        %v2803 = vadd.f32 0.0, %v2802
        %v2804 = vpop.f32.mrf.mxu0
        %2805 = vdwg.mxu0
        %v2806 = vadd.f32 %v1964, %v2776
        %v2807 = vadd.f32 %v1967, %v2779
        %v2808 = vadd.f32 %v1972, %v2784
        %v2809 = vadd.f32 %v1975, %v2787
        %v2810 = vadd.f32 %v1980, %v2792
        %v2811 = vadd.f32 %v1983, %v2795
        %v2812 = vadd.f32 %v1988, %v2800
        %v2813 = vadd.f32 %v1991, %v2803
        %s2814 = scalar_lea.vmem [#allocation5], 48
        %v2815 = vld [vmem:[%s2814] sm:$0xf]
        %v2816 = vld [vmem:[%s2814 + $0x4] sm:$0xf]
        %v2817 = vld [vmem:[%s2814 + $0x8] sm:$0xf]
        %v2818 = vld [vmem:[%s2814 + $0xc] sm:$0xf]
        %s2819 = scalar_lea.vmem [#allocation7], 48
        %v2820 = vld [vmem:[%s2819] sm:$0xf]
        %v2821 = vld [vmem:[%s2819 + $0x4] sm:$0xf]
        %v2822 = vld [vmem:[%s2819 + $0x8] sm:$0xf]
        %v2823 = vld [vmem:[%s2819 + $0xc] sm:$0xf]
        %s2824 = scalar_lea.vmem [#allocation8], 48
        %v2825 = vld [vmem:[%s2824] sm:$0xf]
        %v2826 = vld [vmem:[%s2824 + $0x4] sm:$0xf]
        %v2827 = vld [vmem:[%s2824 + $0x8] sm:$0xf]
        %v2828 = vld [vmem:[%s2824 + $0xc] sm:$0xf]
        %s2829 = scalar_lea.vmem [#allocation10], 48
        %v2830 = vld [vmem:[%s2829] sm:$0xf]
        %v2831 = vld [vmem:[%s2829 + $0x4] sm:$0xf]
        %v2832 = vld [vmem:[%s2829 + $0x8] sm:$0xf]
        %v2833 = vld [vmem:[%s2829 + $0xc] sm:$0xf]
        %v2838 = vunpack.c.l.b16 %v2815
        %v2839 = vunpack.c.l.b16 %v2816
        %v2840 = vunpack.c.l.b16 %v2817
        %v2841 = vunpack.c.l.b16 %v2818
        %v2842 = vpack.c.b16 %v2839, %v2838
        %v2843 = vpack.c.b16 %v2841, %v2840
        %2846 = vmatprep.subr.bf16.mxu0 0
        %2847 = vmatpush1.bf16.msra.mxu0 0
        %2848 = vmatprep.subr.bf16.mxu0 0
        %2849 = vmatpush1.bf16.msra.mxu0 0
        %2850 = vmatprep.subr.bf16.mxu0 0
        %2851 = vmatpush1.bf16.msra.mxu0 0
        %2852 = vmatprep.subr.bf16.mxu0 0
        %2853 = vmatpush1.bf16.msra.mxu0 0
        %2854 = vmatprep.subr.bf16.mxu0 0
        %2855 = vmatpush1.bf16.msra.mxu0 0
        %2856 = vmatprep.subr.bf16.mxu0 0
        %2857 = vmatpush1.bf16.msra.mxu0 0
        %2858 = vmatprep.subr.bf16.mxu0 0
        %2859 = vmatpush1.bf16.msra.mxu0 %v2843
        %2860 = vmatprep.subr.bf16.mxu0 0
        %2861 = vmatpush1.bf16.msra.mxu0 %v2842
        %2862 = vmatprep.subr.bf16.mxu0 0
        %2863 = vmatpush2.bf16.msra.mxu0 0
        %2864 = vmatprep.subr.bf16.mxu0 0
        %2865 = vmatpush2.bf16.msra.mxu0 0
        %2866 = vmatprep.subr.bf16.mxu0 0
        %2867 = vmatpush2.bf16.msra.mxu0 0
        %2868 = vmatprep.subr.bf16.mxu0 0
        %2869 = vmatpush2.bf16.msra.mxu0 0
        %2870 = vmatprep.subr.bf16.mxu0 0
        %2871 = vmatpush2.bf16.msra.mxu0 0
        %2872 = vmatprep.subr.bf16.mxu0 0
        %2873 = vmatpush2.bf16.msra.mxu0 0
        %2874 = vmatprep.subr.bf16.mxu0 0
        %2875 = vmatpush2.bf16.msra.mxu0 0
        %2876 = vmatprep.subr.bf16.mxu0 0
        %2877 = vmatpush2.bf16.msra.mxu0 0
        %2878 = vmatprep.mubr.bf16.mxu0 0
        %2879 = vmatmul.mubr.bf16.gmra.mxu0 %v390
        %v2880 = vpop.f32.mrf.mxu0
        %v2881 = vadd.f32 0.0, %v2880
        %v2882 = vpop.f32.mrf.mxu0
        %v2883 = vpop.f32.mrf.mxu0
        %v2884 = vadd.f32 0.0, %v2883
        %v2885 = vpop.f32.mrf.mxu0
        %2886 = vmatprep.mubr.bf16.mxu0 0
        %2887 = vmatmul.mubr.bf16.gmra.mxu0 %v393
        %v2888 = vpop.f32.mrf.mxu0
        %v2889 = vadd.f32 0.0, %v2888
        %v2890 = vpop.f32.mrf.mxu0
        %v2891 = vpop.f32.mrf.mxu0
        %v2892 = vadd.f32 0.0, %v2891
        %v2893 = vpop.f32.mrf.mxu0
        %2894 = vmatprep.mubr.bf16.mxu0 0
        %2895 = vmatmul.mubr.bf16.gmra.mxu0 %v396
        %v2896 = vpop.f32.mrf.mxu0
        %v2897 = vadd.f32 0.0, %v2896
        %v2898 = vpop.f32.mrf.mxu0
        %v2899 = vpop.f32.mrf.mxu0
        %v2900 = vadd.f32 0.0, %v2899
        %v2901 = vpop.f32.mrf.mxu0
        %2902 = vmatprep.mubr.bf16.mxu0 0
        %2903 = vmatmul.mubr.bf16.gmra.mxu0 %v399
        %v2904 = vpop.f32.mrf.mxu0
        %v2905 = vadd.f32 0.0, %v2904
        %v2906 = vpop.f32.mrf.mxu0
        %v2907 = vpop.f32.mrf.mxu0
        %v2908 = vadd.f32 0.0, %v2907
        %v2909 = vpop.f32.mrf.mxu0
        %2910 = vdwg.mxu0
        %v2915 = vunpack.c.l.b16 %v2820
        %v2916 = vunpack.c.l.b16 %v2821
        %v2917 = vunpack.c.l.b16 %v2822
        %v2918 = vunpack.c.l.b16 %v2823
        %v2919 = vpack.c.b16 %v2916, %v2915
        %v2920 = vpack.c.b16 %v2918, %v2917
        %2923 = vmatprep.subr.bf16.mxu0 0
        %2924 = vmatpush1.bf16.msra.mxu0 0
        %2925 = vmatprep.subr.bf16.mxu0 0
        %2926 = vmatpush1.bf16.msra.mxu0 0
        %2927 = vmatprep.subr.bf16.mxu0 0
        %2928 = vmatpush1.bf16.msra.mxu0 0
        %2929 = vmatprep.subr.bf16.mxu0 0
        %2930 = vmatpush1.bf16.msra.mxu0 0
        %2931 = vmatprep.subr.bf16.mxu0 0
        %2932 = vmatpush1.bf16.msra.mxu0 0
        %2933 = vmatprep.subr.bf16.mxu0 0
        %2934 = vmatpush1.bf16.msra.mxu0 0
        %2935 = vmatprep.subr.bf16.mxu0 0
        %2936 = vmatpush1.bf16.msra.mxu0 %v2920
        %2937 = vmatprep.subr.bf16.mxu0 0
        %2938 = vmatpush1.bf16.msra.mxu0 %v2919
        %2939 = vmatprep.subr.bf16.mxu0 0
        %2940 = vmatpush2.bf16.msra.mxu0 0
        %2941 = vmatprep.subr.bf16.mxu0 0
        %2942 = vmatpush2.bf16.msra.mxu0 0
        %2943 = vmatprep.subr.bf16.mxu0 0
        %2944 = vmatpush2.bf16.msra.mxu0 0
        %2945 = vmatprep.subr.bf16.mxu0 0
        %2946 = vmatpush2.bf16.msra.mxu0 0
        %2947 = vmatprep.subr.bf16.mxu0 0
        %2948 = vmatpush2.bf16.msra.mxu0 0
        %2949 = vmatprep.subr.bf16.mxu0 0
        %2950 = vmatpush2.bf16.msra.mxu0 0
        %2951 = vmatprep.subr.bf16.mxu0 0
        %2952 = vmatpush2.bf16.msra.mxu0 0
        %2953 = vmatprep.subr.bf16.mxu0 0
        %2954 = vmatpush2.bf16.msra.mxu0 0
        %2955 = vmatprep.mubr.bf16.mxu0 0
        %2956 = vmatmul.mubr.bf16.gmra.mxu0 %v390
        %v2957 = vpop.f32.mrf.mxu0
        %v2958 = vadd.f32 0.0, %v2957
        %v2959 = vpop.f32.mrf.mxu0
        %v2960 = vpop.f32.mrf.mxu0
        %v2961 = vadd.f32 0.0, %v2960
        %v2962 = vpop.f32.mrf.mxu0
        %2963 = vmatprep.mubr.bf16.mxu0 0
        %2964 = vmatmul.mubr.bf16.gmra.mxu0 %v393
        %v2965 = vpop.f32.mrf.mxu0
        %v2966 = vadd.f32 0.0, %v2965
        %v2967 = vpop.f32.mrf.mxu0
        %v2968 = vpop.f32.mrf.mxu0
        %v2969 = vadd.f32 0.0, %v2968
        %v2970 = vpop.f32.mrf.mxu0
        %2971 = vmatprep.mubr.bf16.mxu0 0
        %2972 = vmatmul.mubr.bf16.gmra.mxu0 %v396
        %v2973 = vpop.f32.mrf.mxu0
        %v2974 = vadd.f32 0.0, %v2973
        %v2975 = vpop.f32.mrf.mxu0
        %v2976 = vpop.f32.mrf.mxu0
        %v2977 = vadd.f32 0.0, %v2976
        %v2978 = vpop.f32.mrf.mxu0
        %2979 = vmatprep.mubr.bf16.mxu0 0
        %2980 = vmatmul.mubr.bf16.gmra.mxu0 %v399
        %v2981 = vpop.f32.mrf.mxu0
        %v2982 = vadd.f32 0.0, %v2981
        %v2983 = vpop.f32.mrf.mxu0
        %v2984 = vpop.f32.mrf.mxu0
        %v2985 = vadd.f32 0.0, %v2984
        %v2986 = vpop.f32.mrf.mxu0
        %2987 = vdwg.mxu0
        %v2992 = vunpack.c.l.b16 %v2825
        %v2993 = vunpack.c.l.b16 %v2826
        %v2994 = vunpack.c.l.b16 %v2827
        %v2995 = vunpack.c.l.b16 %v2828
        %v2996 = vpack.c.b16 %v2993, %v2992
        %v2997 = vpack.c.b16 %v2995, %v2994
        %3000 = vmatprep.subr.bf16.mxu0 0
        %3001 = vmatpush1.bf16.msra.mxu0 0
        %3002 = vmatprep.subr.bf16.mxu0 0
        %3003 = vmatpush1.bf16.msra.mxu0 0
        %3004 = vmatprep.subr.bf16.mxu0 0
        %3005 = vmatpush1.bf16.msra.mxu0 0
        %3006 = vmatprep.subr.bf16.mxu0 0
        %3007 = vmatpush1.bf16.msra.mxu0 0
        %3008 = vmatprep.subr.bf16.mxu0 0
        %3009 = vmatpush1.bf16.msra.mxu0 0
        %3010 = vmatprep.subr.bf16.mxu0 0
        %3011 = vmatpush1.bf16.msra.mxu0 0
        %3012 = vmatprep.subr.bf16.mxu0 0
        %3013 = vmatpush1.bf16.msra.mxu0 %v2997
        %3014 = vmatprep.subr.bf16.mxu0 0
        %3015 = vmatpush1.bf16.msra.mxu0 %v2996
        %3016 = vmatprep.subr.bf16.mxu0 0
        %3017 = vmatpush2.bf16.msra.mxu0 0
        %3018 = vmatprep.subr.bf16.mxu0 0
        %3019 = vmatpush2.bf16.msra.mxu0 0
        %3020 = vmatprep.subr.bf16.mxu0 0
        %3021 = vmatpush2.bf16.msra.mxu0 0
        %3022 = vmatprep.subr.bf16.mxu0 0
        %3023 = vmatpush2.bf16.msra.mxu0 0
        %3024 = vmatprep.subr.bf16.mxu0 0
        %3025 = vmatpush2.bf16.msra.mxu0 0
        %3026 = vmatprep.subr.bf16.mxu0 0
        %3027 = vmatpush2.bf16.msra.mxu0 0
        %3028 = vmatprep.subr.bf16.mxu0 0
        %3029 = vmatpush2.bf16.msra.mxu0 0
        %3030 = vmatprep.subr.bf16.mxu0 0
        %3031 = vmatpush2.bf16.msra.mxu0 0
        %3032 = vmatprep.mubr.bf16.mxu0 0
        %3033 = vmatmul.mubr.bf16.gmra.mxu0 %v390
        %v3034 = vpop.f32.mrf.mxu0
        %v3035 = vadd.f32 0.0, %v3034
        %v3036 = vpop.f32.mrf.mxu0
        %v3037 = vpop.f32.mrf.mxu0
        %v3038 = vadd.f32 0.0, %v3037
        %v3039 = vpop.f32.mrf.mxu0
        %3040 = vmatprep.mubr.bf16.mxu0 0
        %3041 = vmatmul.mubr.bf16.gmra.mxu0 %v393
        %v3042 = vpop.f32.mrf.mxu0
        %v3043 = vadd.f32 0.0, %v3042
        %v3044 = vpop.f32.mrf.mxu0
        %v3045 = vpop.f32.mrf.mxu0
        %v3046 = vadd.f32 0.0, %v3045
        %v3047 = vpop.f32.mrf.mxu0
        %3048 = vmatprep.mubr.bf16.mxu0 0
        %3049 = vmatmul.mubr.bf16.gmra.mxu0 %v396
        %v3050 = vpop.f32.mrf.mxu0
        %v3051 = vadd.f32 0.0, %v3050
        %v3052 = vpop.f32.mrf.mxu0
        %v3053 = vpop.f32.mrf.mxu0
        %v3054 = vadd.f32 0.0, %v3053
        %v3055 = vpop.f32.mrf.mxu0
        %3056 = vmatprep.mubr.bf16.mxu0 0
        %3057 = vmatmul.mubr.bf16.gmra.mxu0 %v399
        %v3058 = vpop.f32.mrf.mxu0
        %v3059 = vadd.f32 0.0, %v3058
        %v3060 = vpop.f32.mrf.mxu0
        %v3061 = vpop.f32.mrf.mxu0
        %v3062 = vadd.f32 0.0, %v3061
        %v3063 = vpop.f32.mrf.mxu0
        %3064 = vdwg.mxu0
        %v3065 = vpack.c.bf16 %v2884, %v2881
        %v3066 = vpack.c.bf16 %v2892, %v2889
        %v3067 = vpack.c.bf16 %v2900, %v2897
        %v3068 = vpack.c.bf16 %v2908, %v2905
        %v3069 = vpack.c.bf16 %v2961, %v2958
        %v3070 = vpack.c.bf16 %v2969, %v2966
        %v3071 = vpack.c.bf16 %v2977, %v2974
        %v3072 = vpack.c.bf16 %v2985, %v2982
        %v3073 = vpack.c.bf16 %v3038, %v3035
        %v3074 = vpack.c.bf16 %v3046, %v3043
        %v3075 = vpack.c.bf16 %v3054, %v3051
        %v3076 = vpack.c.bf16 %v3062, %v3059
        %v3078 = vsel %vm388, %v3065, 0
        %v3081 = vsel %vm388, %v3069, 0
        %3083 = vmatprep.subr.bf16.mxu0 0
        %3084 = vmatpush1.bf16.xpose.msra.mxu0 0
        %3085 = vmatprep.subr.bf16.mxu0 0
        %3086 = vmatpush1.bf16.xpose.msra.mxu0 0
        %3087 = vmatprep.subr.bf16.mxu0 0
        %3088 = vmatpush1.bf16.xpose.msra.mxu0 0
        %3089 = vmatprep.subr.bf16.mxu0 0
        %3090 = vmatpush1.bf16.xpose.msra.mxu0 0
        %3091 = vmatprep.subr.bf16.mxu0 0
        %3092 = vmatpush1.bf16.xpose.msra.mxu0 0
        %3093 = vmatprep.subr.bf16.mxu0 0
        %3094 = vmatpush1.bf16.xpose.msra.mxu0 0
        %3095 = vmatprep.subr.bf16.mxu0 0
        %3096 = vmatpush1.bf16.xpose.msra.mxu0 0
        %3097 = vmatprep.subr.bf16.mxu0 0
        %3098 = vmatpush1.bf16.xpose.msra.mxu0 %v3081
        %3099 = vmatprep.subr.bf16.mxu0 0
        %3100 = vmatpush2.bf16.xpose.msra.mxu0 0
        %3101 = vmatprep.subr.bf16.mxu0 0
        %3102 = vmatpush2.bf16.xpose.msra.mxu0 0
        %3103 = vmatprep.subr.bf16.mxu0 0
        %3104 = vmatpush2.bf16.xpose.msra.mxu0 0
        %3105 = vmatprep.subr.bf16.mxu0 0
        %3106 = vmatpush2.bf16.xpose.msra.mxu0 0
        %3107 = vmatprep.subr.bf16.mxu0 0
        %3108 = vmatpush2.bf16.xpose.msra.mxu0 0
        %3109 = vmatprep.subr.bf16.mxu0 0
        %3110 = vmatpush2.bf16.xpose.msra.mxu0 0
        %3111 = vmatprep.subr.bf16.mxu0 0
        %3112 = vmatpush2.bf16.xpose.msra.mxu0 0
        %3113 = vmatprep.subr.bf16.mxu0 0
        %3114 = vmatpush2.bf16.xpose.msra.mxu0 0
        %3115 = vmatprep.mubr.bf16.mxu0 0
        %3116 = vmatmul.mubr.bf16.gmra.mxu0 %v3078
        %v3117 = vpop.f32.mrf.mxu0
        %v3118 = vadd.f32 0.0, %v3117
        %v3119 = vpop.f32.mrf.mxu0
        %v3120 = vpop.f32.mrf.mxu0
        %v3121 = vadd.f32 0.0, %v3120
        %v3122 = vpop.f32.mrf.mxu0
        %3123 = vdwg.mxu0
        %v3125 = vsel %vm388, %v3066, 0
        %v3128 = vsel %vm388, %v3070, 0
        %3130 = vmatprep.subr.bf16.mxu0 0
        %3131 = vmatpush1.bf16.xpose.msra.mxu0 0
        %3132 = vmatprep.subr.bf16.mxu0 0
        %3133 = vmatpush1.bf16.xpose.msra.mxu0 0
        %3134 = vmatprep.subr.bf16.mxu0 0
        %3135 = vmatpush1.bf16.xpose.msra.mxu0 0
        %3136 = vmatprep.subr.bf16.mxu0 0
        %3137 = vmatpush1.bf16.xpose.msra.mxu0 0
        %3138 = vmatprep.subr.bf16.mxu0 0
        %3139 = vmatpush1.bf16.xpose.msra.mxu0 0
        %3140 = vmatprep.subr.bf16.mxu0 0
        %3141 = vmatpush1.bf16.xpose.msra.mxu0 0
        %3142 = vmatprep.subr.bf16.mxu0 0
        %3143 = vmatpush1.bf16.xpose.msra.mxu0 0
        %3144 = vmatprep.subr.bf16.mxu0 0
        %3145 = vmatpush1.bf16.xpose.msra.mxu0 %v3128
        %3146 = vmatprep.subr.bf16.mxu0 0
        %3147 = vmatpush2.bf16.xpose.msra.mxu0 0
        %3148 = vmatprep.subr.bf16.mxu0 0
        %3149 = vmatpush2.bf16.xpose.msra.mxu0 0
        %3150 = vmatprep.subr.bf16.mxu0 0
        %3151 = vmatpush2.bf16.xpose.msra.mxu0 0
        %3152 = vmatprep.subr.bf16.mxu0 0
        %3153 = vmatpush2.bf16.xpose.msra.mxu0 0
        %3154 = vmatprep.subr.bf16.mxu0 0
        %3155 = vmatpush2.bf16.xpose.msra.mxu0 0
        %3156 = vmatprep.subr.bf16.mxu0 0
        %3157 = vmatpush2.bf16.xpose.msra.mxu0 0
        %3158 = vmatprep.subr.bf16.mxu0 0
        %3159 = vmatpush2.bf16.xpose.msra.mxu0 0
        %3160 = vmatprep.subr.bf16.mxu0 0
        %3161 = vmatpush2.bf16.xpose.msra.mxu0 0
        %3162 = vmatprep.mubr.bf16.mxu0 0
        %3163 = vmatmul.mubr.bf16.gmra.mxu0 %v3125
        %v3164 = vpop.f32.mrf.mxu0
        %v3165 = vadd.f32 0.0, %v3164
        %v3166 = vpop.f32.mrf.mxu0
        %v3167 = vpop.f32.mrf.mxu0
        %v3168 = vadd.f32 0.0, %v3167
        %v3169 = vpop.f32.mrf.mxu0
        %3170 = vdwg.mxu0
        %v3172 = vsel %vm388, %v3067, 0
        %v3175 = vsel %vm388, %v3071, 0
        %3177 = vmatprep.subr.bf16.mxu0 0
        %3178 = vmatpush1.bf16.xpose.msra.mxu0 0
        %3179 = vmatprep.subr.bf16.mxu0 0
        %3180 = vmatpush1.bf16.xpose.msra.mxu0 0
        %3181 = vmatprep.subr.bf16.mxu0 0
        %3182 = vmatpush1.bf16.xpose.msra.mxu0 0
        %3183 = vmatprep.subr.bf16.mxu0 0
        %3184 = vmatpush1.bf16.xpose.msra.mxu0 0
        %3185 = vmatprep.subr.bf16.mxu0 0
        %3186 = vmatpush1.bf16.xpose.msra.mxu0 0
        %3187 = vmatprep.subr.bf16.mxu0 0
        %3188 = vmatpush1.bf16.xpose.msra.mxu0 0
        %3189 = vmatprep.subr.bf16.mxu0 0
        %3190 = vmatpush1.bf16.xpose.msra.mxu0 0
        %3191 = vmatprep.subr.bf16.mxu0 0
        %3192 = vmatpush1.bf16.xpose.msra.mxu0 %v3175
        %3193 = vmatprep.subr.bf16.mxu0 0
        %3194 = vmatpush2.bf16.xpose.msra.mxu0 0
        %3195 = vmatprep.subr.bf16.mxu0 0
        %3196 = vmatpush2.bf16.xpose.msra.mxu0 0
        %3197 = vmatprep.subr.bf16.mxu0 0
        %3198 = vmatpush2.bf16.xpose.msra.mxu0 0
        %3199 = vmatprep.subr.bf16.mxu0 0
        %3200 = vmatpush2.bf16.xpose.msra.mxu0 0
        %3201 = vmatprep.subr.bf16.mxu0 0
        %3202 = vmatpush2.bf16.xpose.msra.mxu0 0
        %3203 = vmatprep.subr.bf16.mxu0 0
        %3204 = vmatpush2.bf16.xpose.msra.mxu0 0
        %3205 = vmatprep.subr.bf16.mxu0 0
        %3206 = vmatpush2.bf16.xpose.msra.mxu0 0
        %3207 = vmatprep.subr.bf16.mxu0 0
        %3208 = vmatpush2.bf16.xpose.msra.mxu0 0
        %3209 = vmatprep.mubr.bf16.mxu0 0
        %3210 = vmatmul.mubr.bf16.gmra.mxu0 %v3172
        %v3211 = vpop.f32.mrf.mxu0
        %v3212 = vadd.f32 0.0, %v3211
        %v3213 = vpop.f32.mrf.mxu0
        %v3214 = vpop.f32.mrf.mxu0
        %v3215 = vadd.f32 0.0, %v3214
        %v3216 = vpop.f32.mrf.mxu0
        %3217 = vdwg.mxu0
        %v3219 = vsel %vm388, %v3068, 0
        %v3222 = vsel %vm388, %v3072, 0
        %3224 = vmatprep.subr.bf16.mxu0 0
        %3225 = vmatpush1.bf16.xpose.msra.mxu0 0
        %3226 = vmatprep.subr.bf16.mxu0 0
        %3227 = vmatpush1.bf16.xpose.msra.mxu0 0
        %3228 = vmatprep.subr.bf16.mxu0 0
        %3229 = vmatpush1.bf16.xpose.msra.mxu0 0
        %3230 = vmatprep.subr.bf16.mxu0 0
        %3231 = vmatpush1.bf16.xpose.msra.mxu0 0
        %3232 = vmatprep.subr.bf16.mxu0 0
        %3233 = vmatpush1.bf16.xpose.msra.mxu0 0
        %3234 = vmatprep.subr.bf16.mxu0 0
        %3235 = vmatpush1.bf16.xpose.msra.mxu0 0
        %3236 = vmatprep.subr.bf16.mxu0 0
        %3237 = vmatpush1.bf16.xpose.msra.mxu0 0
        %3238 = vmatprep.subr.bf16.mxu0 0
        %3239 = vmatpush1.bf16.xpose.msra.mxu0 %v3222
        %3240 = vmatprep.subr.bf16.mxu0 0
        %3241 = vmatpush2.bf16.xpose.msra.mxu0 0
        %3242 = vmatprep.subr.bf16.mxu0 0
        %3243 = vmatpush2.bf16.xpose.msra.mxu0 0
        %3244 = vmatprep.subr.bf16.mxu0 0
        %3245 = vmatpush2.bf16.xpose.msra.mxu0 0
        %3246 = vmatprep.subr.bf16.mxu0 0
        %3247 = vmatpush2.bf16.xpose.msra.mxu0 0
        %3248 = vmatprep.subr.bf16.mxu0 0
        %3249 = vmatpush2.bf16.xpose.msra.mxu0 0
        %3250 = vmatprep.subr.bf16.mxu0 0
        %3251 = vmatpush2.bf16.xpose.msra.mxu0 0
        %3252 = vmatprep.subr.bf16.mxu0 0
        %3253 = vmatpush2.bf16.xpose.msra.mxu0 0
        %3254 = vmatprep.subr.bf16.mxu0 0
        %3255 = vmatpush2.bf16.xpose.msra.mxu0 0
        %3256 = vmatprep.mubr.bf16.mxu0 0
        %3257 = vmatmul.mubr.bf16.gmra.mxu0 %v3219
        %v3258 = vpop.f32.mrf.mxu0
        %v3259 = vadd.f32 0.0, %v3258
        %v3260 = vpop.f32.mrf.mxu0
        %v3261 = vpop.f32.mrf.mxu0
        %v3262 = vadd.f32 0.0, %v3261
        %v3263 = vpop.f32.mrf.mxu0
        %3264 = vdwg.mxu0
        %v3265 = vsel %vm820, %v3118, -inf
        %3266 = vmax.xlane.f32.xlu0 %v3265
        %v3267 = vpop.xlane.xlu0 %3266
        %v3268 = vsel %vm820, %v3121, -inf
        %3269 = vmax.xlane.f32.xlu0 %v3268
        %v3270 = vpop.xlane.xlu0 %3269
        %v3271 = vsel %vm820, %v3165, -inf
        %3272 = vmax.xlane.f32.xlu0 %v3271
        %v3273 = vpop.xlane.xlu0 %3272
        %v3274 = vsel %vm820, %v3168, -inf
        %3275 = vmax.xlane.f32.xlu0 %v3274
        %v3276 = vpop.xlane.xlu0 %3275
        %v3277 = vsel %vm820, %v3212, -inf
        %3278 = vmax.xlane.f32.xlu0 %v3277
        %v3279 = vpop.xlane.xlu0 %3278
        %v3280 = vsel %vm820, %v3215, -inf
        %3281 = vmax.xlane.f32.xlu0 %v3280
        %v3282 = vpop.xlane.xlu0 %3281
        %v3283 = vsel %vm820, %v3259, -inf
        %3284 = vmax.xlane.f32.xlu0 %v3283
        %v3285 = vpop.xlane.xlu0 %3284
        %v3286 = vsel %vm820, %v3262, -inf
        %3287 = vmax.xlane.f32.xlu0 %v3286
        %v3288 = vpop.xlane.xlu0 %3287
        %v3289 = vsub.f32 %v3118, %v3267
        %v3290 = vsub.f32 %v3121, %v3270
        %v3291 = vsub.f32 %v3165, %v3273
        %v3292 = vsub.f32 %v3168, %v3276
        %v3293 = vsub.f32 %v3212, %v3279
        %v3294 = vsub.f32 %v3215, %v3282
        %v3295 = vsub.f32 %v3259, %v3285
        %v3296 = vsub.f32 %v3262, %v3288
        %v3297 = vmul.f32 %v3289, 1.442695
        %v3298 = vpow.pop %v3297
        %v3299 = vmul.f32 %v3290, 1.442695
        %v3300 = vpow.pop %v3299
        %v3301 = vmul.f32 %v3291, 1.442695
        %v3302 = vpow.pop %v3301
        %v3303 = vmul.f32 %v3292, 1.442695
        %v3304 = vpow.pop %v3303
        %v3305 = vmul.f32 %v3293, 1.442695
        %v3306 = vpow.pop %v3305
        %v3307 = vmul.f32 %v3294, 1.442695
        %v3308 = vpow.pop %v3307
        %v3309 = vmul.f32 %v3295, 1.442695
        %v3310 = vpow.pop %v3309
        %v3311 = vmul.f32 %v3296, 1.442695
        %v3312 = vpow.pop %v3311
        %v3313 = vsel %vm820, %v3298, 0.0
        %3314 = vadd.xlane.f32.xlu0 %v3313
        %v3315 = vpop.xlane.xlu0 %3314
        %v3316 = vsel %vm820, %v3300, 0.0
        %3317 = vadd.xlane.f32.xlu0 %v3316
        %v3318 = vpop.xlane.xlu0 %3317
        %v3319 = vsel %vm820, %v3302, 0.0
        %3320 = vadd.xlane.f32.xlu0 %v3319
        %v3321 = vpop.xlane.xlu0 %3320
        %v3322 = vsel %vm820, %v3304, 0.0
        %3323 = vadd.xlane.f32.xlu0 %v3322
        %v3324 = vpop.xlane.xlu0 %3323
        %v3325 = vsel %vm820, %v3306, 0.0
        %3326 = vadd.xlane.f32.xlu0 %v3325
        %v3327 = vpop.xlane.xlu0 %3326
        %v3328 = vsel %vm820, %v3308, 0.0
        %3329 = vadd.xlane.f32.xlu0 %v3328
        %v3330 = vpop.xlane.xlu0 %3329
        %v3331 = vsel %vm820, %v3310, 0.0
        %3332 = vadd.xlane.f32.xlu0 %v3331
        %v3333 = vpop.xlane.xlu0 %3332
        %v3334 = vsel %vm820, %v3312, 0.0
        %3335 = vadd.xlane.f32.xlu0 %v3334
        %v3336 = vpop.xlane.xlu0 %3335
        %v3337 = vrcp.pop %v3315
        %v3338 = vrcp.pop %v3318
        %v3339 = vrcp.pop %v3321
        %v3340 = vrcp.pop %v3324
        %v3341 = vrcp.pop %v3327
        %v3342 = vrcp.pop %v3330
        %v3343 = vrcp.pop %v3333
        %v3344 = vrcp.pop %v3336
        %v3345 = vmul.f32 %v3298, %v3337
        %v3346 = vmul.f32 %v3300, %v3338
        %v3347 = vmul.f32 %v3302, %v3339
        %v3348 = vmul.f32 %v3304, %v3340
        %v3349 = vmul.f32 %v3306, %v3341
        %v3350 = vmul.f32 %v3308, %v3342
        %v3351 = vmul.f32 %v3310, %v3343
        %v3352 = vmul.f32 %v3312, %v3344
        %v3353 = vpack.c.bf16 %v3346, %v3345
        %v3354 = vpack.c.bf16 %v3348, %v3347
        %v3355 = vpack.c.bf16 %v3350, %v3349
        %v3356 = vpack.c.bf16 %v3352, %v3351
        %v3358 = vsel %vm820, %v3353, 0
        %3360 = vmatprep.subr.bf16.mxu0 0
        %3361 = vmatpush1.bf16.msra.mxu0 0
        %3362 = vmatprep.subr.bf16.mxu0 0
        %3363 = vmatpush1.bf16.msra.mxu0 0
        %3364 = vmatprep.subr.bf16.mxu0 0
        %3365 = vmatpush1.bf16.msra.mxu0 0
        %3366 = vmatprep.subr.bf16.mxu0 0
        %3367 = vmatpush1.bf16.msra.mxu0 0
        %3368 = vmatprep.subr.bf16.mxu0 0
        %3369 = vmatpush1.bf16.msra.mxu0 0
        %3370 = vmatprep.subr.bf16.mxu0 0
        %3371 = vmatpush1.bf16.msra.mxu0 0
        %3372 = vmatprep.subr.bf16.mxu0 0
        %3373 = vmatpush1.bf16.msra.mxu0 0
        %3374 = vmatprep.subr.bf16.mxu0 0
        %3375 = vmatpush1.bf16.msra.mxu0 %v3073
        %3376 = vmatprep.subr.bf16.mxu0 0
        %3377 = vmatpush2.bf16.msra.mxu0 0
        %3378 = vmatprep.subr.bf16.mxu0 0
        %3379 = vmatpush2.bf16.msra.mxu0 0
        %3380 = vmatprep.subr.bf16.mxu0 0
        %3381 = vmatpush2.bf16.msra.mxu0 0
        %3382 = vmatprep.subr.bf16.mxu0 0
        %3383 = vmatpush2.bf16.msra.mxu0 0
        %3384 = vmatprep.subr.bf16.mxu0 0
        %3385 = vmatpush2.bf16.msra.mxu0 0
        %3386 = vmatprep.subr.bf16.mxu0 0
        %3387 = vmatpush2.bf16.msra.mxu0 0
        %3388 = vmatprep.subr.bf16.mxu0 0
        %3389 = vmatpush2.bf16.msra.mxu0 0
        %3390 = vmatprep.subr.bf16.mxu0 0
        %3391 = vmatpush2.bf16.msra.mxu0 0
        %3392 = vmatprep.mubr.bf16.mxu0 0
        %3393 = vmatmul.mubr.bf16.gmra.mxu0 %v3358
        %v3394 = vpop.f32.mrf.mxu0
        %v3395 = vadd.f32 0.0, %v3394
        %v3396 = vpop.f32.mrf.mxu0
        %v3397 = vpop.f32.mrf.mxu0
        %v3398 = vadd.f32 0.0, %v3397
        %v3399 = vpop.f32.mrf.mxu0
        %3400 = vdwg.mxu0
        %v3402 = vsel %vm820, %v3354, 0
        %3404 = vmatprep.subr.bf16.mxu0 0
        %3405 = vmatpush1.bf16.msra.mxu0 0
        %3406 = vmatprep.subr.bf16.mxu0 0
        %3407 = vmatpush1.bf16.msra.mxu0 0
        %3408 = vmatprep.subr.bf16.mxu0 0
        %3409 = vmatpush1.bf16.msra.mxu0 0
        %3410 = vmatprep.subr.bf16.mxu0 0
        %3411 = vmatpush1.bf16.msra.mxu0 0
        %3412 = vmatprep.subr.bf16.mxu0 0
        %3413 = vmatpush1.bf16.msra.mxu0 0
        %3414 = vmatprep.subr.bf16.mxu0 0
        %3415 = vmatpush1.bf16.msra.mxu0 0
        %3416 = vmatprep.subr.bf16.mxu0 0
        %3417 = vmatpush1.bf16.msra.mxu0 0
        %3418 = vmatprep.subr.bf16.mxu0 0
        %3419 = vmatpush1.bf16.msra.mxu0 %v3074
        %3420 = vmatprep.subr.bf16.mxu0 0
        %3421 = vmatpush2.bf16.msra.mxu0 0
        %3422 = vmatprep.subr.bf16.mxu0 0
        %3423 = vmatpush2.bf16.msra.mxu0 0
        %3424 = vmatprep.subr.bf16.mxu0 0
        %3425 = vmatpush2.bf16.msra.mxu0 0
        %3426 = vmatprep.subr.bf16.mxu0 0
        %3427 = vmatpush2.bf16.msra.mxu0 0
        %3428 = vmatprep.subr.bf16.mxu0 0
        %3429 = vmatpush2.bf16.msra.mxu0 0
        %3430 = vmatprep.subr.bf16.mxu0 0
        %3431 = vmatpush2.bf16.msra.mxu0 0
        %3432 = vmatprep.subr.bf16.mxu0 0
        %3433 = vmatpush2.bf16.msra.mxu0 0
        %3434 = vmatprep.subr.bf16.mxu0 0
        %3435 = vmatpush2.bf16.msra.mxu0 0
        %3436 = vmatprep.mubr.bf16.mxu0 0
        %3437 = vmatmul.mubr.bf16.gmra.mxu0 %v3402
        %v3438 = vpop.f32.mrf.mxu0
        %v3439 = vadd.f32 0.0, %v3438
        %v3440 = vpop.f32.mrf.mxu0
        %v3441 = vpop.f32.mrf.mxu0
        %v3442 = vadd.f32 0.0, %v3441
        %v3443 = vpop.f32.mrf.mxu0
        %3444 = vdwg.mxu0
        %v3446 = vsel %vm820, %v3355, 0
        %3448 = vmatprep.subr.bf16.mxu0 0
        %3449 = vmatpush1.bf16.msra.mxu0 0
        %3450 = vmatprep.subr.bf16.mxu0 0
        %3451 = vmatpush1.bf16.msra.mxu0 0
        %3452 = vmatprep.subr.bf16.mxu0 0
        %3453 = vmatpush1.bf16.msra.mxu0 0
        %3454 = vmatprep.subr.bf16.mxu0 0
        %3455 = vmatpush1.bf16.msra.mxu0 0
        %3456 = vmatprep.subr.bf16.mxu0 0
        %3457 = vmatpush1.bf16.msra.mxu0 0
        %3458 = vmatprep.subr.bf16.mxu0 0
        %3459 = vmatpush1.bf16.msra.mxu0 0
        %3460 = vmatprep.subr.bf16.mxu0 0
        %3461 = vmatpush1.bf16.msra.mxu0 0
        %3462 = vmatprep.subr.bf16.mxu0 0
        %3463 = vmatpush1.bf16.msra.mxu0 %v3075
        %3464 = vmatprep.subr.bf16.mxu0 0
        %3465 = vmatpush2.bf16.msra.mxu0 0
        %3466 = vmatprep.subr.bf16.mxu0 0
        %3467 = vmatpush2.bf16.msra.mxu0 0
        %3468 = vmatprep.subr.bf16.mxu0 0
        %3469 = vmatpush2.bf16.msra.mxu0 0
        %3470 = vmatprep.subr.bf16.mxu0 0
        %3471 = vmatpush2.bf16.msra.mxu0 0
        %3472 = vmatprep.subr.bf16.mxu0 0
        %3473 = vmatpush2.bf16.msra.mxu0 0
        %3474 = vmatprep.subr.bf16.mxu0 0
        %3475 = vmatpush2.bf16.msra.mxu0 0
        %3476 = vmatprep.subr.bf16.mxu0 0
        %3477 = vmatpush2.bf16.msra.mxu0 0
        %3478 = vmatprep.subr.bf16.mxu0 0
        %3479 = vmatpush2.bf16.msra.mxu0 0
        %3480 = vmatprep.mubr.bf16.mxu0 0
        %3481 = vmatmul.mubr.bf16.gmra.mxu0 %v3446
        %v3482 = vpop.f32.mrf.mxu0
        %v3483 = vadd.f32 0.0, %v3482
        %v3484 = vpop.f32.mrf.mxu0
        %v3485 = vpop.f32.mrf.mxu0
        %v3486 = vadd.f32 0.0, %v3485
        %v3487 = vpop.f32.mrf.mxu0
        %3488 = vdwg.mxu0
        %v3490 = vsel %vm820, %v3356, 0
        %3492 = vmatprep.subr.bf16.mxu0 0
        %3493 = vmatpush1.bf16.msra.mxu0 0
        %3494 = vmatprep.subr.bf16.mxu0 0
        %3495 = vmatpush1.bf16.msra.mxu0 0
        %3496 = vmatprep.subr.bf16.mxu0 0
        %3497 = vmatpush1.bf16.msra.mxu0 0
        %3498 = vmatprep.subr.bf16.mxu0 0
        %3499 = vmatpush1.bf16.msra.mxu0 0
        %3500 = vmatprep.subr.bf16.mxu0 0
        %3501 = vmatpush1.bf16.msra.mxu0 0
        %3502 = vmatprep.subr.bf16.mxu0 0
        %3503 = vmatpush1.bf16.msra.mxu0 0
        %3504 = vmatprep.subr.bf16.mxu0 0
        %3505 = vmatpush1.bf16.msra.mxu0 0
        %3506 = vmatprep.subr.bf16.mxu0 0
        %3507 = vmatpush1.bf16.msra.mxu0 %v3076
        %3508 = vmatprep.subr.bf16.mxu0 0
        %3509 = vmatpush2.bf16.msra.mxu0 0
        %3510 = vmatprep.subr.bf16.mxu0 0
        %3511 = vmatpush2.bf16.msra.mxu0 0
        %3512 = vmatprep.subr.bf16.mxu0 0
        %3513 = vmatpush2.bf16.msra.mxu0 0
        %3514 = vmatprep.subr.bf16.mxu0 0
        %3515 = vmatpush2.bf16.msra.mxu0 0
        %3516 = vmatprep.subr.bf16.mxu0 0
        %3517 = vmatpush2.bf16.msra.mxu0 0
        %3518 = vmatprep.subr.bf16.mxu0 0
        %3519 = vmatpush2.bf16.msra.mxu0 0
        %3520 = vmatprep.subr.bf16.mxu0 0
        %3521 = vmatpush2.bf16.msra.mxu0 0
        %3522 = vmatprep.subr.bf16.mxu0 0
        %3523 = vmatpush2.bf16.msra.mxu0 0
        %3524 = vmatprep.mubr.bf16.mxu0 0
        %3525 = vmatmul.mubr.bf16.gmra.mxu0 %v3490
        %v3526 = vpop.f32.mrf.mxu0
        %v3527 = vadd.f32 0.0, %v3526
        %v3528 = vpop.f32.mrf.mxu0
        %v3529 = vpop.f32.mrf.mxu0
        %v3530 = vadd.f32 0.0, %v3529
        %v3531 = vpop.f32.mrf.mxu0
        %3532 = vdwg.mxu0
        %v3533 = vpack.c.bf16 %v3398, %v3395
        %v3534 = vpack.c.bf16 %v3442, %v3439
        %v3535 = vpack.c.bf16 %v3486, %v3483
        %v3536 = vpack.c.bf16 %v3530, %v3527
        %v3541 = vunpack.c.l.b16 %v2830
        %v3542 = vunpack.c.l.b16 %v2831
        %v3543 = vunpack.c.l.b16 %v2832
        %v3544 = vunpack.c.l.b16 %v2833
        %v3545 = vpack.c.b16 %v3542, %v3541
        %v3546 = vpack.c.b16 %v3544, %v3543
        %v3550 = vsel %vm388, %v3533, 0
        %v3553 = vsel %vm388, %v3534, 0
        %v3556 = vsel %vm388, %v3535, 0
        %v3559 = vsel %vm388, %v3536, 0
        %3561 = vmatprep.subr.bf16.mxu0 0
        %3562 = vmatpush1.bf16.msra.mxu0 0
        %3563 = vmatprep.subr.bf16.mxu0 0
        %3564 = vmatpush1.bf16.msra.mxu0 0
        %3565 = vmatprep.subr.bf16.mxu0 0
        %3566 = vmatpush1.bf16.msra.mxu0 0
        %3567 = vmatprep.subr.bf16.mxu0 0
        %3568 = vmatpush1.bf16.msra.mxu0 0
        %3569 = vmatprep.subr.bf16.mxu0 0
        %3570 = vmatpush1.bf16.msra.mxu0 0
        %3571 = vmatprep.subr.bf16.mxu0 0
        %3572 = vmatpush1.bf16.msra.mxu0 0
        %3573 = vmatprep.subr.bf16.mxu0 0
        %3574 = vmatpush1.bf16.msra.mxu0 %v3546
        %3575 = vmatprep.subr.bf16.mxu0 0
        %3576 = vmatpush1.bf16.msra.mxu0 %v3545
        %3577 = vmatprep.subr.bf16.mxu0 0
        %3578 = vmatpush2.bf16.msra.mxu0 0
        %3579 = vmatprep.subr.bf16.mxu0 0
        %3580 = vmatpush2.bf16.msra.mxu0 0
        %3581 = vmatprep.subr.bf16.mxu0 0
        %3582 = vmatpush2.bf16.msra.mxu0 0
        %3583 = vmatprep.subr.bf16.mxu0 0
        %3584 = vmatpush2.bf16.msra.mxu0 0
        %3585 = vmatprep.subr.bf16.mxu0 0
        %3586 = vmatpush2.bf16.msra.mxu0 0
        %3587 = vmatprep.subr.bf16.mxu0 0
        %3588 = vmatpush2.bf16.msra.mxu0 0
        %3589 = vmatprep.subr.bf16.mxu0 0
        %3590 = vmatpush2.bf16.msra.mxu0 0
        %3591 = vmatprep.subr.bf16.mxu0 0
        %3592 = vmatpush2.bf16.msra.mxu0 0
        %3593 = vmatprep.mubr.bf16.mxu0 0
        %3594 = vmatmul.mubr.bf16.gmra.mxu0 %v3550
        %v3595 = vpop.f32.mrf.mxu0
        %v3596 = vadd.f32 0.0, %v3595
        %v3597 = vpop.f32.mrf.mxu0
        %v3598 = vpop.f32.mrf.mxu0
        %v3599 = vadd.f32 0.0, %v3598
        %v3600 = vpop.f32.mrf.mxu0
        %3601 = vmatprep.mubr.bf16.mxu0 0
        %3602 = vmatmul.mubr.bf16.gmra.mxu0 %v3553
        %v3603 = vpop.f32.mrf.mxu0
        %v3604 = vadd.f32 0.0, %v3603
        %v3605 = vpop.f32.mrf.mxu0
        %v3606 = vpop.f32.mrf.mxu0
        %v3607 = vadd.f32 0.0, %v3606
        %v3608 = vpop.f32.mrf.mxu0
        %3609 = vmatprep.mubr.bf16.mxu0 0
        %3610 = vmatmul.mubr.bf16.gmra.mxu0 %v3556
        %v3611 = vpop.f32.mrf.mxu0
        %v3612 = vadd.f32 0.0, %v3611
        %v3613 = vpop.f32.mrf.mxu0
        %v3614 = vpop.f32.mrf.mxu0
        %v3615 = vadd.f32 0.0, %v3614
        %v3616 = vpop.f32.mrf.mxu0
        %3617 = vmatprep.mubr.bf16.mxu0 0
        %3618 = vmatmul.mubr.bf16.gmra.mxu0 %v3559
        %v3619 = vpop.f32.mrf.mxu0
        %v3620 = vadd.f32 0.0, %v3619
        %v3621 = vpop.f32.mrf.mxu0
        %v3622 = vpop.f32.mrf.mxu0
        %v3623 = vadd.f32 0.0, %v3622
        %v3624 = vpop.f32.mrf.mxu0
        %3625 = vdwg.mxu0
        %v3626 = vadd.f32 %v2806, %v3596
        %v3627 = vadd.f32 %v2807, %v3599
        %v3628 = vadd.f32 %v2808, %v3604
        %v3629 = vadd.f32 %v2809, %v3607
        %v3630 = vadd.f32 %v2810, %v3612
        %v3631 = vadd.f32 %v2811, %v3615
        %v3632 = vadd.f32 %v2812, %v3620
        %v3633 = vadd.f32 %v2813, %v3623
        %v3634 = vld [vmem:[%s5] sm:$0x1]
        %v3636 = vlaneseq
        %v3637 = vshrl.u32 %v3636, 7
        %v3638 = vsub.s32 0, %v3637
        %v3639 = vrot.slane %v3634, %v3638
        %v3641 = vadd.f32 %v3626, %v3639
        %v3642 = vadd.f32 %v3627, %v3639
        %v3643 = vadd.f32 %v3628, %v3639
        %v3644 = vadd.f32 %v3629, %v3639
        %v3645 = vadd.f32 %v3630, %v3639
        %v3646 = vadd.f32 %v3631, %v3639
        %v3647 = vadd.f32 %v3632, %v3639
        %v3648 = vadd.f32 %v3633, %v3639
        %3649 = vst.msk [vmem:[%s328] sm:$0xff] %vm388, %v3641
        %3650 = vst.msk [vmem:[%s328 + $0x8] sm:$0xff] %vm388, %v3642
        %3651 = vst.msk [vmem:[%s328 + $0x10] sm:$0xff] %vm388, %v3643
        %3652 = vst.msk [vmem:[%s328 + $0x18] sm:$0xff] %vm388, %v3644
        %3653 = vst.msk [vmem:[%s328 + $0x20] sm:$0xff] %vm388, %v3645
        %3654 = vst.msk [vmem:[%s328 + $0x28] sm:$0xff] %vm388, %v3646
        %3655 = vst.msk [vmem:[%s328 + $0x30] sm:$0xff] %vm388, %v3647
        %3656 = vst.msk [vmem:[%s328 + $0x38] sm:$0xff] %vm388, %v3648
        %s3657 = sand.u32 %s164, 1
        %s3658 = scalar_lea.sflag [#allocation4], %s3657
        %s3659 = sand.u32 %s164, 1
        %s3660 = smul.addr %s3659, 64
        %s3661 = scalar_lea.vmem [#allocation11], %s3660
        // Predicated region
        $region65: #{tpu_custom_call.1} parent=43 // pred_check
          %p3662 = pneg %p174
        $region66: #{tpu_custom_call.1} parent=43 // pred_check_branch
          %3664 = sbr.rel (%p3662) target = $region68
        $region67: #{tpu_custom_call.1} parent=43 // pred_region
          %s3665 = smul.u32 4, %s25
          %s3667 = ssub.s32 1024, 1024
          %3668 = vsyncadd %s3658, %s3667
          %s3669 = smul.addr %s3665, 2
          %s3670 = smul.addr %s3669, 128
          %s3671 = scalar_lea.hbm %s6, %s3670
          %s3672 = sshll.u32 %s3661, 4
          %s3673 = int_to_ptr.vmem [resolvable:$true] %s3672
          %3678 = dma.vmem_to_hbm [thread:$0]  %s3673, 1024, %s3671, %s3658, 128, 128, 8
        $region68: #{tpu_custom_call.1} parent=43 // pred_fallthru
          _
      $region44: #{tpu_custom_call.1} parent=5 // pred_fallthru
        _
      %p3679 = scmp.le.s32.totalorder 2, %s20
      // Predicated region
      $region69: #{tpu_custom_call.1} parent=5 // pred_check
        %p3680 = pneg %p3679
      $region70: #{tpu_custom_call.1} parent=5 // pred_check_branch
        %3682 = sbr.rel (%p3680) target = $region72
      $region71: #{tpu_custom_call.1} parent=5 // pred_region
        %s3683 = ssub.s32 %s20, 2
        // Predicated region
        $region73: #{tpu_custom_call.1} parent=71 // pred_check
          %p3684 = pneg %p180
        $region74: #{tpu_custom_call.1} parent=71 // pred_check_branch
          %3686 = sbr.rel (%p3684) target = $region76
        $region75: #{tpu_custom_call.1} parent=71 // pred_region
          %s3687 = sand.u32 %s165, 1
          %s3688 = scalar_lea.sflag [#allocation4], %s3687
          %s3689 = sand.u32 %s165, 1
          %s3690 = smul.addr %s3689, 64
          %s3691 = scalar_lea.vmem [#allocation11], %s3690
          %3692 = dma.done %s3688, 1024
        $region76: #{tpu_custom_call.1} parent=71 // pred_fallthru
          _
      $region72: #{tpu_custom_call.1} parent=5 // pred_fallthru
        _
    $region6: #{tpu_custom_call.1} parent=1 // loop_footer
      %s24 = sadd.s32 1, %s20
    $region7: #{tpu_custom_call.1} parent=1 // loop_footer_branch
      %19 = sbr.rel target = $region3
    $region8: #{tpu_custom_call.1} parent=1 // loop_exit
      _
    %3693 = vsyncpa [#allocation3], 1
    %s3694 = scalar_lea.sflag [#allocation3], 1
    %3695 = vsyncpa %s3694, 1
    %3696 = vsyncpa [#allocation6], 1
    %3697 = vsyncpa [#allocation9], 1
    %3698 = vsyncpa [#allocation4], 1
    %s3699 = scalar_lea.sflag [#allocation4], 1
    %3700 = vsyncpa %s3699, 1

</llo_original>
